<compile_context>
chip_gen: v5e
topology: v5e:2x2
jax: 0.10.0
libtpu: 0.0.40
codegen_flags: <defaults>
</compile_context>

<pallas_src>
import jax
import jax.numpy as jnp
from jax import lax
from jax.experimental import pallas as pl
from jax.experimental.pallas import tpu as pltpu

# Synthetic, small stand-ins for the original embed_size=300 / max_features=120000.
EMBED_SIZE = 64
MAX_FEATURES = 1000


def _vmem_spec():
    return pl.BlockSpec(memory_space=pltpu.MemorySpace.VMEM)


# ---------------------------------------------------------------------------
# Fused kernel: BiLSTM -> BiGRU -> (mean/max pool, hh quirk, Linear/ReLU/Linear).
# PyTorch gate orders: LSTM (i, f, g, o), GRU (r, z, n); all biases are 0.
# ---------------------------------------------------------------------------
def fused_net_kernel(x_ref, lwih_ref, lwhh_ref, gwih_ref, gwhh_ref,
                     f_ref, w1_ref, b1_ref, w2_ref, b2_ref,
                     out_ref,
                     lstm_ig_s, hlstm_s, gru_ig_s,
                     lstm_h_s, lstm_c_s, gru_h_s, hh_s):
    TB = x_ref.shape[0]
    H = lwhh_ref.shape[0]
    B = lstm_h_s.shape[0] // 2
    T = TB // B
    H2, H3, H4 = 2 * H, 3 * H, 4 * H
    f32 = jnp.float32

    # ---------------- BiLSTM ----------------
    # Hoisted input projection: one big MXU matmul instead of 2T tiny ones.
    lstm_ig_s[...] = jnp.dot(x_ref[...], lwih_ref[...],
                             preferred_element_type=f32)          # [TB, 8H]

    lstm_h_s[...] = jnp.zeros_like(lstm_h_s)                       # [2B, H]
    lstm_c_s[...] = jnp.zeros_like(lstm_c_s)
    lwhh = lwhh_ref[...]                                           # [H, 8H]

    def lstm_gates(g, c):
        i = jax.nn.sigmoid(g[:, 0:H])
        f = jax.nn.sigmoid(g[:, H:H2])
        gg = jnp.tanh(g[:, H2:H3])
        o = jax.nn.sigmoid(g[:, H3:H4])
        c_new = f * c + i * gg
        return o * jnp.tanh(c_new), c_new

    # Fully unrolled time loop (static T): fwd processes t, bwd processes T-1-t.
    for t in range(T):
        tb = T - 1 - t
        hfb = lstm_h_s[...]                                        # [2B, H]
        cfb = lstm_c_s[...]
        hg = jnp.dot(hfb, lwhh, preferred_element_type=f32)        # [2B, 8H]

        g_f = lstm_ig_s[t * B:(t + 1) * B, 0:H4] + hg[0:B, 0:H4]
        g_b = lstm_ig_s[tb * B:(tb + 1) * B, H4:2 * H4] + hg[B:2 * B, H4:2 * H4]

        h_f, c_f = lstm_gates(g_f, cfb[0:B, :])
        h_b, c_b = lstm_gates(g_b, cfb[B:2 * B, :])

        # h_lstm written directly with fwd in cols 0:H, bwd in cols H:2H.
        hlstm_s[t * B:(t + 1) * B, 0:H] = h_f
        hlstm_s[tb * B:(tb + 1) * B, H:H2] = h_b
        lstm_h_s[0:B, :] = h_f
        lstm_h_s[B:2 * B, :] = h_b
        lstm_c_s[0:B, :] = c_f
        lstm_c_s[B:2 * B, :] = c_b

    # ---------------- BiGRU ----------------
    gru_ig_s[...] = jnp.dot(hlstm_s[...], gwih_ref[...],
                            preferred_element_type=f32)            # [TB, 6H]

    gru_h_s[...] = jnp.zeros_like(gru_h_s)
    gwhh = gwhh_ref[...]                                           # [H, 6H]

    sum_f = jnp.zeros((B, H), f32)
    sum_b = jnp.zeros((B, H), f32)
    max_f = jnp.full((B, H), -jnp.inf, f32)
    max_b = jnp.full((B, H), -jnp.inf, f32)
    h_f = jnp.zeros((B, H), f32)
    h_b = jnp.zeros((B, H), f32)

    def gru_gates(ig, hg, h):
        r = jax.nn.sigmoid(ig[:, 0:H] + hg[:, 0:H])
        z = jax.nn.sigmoid(ig[:, H:H2] + hg[:, H:H2])
        n = jnp.tanh(ig[:, H2:H3] + r * hg[:, H2:H3])
        return (1.0 - z) * n + z * h

    for t in range(T):
        tb = T - 1 - t
        hfb = gru_h_s[...]                                         # [2B, H]
        hg = jnp.dot(hfb, gwhh, preferred_element_type=f32)        # [2B, 6H]

        ig_f = gru_ig_s[t * B:(t + 1) * B, 0:H3]
        ig_b = gru_ig_s[tb * B:(tb + 1) * B, H3:2 * H3]

        h_f = gru_gates(ig_f, hg[0:B, 0:H3], hfb[0:B, :])
        h_b = gru_gates(ig_b, hg[B:2 * B, H3:2 * H3], hfb[B:2 * B, :])

        gru_h_s[0:B, :] = h_f
        gru_h_s[B:2 * B, :] = h_b

        # On-the-fly mean/max pooling over time (sums/maxes commute, so the
        # fwd/bwd time ordering does not matter).  h_gru is never materialized.
        sum_f = sum_f + h_f
        sum_b = sum_b + h_b
        max_f = jnp.maximum(max_f, h_f)
        max_b = jnp.maximum(max_b, h_b)

    # Final hidden states: fwd h after t=T-1, bwd h after position 0.
    hnf, hnb = h_f, h_b

    # ---------------- Head ----------------
    # hh_gru.view(-1, 2H) quirk of the original torch code: the stacked (2, B, H)
    # final state is reinterpreted as (B, 2H), intentionally mixing batch rows.
    # Reproduced exactly here (do NOT "fix" this).
    for i in range(B):
        for a in range(2):
            j = 2 * i + a
            if j < B:
                hh_s[i:i + 1, a * H:(a + 1) * H] = hnf[j:j + 1, :]
            else:
                hh_s[i:i + 1, a * H:(a + 1) * H] = hnb[j - B:j - B + 1, :]
    hh = hh_s[...]

    inv_t = 1.0 / T
    avg_f = sum_f * inv_t
    avg_b = sum_b * inv_t

    # concat(hh, avg, max, f) @ W1 expressed as block-row matmuls (same math,
    # no lane concatenation needed).
    h1 = (jnp.dot(hh, w1_ref[0:H2, :], preferred_element_type=f32)
          + jnp.dot(avg_f, w1_ref[H2:H3, :], preferred_element_type=f32)
          + jnp.dot(avg_b, w1_ref[H3:H4, :], preferred_element_type=f32)
          + jnp.dot(max_f, w1_ref[H4:5 * H, :], preferred_element_type=f32)
          + jnp.dot(max_b, w1_ref[5 * H:6 * H, :], preferred_element_type=f32)
          + jnp.dot(f_ref[...], w1_ref[6 * H:, :], preferred_element_type=f32)
          + b1_ref[...])
    h1 = jnp.maximum(h1, 0.0)        # ReLU; Dropout(0.1) is identity in eval.
    out_ref[...] = (jnp.dot(h1, w2_ref[...], preferred_element_type=f32)
                    + b2_ref[...])


# ---------------------------------------------------------------------------
# Full forward pass: embedding gather in JAX glue, everything else in one kernel.
# ---------------------------------------------------------------------------
def neural_net_forward(params, tokens, feats):
    H = params["lstm"]["whh_f"].shape[0]
    B, T = tokens.shape

    # Embedding lookup (frozen table gather) + embedding_dropout (identity in eval).
    # TODO(synk): fold the gather into the kernel via PrefetchScalarGridSpec row-DMA
    # if it ever shows up in the profile; at real sizes it saves an HBM round trip.
    emb = params["embedding"][tokens]                        # [B, T, E]
    x2d = jnp.transpose(emb, (1, 0, 2)).reshape(T * B, -1)   # row index = t*B + b

    # One-time weight packing: [W_fwd | W_bwd] along the gate/column axis.
    lwih = jnp.concatenate([params["lstm"]["wih_f"], params["lstm"]["wih_b"]], axis=1)
    lwhh = jnp.concatenate([params["lstm"]["whh_f"], params["lstm"]["whh_b"]], axis=1)
    gwih = jnp.concatenate([params["gru"]["wih_f"], params["gru"]["wih_b"]], axis=1)
    gwhh = jnp.concatenate([params["gru"]["whh_f"], params["gru"]["whh_b"]], axis=1)

    return pl.pallas_call(
        fused_net_kernel,
        out_shape=jax.ShapeDtypeStruct((B, 1), jnp.float32),
        in_specs=[_vmem_spec() for _ in range(10)],
        out_specs=_vmem_spec(),
        scratch_shapes=[
            pltpu.VMEM((T * B, 8 * H), jnp.float32),   # hoisted LSTM gate projection
            pltpu.VMEM((T * B, 2 * H), jnp.float32),   # h_lstm (fwd cols 0:H, bwd H:2H)
            pltpu.VMEM((T * B, 6 * H), jnp.float32),   # hoisted GRU gate projection
            pltpu.VMEM((2 * B, H), jnp.float32),       # LSTM h state [fwd; bwd]
            pltpu.VMEM((2 * B, H), jnp.float32),       # LSTM c state [fwd; bwd]
            pltpu.VMEM((2 * B, H), jnp.float32),       # GRU  h state [fwd; bwd]
            pltpu.VMEM((B, 2 * H), jnp.float32),       # hh (torch .view quirk)
        ],
        compiler_params=pltpu.CompilerParams(vmem_limit_bytes=32 * 1024 * 1024),
    )(x2d, lwih, lwhh, gwih, gwhh, feats,
      params["linear"]["w"], params["linear"]["b"],
      params["out"]["w"], params["out"]["b"])


# ---------------------------------------------------------------------------
# Pure-JAX reference (lax.scan) for validation.
# ---------------------------------------------------------------------------
def reference_forward(params, tokens, feats):
    H = params["lstm"]["whh_f"].shape[0]
    emb = params["embedding"][tokens]
    B = emb.shape[0]

    def lstm_dir(x, Wi, Wh):
        def step(carry, x_t):
            h, c = carry
            g = x_t @ Wi + h @ Wh
            i = jax.nn.sigmoid(g[:, :H]); f = jax.nn.sigmoid(g[:, H:2 * H])
            gg = jnp.tanh(g[:, 2 * H:3 * H]); o = jax.nn.sigmoid(g[:, 3 * H:])
            c = f * c + i * gg
            h = o * jnp.tanh(c)
            return (h, c), h
        z = jnp.zeros((B, H), jnp.float32)
        _, hs = lax.scan(step, (z, z), jnp.transpose(x, (1, 0, 2)))
        return jnp.transpose(hs, (1, 0, 2))

    def gru_dir(x, Wi, Wh):
        def step(h, x_t):
            ig = x_t @ Wi; hg = h @ Wh
            r = jax.nn.sigmoid(ig[:, :H] + hg[:, :H])
            z = jax.nn.sigmoid(ig[:, H:2 * H] + hg[:, H:2 * H])
            n = jnp.tanh(ig[:, 2 * H:] + r * hg[:, 2 * H:])
            return (1.0 - z) * n + z * h, (1.0 - z) * n + z * h
        hl, hs = lax.scan(step, jnp.zeros((B, H), jnp.float32),
                          jnp.transpose(x, (1, 0, 2)))
        return jnp.transpose(hs, (1, 0, 2)), hl

    P = params
    lf = lstm_dir(emb, P["lstm"]["wih_f"], P["lstm"]["whh_f"])
    lb = lstm_dir(emb[:, ::-1], P["lstm"]["wih_b"], P["lstm"]["whh_b"])[:, ::-1]
    h_lstm = jnp.concatenate([lf, lb], axis=-1)
    gf, hnf = gru_dir(h_lstm, P["gru"]["wih_f"], P["gru"]["whh_f"])
    gbr, hnb = gru_dir(h_lstm[:, ::-1], P["gru"]["wih_b"], P["gru"]["whh_b"])
    gb = gbr[:, ::-1]
    h_gru = jnp.concatenate([gf, gb], axis=-1)
    hh = jnp.stack([hnf, hnb], axis=0).reshape(-1, 2 * H)
    avg = jnp.mean(h_gru, axis=1); mx = jnp.max(h_gru, axis=1)
    conc = jnp.concatenate([hh, avg, mx, feats], axis=1)
    h1 = jnp.maximum(conc @ P["linear"]["w"] + P["linear"]["b"], 0.0)
    return h1 @ P["out"]["w"] + P["out"]["b"]


# ---------------------------------------------------------------------------
def make_params(key, hidden_size, lin_size, n_features):
    ks = jax.random.split(key, 12)
    H, E = hidden_size, EMBED_SIZE

    def nrm(k, shape, scale):
        return (jax.random.normal(k, shape, jnp.float32) * scale).astype(jnp.float32)

    emb = nrm(ks[0], (MAX_FEATURES, E), 0.1)
    lstm = dict(
        wih_f=nrm(ks[1], (E, 4 * H), (2.0 / E) ** 0.5),
        whh_f=nrm(ks[2], (H, 4 * H), (1.0 / H) ** 0.5),
        wih_b=nrm(ks[3], (E, 4 * H), (2.0 / E) ** 0.5),
        whh_b=nrm(ks[4], (H, 4 * H), (1.0 / H) ** 0.5),
    )  # biases initialized to 0 in the original module -> omitted
    gru = dict(
        wih_f=nrm(ks[5], (2 * H, 3 * H), (2.0 / (2 * H)) ** 0.5),
        whh_f=nrm(ks[6], (H, 3 * H), (1.0 / H) ** 0.5),
        wih_b=nrm(ks[7], (2 * H, 3 * H), (2.0 / (2 * H)) ** 0.5),
        whh_b=nrm(ks[8], (H, 3 * H), (1.0 / H) ** 0.5),
    )
    lin_in = 6 * H + n_features
    linear = dict(w=nrm(ks[9], (lin_in, lin_size), (1.0 / lin_in) ** 0.5),
                  b=jnp.zeros((1, lin_size), jnp.float32))
    out = dict(w=nrm(ks[10], (lin_size, 1), (1.0 / lin_size) ** 0.5),
               b=jnp.zeros((1, 1), jnp.float32))
    return dict(embedding=emb, lstm=lstm, gru=gru, linear=linear, out=out)


if __name__ == "__main__":
    B, T = 2, 8
    hidden_size, lin_size, n_features = 32, 32, 4

    key = jax.random.PRNGKey(0)
    kp, kt, kf = jax.random.split(key, 3)
    params = make_params(kp, hidden_size, lin_size, n_features)
    tokens = jax.random.randint(kt, (B, T), 0, MAX_FEATURES, dtype=jnp.int32)
    feats = jax.random.normal(kf, (B, n_features), jnp.float32)

    fwd = jax.jit(neural_net_forward)
    out = jax.block_until_ready(fwd(params, tokens, feats))
    ref = jax.block_until_ready(reference_forward(params, tokens, feats))

    assert out.shape == (B, 1), out.shape
    assert jnp.allclose(out, ref, atol=1e-2, rtol=1e-2), (out, ref)
    print("KERNEL_OK")
</pallas_src>

<mosaic_0001>
module attributes {stable_mosaic.version = 11 : i64} {
  func.func @fused_net_kernel(%arg0: memref<16x64xf32, #tpu.memory_space<vmem>>, %arg1: memref<64x256xf32, #tpu.memory_space<vmem>>, %arg2: memref<32x256xf32, #tpu.memory_space<vmem>>, %arg3: memref<64x192xf32, #tpu.memory_space<vmem>>, %arg4: memref<32x192xf32, #tpu.memory_space<vmem>>, %arg5: memref<2x4xf32, #tpu.memory_space<vmem>>, %arg6: memref<196x32xf32, #tpu.memory_space<vmem>>, %arg7: memref<1x32xf32, #tpu.memory_space<vmem>>, %arg8: memref<32x1xf32, #tpu.memory_space<vmem>>, %arg9: memref<1x1xf32, #tpu.memory_space<vmem>>, %arg10: memref<2x1xf32, #tpu.memory_space<vmem>>, %arg11: memref<16x256xf32, #tpu.memory_space<vmem>>, %arg12: memref<16x64xf32, #tpu.memory_space<vmem>>, %arg13: memref<16x192xf32, #tpu.memory_space<vmem>>, %arg14: memref<4x32xf32, #tpu.memory_space<vmem>>, %arg15: memref<4x32xf32, #tpu.memory_space<vmem>>, %arg16: memref<4x32xf32, #tpu.memory_space<vmem>>, %arg17: memref<2x64xf32, #tpu.memory_space<vmem>>) attributes {dimension_semantics = [], scalar_prefetch = 0 : i64, scratch_operands = 7 : i64, tpu.core_type = #tpu.core_type<tc>} {
    %c0 = arith.constant 0 : index
    %c0_0 = arith.constant 0 : index
    %0 = vector.load %arg0[%c0, %c0_0] : memref<16x64xf32, #tpu.memory_space<vmem>>, vector<16x64xf32>
    %c0_1 = arith.constant 0 : index
    %c0_2 = arith.constant 0 : index
    %1 = vector.load %arg1[%c0_1, %c0_2] : memref<64x256xf32, #tpu.memory_space<vmem>>, vector<64x256xf32>
    %cst = arith.constant dense<0.000000e+00> : vector<16x256xf32>
    %2 = tpu.matmul %0, %1, %cst {dimension_numbers = #tpu.dot_dimension_numbers<[1], [0], [0], [1], [0, 0, 1, 1], [], []>} : vector<16x64xf32>, vector<64x256xf32>, vector<16x256xf32> -> vector<16x256xf32>
    %c0_3 = arith.constant 0 : index
    %c0_4 = arith.constant 0 : index
    %3 = vector.load %arg11[%c0_3, %c0_4] : memref<16x256xf32, #tpu.memory_space<vmem>>, vector<16x256xf32>
    tpu.vector_store %arg11[%c0_3, %c0_4], %2 {strides = array<i32>} : memref<16x256xf32, #tpu.memory_space<vmem>>, vector<16x256xf32>,
    %cst_5 = arith.constant 0.000000e+00 : f32
    %4 = vector.broadcast %cst_5 : f32 to vector<4x32xf32>
    %c0_6 = arith.constant 0 : index
    %c0_7 = arith.constant 0 : index
    %5 = vector.load %arg14[%c0_6, %c0_7] : memref<4x32xf32, #tpu.memory_space<vmem>>, vector<4x32xf32>
    tpu.vector_store %arg14[%c0_6, %c0_7], %4 {strides = array<i32>} : memref<4x32xf32, #tpu.memory_space<vmem>>, vector<4x32xf32>,
    %cst_8 = arith.constant 0.000000e+00 : f32
    %6 = vector.broadcast %cst_8 : f32 to vector<4x32xf32>
    %c0_9 = arith.constant 0 : index
    %c0_10 = arith.constant 0 : index
    %7 = vector.load %arg15[%c0_9, %c0_10] : memref<4x32xf32, #tpu.memory_space<vmem>>, vector<4x32xf32>
    tpu.vector_store %arg15[%c0_9, %c0_10], %6 {strides = array<i32>} : memref<4x32xf32, #tpu.memory_space<vmem>>, vector<4x32xf32>,
    %c0_11 = arith.constant 0 : index
    %c0_12 = arith.constant 0 : index
    %8 = vector.load %arg2[%c0_11, %c0_12] : memref<32x256xf32, #tpu.memory_space<vmem>>, vector<32x256xf32>
    %c0_13 = arith.constant 0 : index
    %c0_14 = arith.constant 0 : index
    %9 = vector.load %arg14[%c0_13, %c0_14] : memref<4x32xf32, #tpu.memory_space<vmem>>, vector<4x32xf32>
    %c0_15 = arith.constant 0 : index
    %c0_16 = arith.constant 0 : index
    %10 = vector.load %arg15[%c0_15, %c0_16] : memref<4x32xf32, #tpu.memory_space<vmem>>, vector<4x32xf32>
    %cst_17 = arith.constant dense<0.000000e+00> : vector<4x256xf32>
    %11 = tpu.matmul %9, %8, %cst_17 {dimension_numbers = #tpu.dot_dimension_numbers<[1], [0], [0], [1], [0, 0, 1, 1], [], []>} : vector<4x32xf32>, vector<32x256xf32>, vector<4x256xf32> -> vector<4x256xf32>
    %c0_18 = arith.constant 0 : index
    %c0_19 = arith.constant 0 : index
    %12 = vector.load %arg11[%c0_18, %c0_19] : memref<16x256xf32, #tpu.memory_space<vmem>>, vector<2x128xf32>
    %13 = vector.extract_strided_slice %11 {offsets = [0, 0], sizes = [2, 128], strides = [1, 1]} : vector<4x256xf32> to vector<2x128xf32>
    %14 = arith.addf %12, %13 : vector<2x128xf32>
    %c14 = arith.constant 14 : index
    %c128 = arith.constant 128 : index
    %15 = vector.load %arg11[%c14, %c128] : memref<16x256xf32, #tpu.memory_space<vmem>>, vector<2x128xf32>
    %16 = vector.extract_strided_slice %11 {offsets = [2, 128], sizes = [2, 128], strides = [1, 1]} : vector<4x256xf32> to vector<2x128xf32>
    %17 = arith.addf %15, %16 : vector<2x128xf32>
    %18 = vector.extract_strided_slice %10 {offsets = [0, 0], sizes = [2, 32], strides = [1, 1]} : vector<4x32xf32> to vector<2x32xf32>
    %19 = vector.extract_strided_slice %14 {offsets = [0, 0], sizes = [2, 32], strides = [1, 1]} : vector<2x128xf32> to vector<2x32xf32>
    %20 = arith.negf %19 : vector<2x32xf32>
    %21 = math.exp %20 : vector<2x32xf32>
    %cst_20 = arith.constant 1.000000e+00 : f32
    %22 = vector.broadcast %cst_20 : f32 to vector<2x32xf32>
    %23 = arith.addf %22, %21 : vector<2x32xf32>
    %24 = arith.divf %22, %23 : vector<2x32xf32>
    %25 = vector.extract_strided_slice %14 {offsets = [0, 32], sizes = [2, 32], strides = [1, 1]} : vector<2x128xf32> to vector<2x32xf32>
    %26 = arith.negf %25 : vector<2x32xf32>
    %27 = math.exp %26 : vector<2x32xf32>
    %cst_21 = arith.constant 1.000000e+00 : f32
    %28 = vector.broadcast %cst_21 : f32 to vector<2x32xf32>
    %29 = arith.addf %28, %27 : vector<2x32xf32>
    %30 = arith.divf %28, %29 : vector<2x32xf32>
    %31 = vector.extract_strided_slice %14 {offsets = [0, 64], sizes = [2, 32], strides = [1, 1]} : vector<2x128xf32> to vector<2x32xf32>
    %32 = math.tanh %31 : vector<2x32xf32>
    %33 = vector.extract_strided_slice %14 {offsets = [0, 96], sizes = [2, 32], strides = [1, 1]} : vector<2x128xf32> to vector<2x32xf32>
    %34 = arith.negf %33 : vector<2x32xf32>
    %35 = math.exp %34 : vector<2x32xf32>
    %cst_22 = arith.constant 1.000000e+00 : f32
    %36 = vector.broadcast %cst_22 : f32 to vector<2x32xf32>
    %37 = arith.addf %36, %35 : vector<2x32xf32>
    %38 = arith.divf %36, %37 : vector<2x32xf32>
    %39 = arith.mulf %30, %18 : vector<2x32xf32>
    %40 = arith.mulf %24, %32 : vector<2x32xf32>
    %41 = arith.addf %39, %40 : vector<2x32xf32>
    %42 = math.tanh %41 : vector<2x32xf32>
    %43 = arith.mulf %38, %42 : vector<2x32xf32>
    %44 = vector.extract_strided_slice %10 {offsets = [2, 0], sizes = [2, 32], strides = [1, 1]} : vector<4x32xf32> to vector<2x32xf32>
    %45 = vector.extract_strided_slice %17 {offsets = [0, 0], sizes = [2, 32], strides = [1, 1]} : vector<2x128xf32> to vector<2x32xf32>
    %46 = arith.negf %45 : vector<2x32xf32>
    %47 = math.exp %46 : vector<2x32xf32>
    %cst_23 = arith.constant 1.000000e+00 : f32
    %48 = vector.broadcast %cst_23 : f32 to vector<2x32xf32>
    %49 = arith.addf %48, %47 : vector<2x32xf32>
    %50 = arith.divf %48, %49 : vector<2x32xf32>
    %51 = vector.extract_strided_slice %17 {offsets = [0, 32], sizes = [2, 32], strides = [1, 1]} : vector<2x128xf32> to vector<2x32xf32>
    %52 = arith.negf %51 : vector<2x32xf32>
    %53 = math.exp %52 : vector<2x32xf32>
    %cst_24 = arith.constant 1.000000e+00 : f32
    %54 = vector.broadcast %cst_24 : f32 to vector<2x32xf32>
    %55 = arith.addf %54, %53 : vector<2x32xf32>
    %56 = arith.divf %54, %55 : vector<2x32xf32>
    %57 = vector.extract_strided_slice %17 {offsets = [0, 64], sizes = [2, 32], strides = [1, 1]} : vector<2x128xf32> to vector<2x32xf32>
    %58 = math.tanh %57 : vector<2x32xf32>
    %59 = vector.extract_strided_slice %17 {offsets = [0, 96], sizes = [2, 32], strides = [1, 1]} : vector<2x128xf32> to vector<2x32xf32>
    %60 = arith.negf %59 : vector<2x32xf32>
    %61 = math.exp %60 : vector<2x32xf32>
    %cst_25 = arith.constant 1.000000e+00 : f32
    %62 = vector.broadcast %cst_25 : f32 to vector<2x32xf32>
    %63 = arith.addf %62, %61 : vector<2x32xf32>
    %64 = arith.divf %62, %63 : vector<2x32xf32>
    %65 = arith.mulf %56, %44 : vector<2x32xf32>
    %66 = arith.mulf %50, %58 : vector<2x32xf32>
    %67 = arith.addf %65, %66 : vector<2x32xf32>
    %68 = math.tanh %67 : vector<2x32xf32>
    %69 = arith.mulf %64, %68 : vector<2x32xf32>
    %c0_26 = arith.constant 0 : index
    %c0_27 = arith.constant 0 : index
    %70 = vector.load %arg12[%c0_26, %c0_27] : memref<16x64xf32, #tpu.memory_space<vmem>>, vector<2x32xf32>
    tpu.vector_store %arg12[%c0_26, %c0_27], %43 {strides = array<i32>} : memref<16x64xf32, #tpu.memory_space<vmem>>, vector<2x32xf32>,
    %c14_28 = arith.constant 14 : index
    %c32 = arith.constant 32 : index
    %71 = vector.load %arg12[%c14_28, %c32] : memref<16x64xf32, #tpu.memory_space<vmem>>, vector<2x32xf32>
    tpu.vector_store %arg12[%c14_28, %c32], %69 {strides = array<i32>} : memref<16x64xf32, #tpu.memory_space<vmem>>, vector<2x32xf32>,
    %c0_29 = arith.constant 0 : index
    %c0_30 = arith.constant 0 : index
    %72 = vector.load %arg14[%c0_29, %c0_30] : memref<4x32xf32, #tpu.memory_space<vmem>>, vector<2x32xf32>
    tpu.vector_store %arg14[%c0_29, %c0_30], %43 {strides = array<i32>} : memref<4x32xf32, #tpu.memory_space<vmem>>, vector<2x32xf32>,
    %c2 = arith.constant 2 : index
    %c0_31 = arith.constant 0 : index
    %73 = vector.load %arg14[%c2, %c0_31] : memref<4x32xf32, #tpu.memory_space<vmem>>, vector<2x32xf32>
    tpu.vector_store %arg14[%c2, %c0_31], %69 {strides = array<i32>} : memref<4x32xf32, #tpu.memory_space<vmem>>, vector<2x32xf32>,
    %c0_32 = arith.constant 0 : index
    %c0_33 = arith.constant 0 : index
    %74 = vector.load %arg15[%c0_32, %c0_33] : memref<4x32xf32, #tpu.memory_space<vmem>>, vector<2x32xf32>
    tpu.vector_store %arg15[%c0_32, %c0_33], %41 {strides = array<i32>} : memref<4x32xf32, #tpu.memory_space<vmem>>, vector<2x32xf32>,
    %c2_34 = arith.constant 2 : index
    %c0_35 = arith.constant 0 : index
    %75 = vector.load %arg15[%c2_34, %c0_35] : memref<4x32xf32, #tpu.memory_space<vmem>>, vector<2x32xf32>
    tpu.vector_store %arg15[%c2_34, %c0_35], %67 {strides = array<i32>} : memref<4x32xf32, #tpu.memory_space<vmem>>, vector<2x32xf32>,
    %c0_36 = arith.constant 0 : index
    %c0_37 = arith.constant 0 : index
    %76 = vector.load %arg14[%c0_36, %c0_37] : memref<4x32xf32, #tpu.memory_space<vmem>>, vector<4x32xf32>
    %c0_38 = arith.constant 0 : index
    %c0_39 = arith.constant 0 : index
    %77 = vector.load %arg15[%c0_38, %c0_39] : memref<4x32xf32, #tpu.memory_space<vmem>>, vector<4x32xf32>
    %cst_40 = arith.constant dense<0.000000e+00> : vector<4x256xf32>
    %78 = tpu.matmul %76, %8, %cst_40 {dimension_numbers = #tpu.dot_dimension_numbers<[1], [0], [0], [1], [0, 0, 1, 1], [], []>} : vector<4x32xf32>, vector<32x256xf32>, vector<4x256xf32> -> vector<4x256xf32>
    %c2_41 = arith.constant 2 : index
    %c0_42 = arith.constant 0 : index
    %79 = vector.load %arg11[%c2_41, %c0_42] : memref<16x256xf32, #tpu.memory_space<vmem>>, vector<2x128xf32>
    %80 = vector.extract_strided_slice %78 {offsets = [0, 0], sizes = [2, 128], strides = [1, 1]} : vector<4x256xf32> to vector<2x128xf32>
    %81 = arith.addf %79, %80 : vector<2x128xf32>
    %c12 = arith.constant 12 : index
    %c128_43 = arith.constant 128 : index
    %82 = vector.load %arg11[%c12, %c128_43] : memref<16x256xf32, #tpu.memory_space<vmem>>, vector<2x128xf32>
    %83 = vector.extract_strided_slice %78 {offsets = [2, 128], sizes = [2, 128], strides = [1, 1]} : vector<4x256xf32> to vector<2x128xf32>
    %84 = arith.addf %82, %83 : vector<2x128xf32>
    %85 = vector.extract_strided_slice %77 {offsets = [0, 0], sizes = [2, 32], strides = [1, 1]} : vector<4x32xf32> to vector<2x32xf32>
    %86 = vector.extract_strided_slice %81 {offsets = [0, 0], sizes = [2, 32], strides = [1, 1]} : vector<2x128xf32> to vector<2x32xf32>
    %87 = arith.negf %86 : vector<2x32xf32>
    %88 = math.exp %87 : vector<2x32xf32>
    %cst_44 = arith.constant 1.000000e+00 : f32
    %89 = vector.broadcast %cst_44 : f32 to vector<2x32xf32>
    %90 = arith.addf %89, %88 : vector<2x32xf32>
    %91 = arith.divf %89, %90 : vector<2x32xf32>
    %92 = vector.extract_strided_slice %81 {offsets = [0, 32], sizes = [2, 32], strides = [1, 1]} : vector<2x128xf32> to vector<2x32xf32>
    %93 = arith.negf %92 : vector<2x32xf32>
    %94 = math.exp %93 : vector<2x32xf32>
    %cst_45 = arith.constant 1.000000e+00 : f32
    %95 = vector.broadcast %cst_45 : f32 to vector<2x32xf32>
    %96 = arith.addf %95, %94 : vector<2x32xf32>
    %97 = arith.divf %95, %96 : vector<2x32xf32>
    %98 = vector.extract_strided_slice %81 {offsets = [0, 64], sizes = [2, 32], strides = [1, 1]} : vector<2x128xf32> to vector<2x32xf32>
    %99 = math.tanh %98 : vector<2x32xf32>
    %100 = vector.extract_strided_slice %81 {offsets = [0, 96], sizes = [2, 32], strides = [1, 1]} : vector<2x128xf32> to vector<2x32xf32>
    %101 = arith.negf %100 : vector<2x32xf32>
    %102 = math.exp %101 : vector<2x32xf32>
    %cst_46 = arith.constant 1.000000e+00 : f32
    %103 = vector.broadcast %cst_46 : f32 to vector<2x32xf32>
    %104 = arith.addf %103, %102 : vector<2x32xf32>
    %105 = arith.divf %103, %104 : vector<2x32xf32>
    %106 = arith.mulf %97, %85 : vector<2x32xf32>
    %107 = arith.mulf %91, %99 : vector<2x32xf32>
    %108 = arith.addf %106, %107 : vector<2x32xf32>
    %109 = math.tanh %108 : vector<2x32xf32>
    %110 = arith.mulf %105, %109 : vector<2x32xf32>
    %111 = vector.extract_strided_slice %77 {offsets = [2, 0], sizes = [2, 32], strides = [1, 1]} : vector<4x32xf32> to vector<2x32xf32>
    %112 = vector.extract_strided_slice %84 {offsets = [0, 0], sizes = [2, 32], strides = [1, 1]} : vector<2x128xf32> to vector<2x32xf32>
    %113 = arith.negf %112 : vector<2x32xf32>
    %114 = math.exp %113 : vector<2x32xf32>
    %cst_47 = arith.constant 1.000000e+00 : f32
    %115 = vector.broadcast %cst_47 : f32 to vector<2x32xf32>
    %116 = arith.addf %115, %114 : vector<2x32xf32>
    %117 = arith.divf %115, %116 : vector<2x32xf32>
    %118 = vector.extract_strided_slice %84 {offsets = [0, 32], sizes = [2, 32], strides = [1, 1]} : vector<2x128xf32> to vector<2x32xf32>
    %119 = arith.negf %118 : vector<2x32xf32>
    %120 = math.exp %119 : vector<2x32xf32>
    %cst_48 = arith.constant 1.000000e+00 : f32
    %121 = vector.broadcast %cst_48 : f32 to vector<2x32xf32>
    %122 = arith.addf %121, %120 : vector<2x32xf32>
    %123 = arith.divf %121, %122 : vector<2x32xf32>
    %124 = vector.extract_strided_slice %84 {offsets = [0, 64], sizes = [2, 32], strides = [1, 1]} : vector<2x128xf32> to vector<2x32xf32>
    %125 = math.tanh %124 : vector<2x32xf32>
    %126 = vector.extract_strided_slice %84 {offsets = [0, 96], sizes = [2, 32], strides = [1, 1]} : vector<2x128xf32> to vector<2x32xf32>
    %127 = arith.negf %126 : vector<2x32xf32>
    %128 = math.exp %127 : vector<2x32xf32>
    %cst_49 = arith.constant 1.000000e+00 : f32
    %129 = vector.broadcast %cst_49 : f32 to vector<2x32xf32>
    %130 = arith.addf %129, %128 : vector<2x32xf32>
    %131 = arith.divf %129, %130 : vector<2x32xf32>
    %132 = arith.mulf %123, %111 : vector<2x32xf32>
    %133 = arith.mulf %117, %125 : vector<2x32xf32>
    %134 = arith.addf %132, %133 : vector<2x32xf32>
    %135 = math.tanh %134 : vector<2x32xf32>
    %136 = arith.mulf %131, %135 : vector<2x32xf32>
    %c2_50 = arith.constant 2 : index
    %c0_51 = arith.constant 0 : index
    %137 = vector.load %arg12[%c2_50, %c0_51] : memref<16x64xf32, #tpu.memory_space<vmem>>, vector<2x32xf32>
    tpu.vector_store %arg12[%c2_50, %c0_51], %110 {strides = array<i32>} : memref<16x64xf32, #tpu.memory_space<vmem>>, vector<2x32xf32>,
    %c12_52 = arith.constant 12 : index
    %c32_53 = arith.constant 32 : index
    %138 = vector.load %arg12[%c12_52, %c32_53] : memref<16x64xf32, #tpu.memory_space<vmem>>, vector<2x32xf32>
    tpu.vector_store %arg12[%c12_52, %c32_53], %136 {strides = array<i32>} : memref<16x64xf32, #tpu.memory_space<vmem>>, vector<2x32xf32>,
    %c0_54 = arith.constant 0 : index
    %c0_55 = arith.constant 0 : index
    %139 = vector.load %arg14[%c0_54, %c0_55] : memref<4x32xf32, #tpu.memory_space<vmem>>, vector<2x32xf32>
    tpu.vector_store %arg14[%c0_54, %c0_55], %110 {strides = array<i32>} : memref<4x32xf32, #tpu.memory_space<vmem>>, vector<2x32xf32>,
    %c2_56 = arith.constant 2 : index
    %c0_57 = arith.constant 0 : index
    %140 = vector.load %arg14[%c2_56, %c0_57] : memref<4x32xf32, #tpu.memory_space<vmem>>, vector<2x32xf32>
    tpu.vector_store %arg14[%c2_56, %c0_57], %136 {strides = array<i32>} : memref<4x32xf32, #tpu.memory_space<vmem>>, vector<2x32xf32>,
    %c0_58 = arith.constant 0 : index
    %c0_59 = arith.constant 0 : index
    %141 = vector.load %arg15[%c0_58, %c0_59] : memref<4x32xf32, #tpu.memory_space<vmem>>, vector<2x32xf32>
    tpu.vector_store %arg15[%c0_58, %c0_59], %108 {strides = array<i32>} : memref<4x32xf32, #tpu.memory_space<vmem>>, vector<2x32xf32>,
    %c2_60 = arith.constant 2 : index
    %c0_61 = arith.constant 0 : index
    %142 = vector.load %arg15[%c2_60, %c0_61] : memref<4x32xf32, #tpu.memory_space<vmem>>, vector<2x32xf32>
    tpu.vector_store %arg15[%c2_60, %c0_61], %134 {strides = array<i32>} : memref<4x32xf32, #tpu.memory_space<vmem>>, vector<2x32xf32>,
    %c0_62 = arith.constant 0 : index
    %c0_63 = arith.constant 0 : index
    %143 = vector.load %arg14[%c0_62, %c0_63] : memref<4x32xf32, #tpu.memory_space<vmem>>, vector<4x32xf32>
    %c0_64 = arith.constant 0 : index
    %c0_65 = arith.constant 0 : index
    %144 = vector.load %arg15[%c0_64, %c0_65] : memref<4x32xf32, #tpu.memory_space<vmem>>, vector<4x32xf32>
    %cst_66 = arith.constant dense<0.000000e+00> : vector<4x256xf32>
    %145 = tpu.matmul %143, %8, %cst_66 {dimension_numbers = #tpu.dot_dimension_numbers<[1], [0], [0], [1], [0, 0, 1, 1], [], []>} : vector<4x32xf32>, vector<32x256xf32>, vector<4x256xf32> -> vector<4x256xf32>
    %c4 = arith.constant 4 : index
    %c0_67 = arith.constant 0 : index
    %146 = vector.load %arg11[%c4, %c0_67] : memref<16x256xf32, #tpu.memory_space<vmem>>, vector<2x128xf32>
    %147 = vector.extract_strided_slice %145 {offsets = [0, 0], sizes = [2, 128], strides = [1, 1]} : vector<4x256xf32> to vector<2x128xf32>
    %148 = arith.addf %146, %147 : vector<2x128xf32>
    %c10 = arith.constant 10 : index
    %c128_68 = arith.constant 128 : index
    %149 = vector.load %arg11[%c10, %c128_68] : memref<16x256xf32, #tpu.memory_space<vmem>>, vector<2x128xf32>
    %150 = vector.extract_strided_slice %145 {offsets = [2, 128], sizes = [2, 128], strides = [1, 1]} : vector<4x256xf32> to vector<2x128xf32>
    %151 = arith.addf %149, %150 : vector<2x128xf32>
    %152 = vector.extract_strided_slice %144 {offsets = [0, 0], sizes = [2, 32], strides = [1, 1]} : vector<4x32xf32> to vector<2x32xf32>
    %153 = vector.extract_strided_slice %148 {offsets = [0, 0], sizes = [2, 32], strides = [1, 1]} : vector<2x128xf32> to vector<2x32xf32>
    %154 = arith.negf %153 : vector<2x32xf32>
    %155 = math.exp %154 : vector<2x32xf32>
    %cst_69 = arith.constant 1.000000e+00 : f32
    %156 = vector.broadcast %cst_69 : f32 to vector<2x32xf32>
    %157 = arith.addf %156, %155 : vector<2x32xf32>
    %158 = arith.divf %156, %157 : vector<2x32xf32>
    %159 = vector.extract_strided_slice %148 {offsets = [0, 32], sizes = [2, 32], strides = [1, 1]} : vector<2x128xf32> to vector<2x32xf32>
    %160 = arith.negf %159 : vector<2x32xf32>
    %161 = math.exp %160 : vector<2x32xf32>
    %cst_70 = arith.constant 1.000000e+00 : f32
    %162 = vector.broadcast %cst_70 : f32 to vector<2x32xf32>
    %163 = arith.addf %162, %161 : vector<2x32xf32>
    %164 = arith.divf %162, %163 : vector<2x32xf32>
    %165 = vector.extract_strided_slice %148 {offsets = [0, 64], sizes = [2, 32], strides = [1, 1]} : vector<2x128xf32> to vector<2x32xf32>
    %166 = math.tanh %165 : vector<2x32xf32>
    %167 = vector.extract_strided_slice %148 {offsets = [0, 96], sizes = [2, 32], strides = [1, 1]} : vector<2x128xf32> to vector<2x32xf32>
    %168 = arith.negf %167 : vector<2x32xf32>
    %169 = math.exp %168 : vector<2x32xf32>
    %cst_71 = arith.constant 1.000000e+00 : f32
    %170 = vector.broadcast %cst_71 : f32 to vector<2x32xf32>
    %171 = arith.addf %170, %169 : vector<2x32xf32>
    %172 = arith.divf %170, %171 : vector<2x32xf32>
    %173 = arith.mulf %164, %152 : vector<2x32xf32>
    %174 = arith.mulf %158, %166 : vector<2x32xf32>
    %175 = arith.addf %173, %174 : vector<2x32xf32>
    %176 = math.tanh %175 : vector<2x32xf32>
    %177 = arith.mulf %172, %176 : vector<2x32xf32>
    %178 = vector.extract_strided_slice %144 {offsets = [2, 0], sizes = [2, 32], strides = [1, 1]} : vector<4x32xf32> to vector<2x32xf32>
    %179 = vector.extract_strided_slice %151 {offsets = [0, 0], sizes = [2, 32], strides = [1, 1]} : vector<2x128xf32> to vector<2x32xf32>
    %180 = arith.negf %179 : vector<2x32xf32>
    %181 = math.exp %180 : vector<2x32xf32>
    %cst_72 = arith.constant 1.000000e+00 : f32
    %182 = vector.broadcast %cst_72 : f32 to vector<2x32xf32>
    %183 = arith.addf %182, %181 : vector<2x32xf32>
    %184 = arith.divf %182, %183 : vector<2x32xf32>
    %185 = vector.extract_strided_slice %151 {offsets = [0, 32], sizes = [2, 32], strides = [1, 1]} : vector<2x128xf32> to vector<2x32xf32>
    %186 = arith.negf %185 : vector<2x32xf32>
    %187 = math.exp %186 : vector<2x32xf32>
    %cst_73 = arith.constant 1.000000e+00 : f32
    %188 = vector.broadcast %cst_73 : f32 to vector<2x32xf32>
    %189 = arith.addf %188, %187 : vector<2x32xf32>
    %190 = arith.divf %188, %189 : vector<2x32xf32>
    %191 = vector.extract_strided_slice %151 {offsets = [0, 64], sizes = [2, 32], strides = [1, 1]} : vector<2x128xf32> to vector<2x32xf32>
    %192 = math.tanh %191 : vector<2x32xf32>
    %193 = vector.extract_strided_slice %151 {offsets = [0, 96], sizes = [2, 32], strides = [1, 1]} : vector<2x128xf32> to vector<2x32xf32>
    %194 = arith.negf %193 : vector<2x32xf32>
    %195 = math.exp %194 : vector<2x32xf32>
    %cst_74 = arith.constant 1.000000e+00 : f32
    %196 = vector.broadcast %cst_74 : f32 to vector<2x32xf32>
    %197 = arith.addf %196, %195 : vector<2x32xf32>
    %198 = arith.divf %196, %197 : vector<2x32xf32>
    %199 = arith.mulf %190, %178 : vector<2x32xf32>
    %200 = arith.mulf %184, %192 : vector<2x32xf32>
    %201 = arith.addf %199, %200 : vector<2x32xf32>
    %202 = math.tanh %201 : vector<2x32xf32>
    %203 = arith.mulf %198, %202 : vector<2x32xf32>
    %c4_75 = arith.constant 4 : index
    %c0_76 = arith.constant 0 : index
    %204 = vector.load %arg12[%c4_75, %c0_76] : memref<16x64xf32, #tpu.memory_space<vmem>>, vector<2x32xf32>
    tpu.vector_store %arg12[%c4_75, %c0_76], %177 {strides = array<i32>} : memref<16x64xf32, #tpu.memory_space<vmem>>, vector<2x32xf32>,
    %c10_77 = arith.constant 10 : index
    %c32_78 = arith.constant 32 : index
    %205 = vector.load %arg12[%c10_77, %c32_78] : memref<16x64xf32, #tpu.memory_space<vmem>>, vector<2x32xf32>
    tpu.vector_store %arg12[%c10_77, %c32_78], %203 {strides = array<i32>} : memref<16x64xf32, #tpu.memory_space<vmem>>, vector<2x32xf32>,
    %c0_79 = arith.constant 0 : index
    %c0_80 = arith.constant 0 : index
    %206 = vector.load %arg14[%c0_79, %c0_80] : memref<4x32xf32, #tpu.memory_space<vmem>>, vector<2x32xf32>
    tpu.vector_store %arg14[%c0_79, %c0_80], %177 {strides = array<i32>} : memref<4x32xf32, #tpu.memory_space<vmem>>, vector<2x32xf32>,
    %c2_81 = arith.constant 2 : index
    %c0_82 = arith.constant 0 : index
    %207 = vector.load %arg14[%c2_81, %c0_82] : memref<4x32xf32, #tpu.memory_space<vmem>>, vector<2x32xf32>
    tpu.vector_store %arg14[%c2_81, %c0_82], %203 {strides = array<i32>} : memref<4x32xf32, #tpu.memory_space<vmem>>, vector<2x32xf32>,
    %c0_83 = arith.constant 0 : index
    %c0_84 = arith.constant 0 : index
    %208 = vector.load %arg15[%c0_83, %c0_84] : memref<4x32xf32, #tpu.memory_space<vmem>>, vector<2x32xf32>
    tpu.vector_store %arg15[%c0_83, %c0_84], %175 {strides = array<i32>} : memref<4x32xf32, #tpu.memory_space<vmem>>, vector<2x32xf32>,
    %c2_85 = arith.constant 2 : index
    %c0_86 = arith.constant 0 : index
    %209 = vector.load %arg15[%c2_85, %c0_86] : memref<4x32xf32, #tpu.memory_space<vmem>>, vector<2x32xf32>
    tpu.vector_store %arg15[%c2_85, %c0_86], %201 {strides = array<i32>} : memref<4x32xf32, #tpu.memory_space<vmem>>, vector<2x32xf32>,
    %c0_87 = arith.constant 0 : index
    %c0_88 = arith.constant 0 : index
    %210 = vector.load %arg14[%c0_87, %c0_88] : memref<4x32xf32, #tpu.memory_space<vmem>>, vector<4x32xf32>
    %c0_89 = arith.constant 0 : index
    %c0_90 = arith.constant 0 : index
    %211 = vector.load %arg15[%c0_89, %c0_90] : memref<4x32xf32, #tpu.memory_space<vmem>>, vector<4x32xf32>
    %cst_91 = arith.constant dense<0.000000e+00> : vector<4x256xf32>
    %212 = tpu.matmul %210, %8, %cst_91 {dimension_numbers = #tpu.dot_dimension_numbers<[1], [0], [0], [1], [0, 0, 1, 1], [], []>} : vector<4x32xf32>, vector<32x256xf32>, vector<4x256xf32> -> vector<4x256xf32>
    %c6 = arith.constant 6 : index
    %c0_92 = arith.constant 0 : index
    %213 = vector.load %arg11[%c6, %c0_92] : memref<16x256xf32, #tpu.memory_space<vmem>>, vector<2x128xf32>
    %214 = vector.extract_strided_slice %212 {offsets = [0, 0], sizes = [2, 128], strides = [1, 1]} : vector<4x256xf32> to vector<2x128xf32>
    %215 = arith.addf %213, %214 : vector<2x128xf32>
    %c8 = arith.constant 8 : index
    %c128_93 = arith.constant 128 : index
    %216 = vector.load %arg11[%c8, %c128_93] : memref<16x256xf32, #tpu.memory_space<vmem>>, vector<2x128xf32>
    %217 = vector.extract_strided_slice %212 {offsets = [2, 128], sizes = [2, 128], strides = [1, 1]} : vector<4x256xf32> to vector<2x128xf32>
    %218 = arith.addf %216, %217 : vector<2x128xf32>
    %219 = vector.extract_strided_slice %211 {offsets = [0, 0], sizes = [2, 32], strides = [1, 1]} : vector<4x32xf32> to vector<2x32xf32>
    %220 = vector.extract_strided_slice %215 {offsets = [0, 0], sizes = [2, 32], strides = [1, 1]} : vector<2x128xf32> to vector<2x32xf32>
    %221 = arith.negf %220 : vector<2x32xf32>
    %222 = math.exp %221 : vector<2x32xf32>
    %cst_94 = arith.constant 1.000000e+00 : f32
    %223 = vector.broadcast %cst_94 : f32 to vector<2x32xf32>
    %224 = arith.addf %223, %222 : vector<2x32xf32>
    %225 = arith.divf %223, %224 : vector<2x32xf32>
    %226 = vector.extract_strided_slice %215 {offsets = [0, 32], sizes = [2, 32], strides = [1, 1]} : vector<2x128xf32> to vector<2x32xf32>
    %227 = arith.negf %226 : vector<2x32xf32>
    %228 = math.exp %227 : vector<2x32xf32>
    %cst_95 = arith.constant 1.000000e+00 : f32
    %229 = vector.broadcast %cst_95 : f32 to vector<2x32xf32>
    %230 = arith.addf %229, %228 : vector<2x32xf32>
    %231 = arith.divf %229, %230 : vector<2x32xf32>
    %232 = vector.extract_strided_slice %215 {offsets = [0, 64], sizes = [2, 32], strides = [1, 1]} : vector<2x128xf32> to vector<2x32xf32>
    %233 = math.tanh %232 : vector<2x32xf32>
    %234 = vector.extract_strided_slice %215 {offsets = [0, 96], sizes = [2, 32], strides = [1, 1]} : vector<2x128xf32> to vector<2x32xf32>
    %235 = arith.negf %234 : vector<2x32xf32>
    %236 = math.exp %235 : vector<2x32xf32>
    %cst_96 = arith.constant 1.000000e+00 : f32
    %237 = vector.broadcast %cst_96 : f32 to vector<2x32xf32>
    %238 = arith.addf %237, %236 : vector<2x32xf32>
    %239 = arith.divf %237, %238 : vector<2x32xf32>
    %240 = arith.mulf %231, %219 : vector<2x32xf32>
    %241 = arith.mulf %225, %233 : vector<2x32xf32>
    %242 = arith.addf %240, %241 : vector<2x32xf32>
    %243 = math.tanh %242 : vector<2x32xf32>
    %244 = arith.mulf %239, %243 : vector<2x32xf32>
    %245 = vector.extract_strided_slice %211 {offsets = [2, 0], sizes = [2, 32], strides = [1, 1]} : vector<4x32xf32> to vector<2x32xf32>
    %246 = vector.extract_strided_slice %218 {offsets = [0, 0], sizes = [2, 32], strides = [1, 1]} : vector<2x128xf32> to vector<2x32xf32>
    %247 = arith.negf %246 : vector<2x32xf32>
    %248 = math.exp %247 : vector<2x32xf32>
    %cst_97 = arith.constant 1.000000e+00 : f32
    %249 = vector.broadcast %cst_97 : f32 to vector<2x32xf32>
    %250 = arith.addf %249, %248 : vector<2x32xf32>
    %251 = arith.divf %249, %250 : vector<2x32xf32>
    %252 = vector.extract_strided_slice %218 {offsets = [0, 32], sizes = [2, 32], strides = [1, 1]} : vector<2x128xf32> to vector<2x32xf32>
    %253 = arith.negf %252 : vector<2x32xf32>
    %254 = math.exp %253 : vector<2x32xf32>
    %cst_98 = arith.constant 1.000000e+00 : f32
    %255 = vector.broadcast %cst_98 : f32 to vector<2x32xf32>
    %256 = arith.addf %255, %254 : vector<2x32xf32>
    %257 = arith.divf %255, %256 : vector<2x32xf32>
    %258 = vector.extract_strided_slice %218 {offsets = [0, 64], sizes = [2, 32], strides = [1, 1]} : vector<2x128xf32> to vector<2x32xf32>
    %259 = math.tanh %258 : vector<2x32xf32>
    %260 = vector.extract_strided_slice %218 {offsets = [0, 96], sizes = [2, 32], strides = [1, 1]} : vector<2x128xf32> to vector<2x32xf32>
    %261 = arith.negf %260 : vector<2x32xf32>
    %262 = math.exp %261 : vector<2x32xf32>
    %cst_99 = arith.constant 1.000000e+00 : f32
    %263 = vector.broadcast %cst_99 : f32 to vector<2x32xf32>
    %264 = arith.addf %263, %262 : vector<2x32xf32>
    %265 = arith.divf %263, %264 : vector<2x32xf32>
    %266 = arith.mulf %257, %245 : vector<2x32xf32>
    %267 = arith.mulf %251, %259 : vector<2x32xf32>
    %268 = arith.addf %266, %267 : vector<2x32xf32>
    %269 = math.tanh %268 : vector<2x32xf32>
    %270 = arith.mulf %265, %269 : vector<2x32xf32>
    %c6_100 = arith.constant 6 : index
    %c0_101 = arith.constant 0 : index
    %271 = vector.load %arg12[%c6_100, %c0_101] : memref<16x64xf32, #tpu.memory_space<vmem>>, vector<2x32xf32>
    tpu.vector_store %arg12[%c6_100, %c0_101], %244 {strides = array<i32>} : memref<16x64xf32, #tpu.memory_space<vmem>>, vector<2x32xf32>,
    %c8_102 = arith.constant 8 : index
    %c32_103 = arith.constant 32 : index
    %272 = vector.load %arg12[%c8_102, %c32_103] : memref<16x64xf32, #tpu.memory_space<vmem>>, vector<2x32xf32>
    tpu.vector_store %arg12[%c8_102, %c32_103], %270 {strides = array<i32>} : memref<16x64xf32, #tpu.memory_space<vmem>>, vector<2x32xf32>,
    %c0_104 = arith.constant 0 : index
    %c0_105 = arith.constant 0 : index
    %273 = vector.load %arg14[%c0_104, %c0_105] : memref<4x32xf32, #tpu.memory_space<vmem>>, vector<2x32xf32>
    tpu.vector_store %arg14[%c0_104, %c0_105], %244 {strides = array<i32>} : memref<4x32xf32, #tpu.memory_space<vmem>>, vector<2x32xf32>,
    %c2_106 = arith.constant 2 : index
    %c0_107 = arith.constant 0 : index
    %274 = vector.load %arg14[%c2_106, %c0_107] : memref<4x32xf32, #tpu.memory_space<vmem>>, vector<2x32xf32>
    tpu.vector_store %arg14[%c2_106, %c0_107], %270 {strides = array<i32>} : memref<4x32xf32, #tpu.memory_space<vmem>>, vector<2x32xf32>,
    %c0_108 = arith.constant 0 : index
    %c0_109 = arith.constant 0 : index
    %275 = vector.load %arg15[%c0_108, %c0_109] : memref<4x32xf32, #tpu.memory_space<vmem>>, vector<2x32xf32>
    tpu.vector_store %arg15[%c0_108, %c0_109], %242 {strides = array<i32>} : memref<4x32xf32, #tpu.memory_space<vmem>>, vector<2x32xf32>,
    %c2_110 = arith.constant 2 : index
    %c0_111 = arith.constant 0 : index
    %276 = vector.load %arg15[%c2_110, %c0_111] : memref<4x32xf32, #tpu.memory_space<vmem>>, vector<2x32xf32>
    tpu.vector_store %arg15[%c2_110, %c0_111], %268 {strides = array<i32>} : memref<4x32xf32, #tpu.memory_space<vmem>>, vector<2x32xf32>,
    %c0_112 = arith.constant 0 : index
    %c0_113 = arith.constant 0 : index
    %277 = vector.load %arg14[%c0_112, %c0_113] : memref<4x32xf32, #tpu.memory_space<vmem>>, vector<4x32xf32>
    %c0_114 = arith.constant 0 : index
    %c0_115 = arith.constant 0 : index
    %278 = vector.load %arg15[%c0_114, %c0_115] : memref<4x32xf32, #tpu.memory_space<vmem>>, vector<4x32xf32>
    %cst_116 = arith.constant dense<0.000000e+00> : vector<4x256xf32>
    %279 = tpu.matmul %277, %8, %cst_116 {dimension_numbers = #tpu.dot_dimension_numbers<[1], [0], [0], [1], [0, 0, 1, 1], [], []>} : vector<4x32xf32>, vector<32x256xf32>, vector<4x256xf32> -> vector<4x256xf32>
    %c8_117 = arith.constant 8 : index
    %c0_118 = arith.constant 0 : index
    %280 = vector.load %arg11[%c8_117, %c0_118] : memref<16x256xf32, #tpu.memory_space<vmem>>, vector<2x128xf32>
    %281 = vector.extract_strided_slice %279 {offsets = [0, 0], sizes = [2, 128], strides = [1, 1]} : vector<4x256xf32> to vector<2x128xf32>
    %282 = arith.addf %280, %281 : vector<2x128xf32>
    %c6_119 = arith.constant 6 : index
    %c128_120 = arith.constant 128 : index
    %283 = vector.load %arg11[%c6_119, %c128_120] : memref<16x256xf32, #tpu.memory_space<vmem>>, vector<2x128xf32>
    %284 = vector.extract_strided_slice %279 {offsets = [2, 128], sizes = [2, 128], strides = [1, 1]} : vector<4x256xf32> to vector<2x128xf32>
    %285 = arith.addf %283, %284 : vector<2x128xf32>
    %286 = vector.extract_strided_slice %278 {offsets = [0, 0], sizes = [2, 32], strides = [1, 1]} : vector<4x32xf32> to vector<2x32xf32>
    %287 = vector.extract_strided_slice %282 {offsets = [0, 0], sizes = [2, 32], strides = [1, 1]} : vector<2x128xf32> to vector<2x32xf32>
    %288 = arith.negf %287 : vector<2x32xf32>
    %289 = math.exp %288 : vector<2x32xf32>
    %cst_121 = arith.constant 1.000000e+00 : f32
    %290 = vector.broadcast %cst_121 : f32 to vector<2x32xf32>
    %291 = arith.addf %290, %289 : vector<2x32xf32>
    %292 = arith.divf %290, %291 : vector<2x32xf32>
    %293 = vector.extract_strided_slice %282 {offsets = [0, 32], sizes = [2, 32], strides = [1, 1]} : vector<2x128xf32> to vector<2x32xf32>
    %294 = arith.negf %293 : vector<2x32xf32>
    %295 = math.exp %294 : vector<2x32xf32>
    %cst_122 = arith.constant 1.000000e+00 : f32
    %296 = vector.broadcast %cst_122 : f32 to vector<2x32xf32>
    %297 = arith.addf %296, %295 : vector<2x32xf32>
    %298 = arith.divf %296, %297 : vector<2x32xf32>
    %299 = vector.extract_strided_slice %282 {offsets = [0, 64], sizes = [2, 32], strides = [1, 1]} : vector<2x128xf32> to vector<2x32xf32>
    %300 = math.tanh %299 : vector<2x32xf32>
    %301 = vector.extract_strided_slice %282 {offsets = [0, 96], sizes = [2, 32], strides = [1, 1]} : vector<2x128xf32> to vector<2x32xf32>
    %302 = arith.negf %301 : vector<2x32xf32>
    %303 = math.exp %302 : vector<2x32xf32>
    %cst_123 = arith.constant 1.000000e+00 : f32
    %304 = vector.broadcast %cst_123 : f32 to vector<2x32xf32>
    %305 = arith.addf %304, %303 : vector<2x32xf32>
    %306 = arith.divf %304, %305 : vector<2x32xf32>
    %307 = arith.mulf %298, %286 : vector<2x32xf32>
    %308 = arith.mulf %292, %300 : vector<2x32xf32>
    %309 = arith.addf %307, %308 : vector<2x32xf32>
    %310 = math.tanh %309 : vector<2x32xf32>
    %311 = arith.mulf %306, %310 : vector<2x32xf32>
    %312 = vector.extract_strided_slice %278 {offsets = [2, 0], sizes = [2, 32], strides = [1, 1]} : vector<4x32xf32> to vector<2x32xf32>
    %313 = vector.extract_strided_slice %285 {offsets = [0, 0], sizes = [2, 32], strides = [1, 1]} : vector<2x128xf32> to vector<2x32xf32>
    %314 = arith.negf %313 : vector<2x32xf32>
    %315 = math.exp %314 : vector<2x32xf32>
    %cst_124 = arith.constant 1.000000e+00 : f32
    %316 = vector.broadcast %cst_124 : f32 to vector<2x32xf32>
    %317 = arith.addf %316, %315 : vector<2x32xf32>
    %318 = arith.divf %316, %317 : vector<2x32xf32>
    %319 = vector.extract_strided_slice %285 {offsets = [0, 32], sizes = [2, 32], strides = [1, 1]} : vector<2x128xf32> to vector<2x32xf32>
    %320 = arith.negf %319 : vector<2x32xf32>
    %321 = math.exp %320 : vector<2x32xf32>
    %cst_125 = arith.constant 1.000000e+00 : f32
    %322 = vector.broadcast %cst_125 : f32 to vector<2x32xf32>
    %323 = arith.addf %322, %321 : vector<2x32xf32>
    %324 = arith.divf %322, %323 : vector<2x32xf32>
    %325 = vector.extract_strided_slice %285 {offsets = [0, 64], sizes = [2, 32], strides = [1, 1]} : vector<2x128xf32> to vector<2x32xf32>
    %326 = math.tanh %325 : vector<2x32xf32>
    %327 = vector.extract_strided_slice %285 {offsets = [0, 96], sizes = [2, 32], strides = [1, 1]} : vector<2x128xf32> to vector<2x32xf32>
    %328 = arith.negf %327 : vector<2x32xf32>
    %329 = math.exp %328 : vector<2x32xf32>
    %cst_126 = arith.constant 1.000000e+00 : f32
    %330 = vector.broadcast %cst_126 : f32 to vector<2x32xf32>
    %331 = arith.addf %330, %329 : vector<2x32xf32>
    %332 = arith.divf %330, %331 : vector<2x32xf32>
    %333 = arith.mulf %324, %312 : vector<2x32xf32>
    %334 = arith.mulf %318, %326 : vector<2x32xf32>
    %335 = arith.addf %333, %334 : vector<2x32xf32>
    %336 = math.tanh %335 : vector<2x32xf32>
    %337 = arith.mulf %332, %336 : vector<2x32xf32>
    %c8_127 = arith.constant 8 : index
    %c0_128 = arith.constant 0 : index
    %338 = vector.load %arg12[%c8_127, %c0_128] : memref<16x64xf32, #tpu.memory_space<vmem>>, vector<2x32xf32>
    tpu.vector_store %arg12[%c8_127, %c0_128], %311 {strides = array<i32>} : memref<16x64xf32, #tpu.memory_space<vmem>>, vector<2x32xf32>,
    %c6_129 = arith.constant 6 : index
    %c32_130 = arith.constant 32 : index
    %339 = vector.load %arg12[%c6_129, %c32_130] : memref<16x64xf32, #tpu.memory_space<vmem>>, vector<2x32xf32>
    tpu.vector_store %arg12[%c6_129, %c32_130], %337 {strides = array<i32>} : memref<16x64xf32, #tpu.memory_space<vmem>>, vector<2x32xf32>,
    %c0_131 = arith.constant 0 : index
    %c0_132 = arith.constant 0 : index
    %340 = vector.load %arg14[%c0_131, %c0_132] : memref<4x32xf32, #tpu.memory_space<vmem>>, vector<2x32xf32>
    tpu.vector_store %arg14[%c0_131, %c0_132], %311 {strides = array<i32>} : memref<4x32xf32, #tpu.memory_space<vmem>>, vector<2x32xf32>,
    %c2_133 = arith.constant 2 : index
    %c0_134 = arith.constant 0 : index
    %341 = vector.load %arg14[%c2_133, %c0_134] : memref<4x32xf32, #tpu.memory_space<vmem>>, vector<2x32xf32>
    tpu.vector_store %arg14[%c2_133, %c0_134], %337 {strides = array<i32>} : memref<4x32xf32, #tpu.memory_space<vmem>>, vector<2x32xf32>,
    %c0_135 = arith.constant 0 : index
    %c0_136 = arith.constant 0 : index
    %342 = vector.load %arg15[%c0_135, %c0_136] : memref<4x32xf32, #tpu.memory_space<vmem>>, vector<2x32xf32>
    tpu.vector_store %arg15[%c0_135, %c0_136], %309 {strides = array<i32>} : memref<4x32xf32, #tpu.memory_space<vmem>>, vector<2x32xf32>,
    %c2_137 = arith.constant 2 : index
    %c0_138 = arith.constant 0 : index
    %343 = vector.load %arg15[%c2_137, %c0_138] : memref<4x32xf32, #tpu.memory_space<vmem>>, vector<2x32xf32>
    tpu.vector_store %arg15[%c2_137, %c0_138], %335 {strides = array<i32>} : memref<4x32xf32, #tpu.memory_space<vmem>>, vector<2x32xf32>,
    %c0_139 = arith.constant 0 : index
    %c0_140 = arith.constant 0 : index
    %344 = vector.load %arg14[%c0_139, %c0_140] : memref<4x32xf32, #tpu.memory_space<vmem>>, vector<4x32xf32>
    %c0_141 = arith.constant 0 : index
    %c0_142 = arith.constant 0 : index
    %345 = vector.load %arg15[%c0_141, %c0_142] : memref<4x32xf32, #tpu.memory_space<vmem>>, vector<4x32xf32>
    %cst_143 = arith.constant dense<0.000000e+00> : vector<4x256xf32>
    %346 = tpu.matmul %344, %8, %cst_143 {dimension_numbers = #tpu.dot_dimension_numbers<[1], [0], [0], [1], [0, 0, 1, 1], [], []>} : vector<4x32xf32>, vector<32x256xf32>, vector<4x256xf32> -> vector<4x256xf32>
    %c10_144 = arith.constant 10 : index
    %c0_145 = arith.constant 0 : index
    %347 = vector.load %arg11[%c10_144, %c0_145] : memref<16x256xf32, #tpu.memory_space<vmem>>, vector<2x128xf32>
    %348 = vector.extract_strided_slice %346 {offsets = [0, 0], sizes = [2, 128], strides = [1, 1]} : vector<4x256xf32> to vector<2x128xf32>
    %349 = arith.addf %347, %348 : vector<2x128xf32>
    %c4_146 = arith.constant 4 : index
    %c128_147 = arith.constant 128 : index
    %350 = vector.load %arg11[%c4_146, %c128_147] : memref<16x256xf32, #tpu.memory_space<vmem>>, vector<2x128xf32>
    %351 = vector.extract_strided_slice %346 {offsets = [2, 128], sizes = [2, 128], strides = [1, 1]} : vector<4x256xf32> to vector<2x128xf32>
    %352 = arith.addf %350, %351 : vector<2x128xf32>
    %353 = vector.extract_strided_slice %345 {offsets = [0, 0], sizes = [2, 32], strides = [1, 1]} : vector<4x32xf32> to vector<2x32xf32>
    %354 = vector.extract_strided_slice %349 {offsets = [0, 0], sizes = [2, 32], strides = [1, 1]} : vector<2x128xf32> to vector<2x32xf32>
    %355 = arith.negf %354 : vector<2x32xf32>
    %356 = math.exp %355 : vector<2x32xf32>
    %cst_148 = arith.constant 1.000000e+00 : f32
    %357 = vector.broadcast %cst_148 : f32 to vector<2x32xf32>
    %358 = arith.addf %357, %356 : vector<2x32xf32>
    %359 = arith.divf %357, %358 : vector<2x32xf32>
    %360 = vector.extract_strided_slice %349 {offsets = [0, 32], sizes = [2, 32], strides = [1, 1]} : vector<2x128xf32> to vector<2x32xf32>
    %361 = arith.negf %360 : vector<2x32xf32>
    %362 = math.exp %361 : vector<2x32xf32>
    %cst_149 = arith.constant 1.000000e+00 : f32
    %363 = vector.broadcast %cst_149 : f32 to vector<2x32xf32>
    %364 = arith.addf %363, %362 : vector<2x32xf32>
    %365 = arith.divf %363, %364 : vector<2x32xf32>
    %366 = vector.extract_strided_slice %349 {offsets = [0, 64], sizes = [2, 32], strides = [1, 1]} : vector<2x128xf32> to vector<2x32xf32>
    %367 = math.tanh %366 : vector<2x32xf32>
    %368 = vector.extract_strided_slice %349 {offsets = [0, 96], sizes = [2, 32], strides = [1, 1]} : vector<2x128xf32> to vector<2x32xf32>
    %369 = arith.negf %368 : vector<2x32xf32>
    %370 = math.exp %369 : vector<2x32xf32>
    %cst_150 = arith.constant 1.000000e+00 : f32
    %371 = vector.broadcast %cst_150 : f32 to vector<2x32xf32>
    %372 = arith.addf %371, %370 : vector<2x32xf32>
    %373 = arith.divf %371, %372 : vector<2x32xf32>
    %374 = arith.mulf %365, %353 : vector<2x32xf32>
    %375 = arith.mulf %359, %367 : vector<2x32xf32>
    %376 = arith.addf %374, %375 : vector<2x32xf32>
    %377 = math.tanh %376 : vector<2x32xf32>
    %378 = arith.mulf %373, %377 : vector<2x32xf32>
    %379 = vector.extract_strided_slice %345 {offsets = [2, 0], sizes = [2, 32], strides = [1, 1]} : vector<4x32xf32> to vector<2x32xf32>
    %380 = vector.extract_strided_slice %352 {offsets = [0, 0], sizes = [2, 32], strides = [1, 1]} : vector<2x128xf32> to vector<2x32xf32>
    %381 = arith.negf %380 : vector<2x32xf32>
    %382 = math.exp %381 : vector<2x32xf32>
    %cst_151 = arith.constant 1.000000e+00 : f32
    %383 = vector.broadcast %cst_151 : f32 to vector<2x32xf32>
    %384 = arith.addf %383, %382 : vector<2x32xf32>
    %385 = arith.divf %383, %384 : vector<2x32xf32>
    %386 = vector.extract_strided_slice %352 {offsets = [0, 32], sizes = [2, 32], strides = [1, 1]} : vector<2x128xf32> to vector<2x32xf32>
    %387 = arith.negf %386 : vector<2x32xf32>
    %388 = math.exp %387 : vector<2x32xf32>
    %cst_152 = arith.constant 1.000000e+00 : f32
    %389 = vector.broadcast %cst_152 : f32 to vector<2x32xf32>
    %390 = arith.addf %389, %388 : vector<2x32xf32>
    %391 = arith.divf %389, %390 : vector<2x32xf32>
    %392 = vector.extract_strided_slice %352 {offsets = [0, 64], sizes = [2, 32], strides = [1, 1]} : vector<2x128xf32> to vector<2x32xf32>
    %393 = math.tanh %392 : vector<2x32xf32>
    %394 = vector.extract_strided_slice %352 {offsets = [0, 96], sizes = [2, 32], strides = [1, 1]} : vector<2x128xf32> to vector<2x32xf32>
    %395 = arith.negf %394 : vector<2x32xf32>
    %396 = math.exp %395 : vector<2x32xf32>
    %cst_153 = arith.constant 1.000000e+00 : f32
    %397 = vector.broadcast %cst_153 : f32 to vector<2x32xf32>
    %398 = arith.addf %397, %396 : vector<2x32xf32>
    %399 = arith.divf %397, %398 : vector<2x32xf32>
    %400 = arith.mulf %391, %379 : vector<2x32xf32>
    %401 = arith.mulf %385, %393 : vector<2x32xf32>
    %402 = arith.addf %400, %401 : vector<2x32xf32>
    %403 = math.tanh %402 : vector<2x32xf32>
    %404 = arith.mulf %399, %403 : vector<2x32xf32>
    %c10_154 = arith.constant 10 : index
    %c0_155 = arith.constant 0 : index
    %405 = vector.load %arg12[%c10_154, %c0_155] : memref<16x64xf32, #tpu.memory_space<vmem>>, vector<2x32xf32>
    tpu.vector_store %arg12[%c10_154, %c0_155], %378 {strides = array<i32>} : memref<16x64xf32, #tpu.memory_space<vmem>>, vector<2x32xf32>,
    %c4_156 = arith.constant 4 : index
    %c32_157 = arith.constant 32 : index
    %406 = vector.load %arg12[%c4_156, %c32_157] : memref<16x64xf32, #tpu.memory_space<vmem>>, vector<2x32xf32>
    tpu.vector_store %arg12[%c4_156, %c32_157], %404 {strides = array<i32>} : memref<16x64xf32, #tpu.memory_space<vmem>>, vector<2x32xf32>,
    %c0_158 = arith.constant 0 : index
    %c0_159 = arith.constant 0 : index
    %407 = vector.load %arg14[%c0_158, %c0_159] : memref<4x32xf32, #tpu.memory_space<vmem>>, vector<2x32xf32>
    tpu.vector_store %arg14[%c0_158, %c0_159], %378 {strides = array<i32>} : memref<4x32xf32, #tpu.memory_space<vmem>>, vector<2x32xf32>,
    %c2_160 = arith.constant 2 : index
    %c0_161 = arith.constant 0 : index
    %408 = vector.load %arg14[%c2_160, %c0_161] : memref<4x32xf32, #tpu.memory_space<vmem>>, vector<2x32xf32>
    tpu.vector_store %arg14[%c2_160, %c0_161], %404 {strides = array<i32>} : memref<4x32xf32, #tpu.memory_space<vmem>>, vector<2x32xf32>,
    %c0_162 = arith.constant 0 : index
    %c0_163 = arith.constant 0 : index
    %409 = vector.load %arg15[%c0_162, %c0_163] : memref<4x32xf32, #tpu.memory_space<vmem>>, vector<2x32xf32>
    tpu.vector_store %arg15[%c0_162, %c0_163], %376 {strides = array<i32>} : memref<4x32xf32, #tpu.memory_space<vmem>>, vector<2x32xf32>,
    %c2_164 = arith.constant 2 : index
    %c0_165 = arith.constant 0 : index
    %410 = vector.load %arg15[%c2_164, %c0_165] : memref<4x32xf32, #tpu.memory_space<vmem>>, vector<2x32xf32>
    tpu.vector_store %arg15[%c2_164, %c0_165], %402 {strides = array<i32>} : memref<4x32xf32, #tpu.memory_space<vmem>>, vector<2x32xf32>,
    %c0_166 = arith.constant 0 : index
    %c0_167 = arith.constant 0 : index
    %411 = vector.load %arg14[%c0_166, %c0_167] : memref<4x32xf32, #tpu.memory_space<vmem>>, vector<4x32xf32>
    %c0_168 = arith.constant 0 : index
    %c0_169 = arith.constant 0 : index
    %412 = vector.load %arg15[%c0_168, %c0_169] : memref<4x32xf32, #tpu.memory_space<vmem>>, vector<4x32xf32>
    %cst_170 = arith.constant dense<0.000000e+00> : vector<4x256xf32>
    %413 = tpu.matmul %411, %8, %cst_170 {dimension_numbers = #tpu.dot_dimension_numbers<[1], [0], [0], [1], [0, 0, 1, 1], [], []>} : vector<4x32xf32>, vector<32x256xf32>, vector<4x256xf32> -> vector<4x256xf32>
    %c12_171 = arith.constant 12 : index
    %c0_172 = arith.constant 0 : index
    %414 = vector.load %arg11[%c12_171, %c0_172] : memref<16x256xf32, #tpu.memory_space<vmem>>, vector<2x128xf32>
    %415 = vector.extract_strided_slice %413 {offsets = [0, 0], sizes = [2, 128], strides = [1, 1]} : vector<4x256xf32> to vector<2x128xf32>
    %416 = arith.addf %414, %415 : vector<2x128xf32>
    %c2_173 = arith.constant 2 : index
    %c128_174 = arith.constant 128 : index
    %417 = vector.load %arg11[%c2_173, %c128_174] : memref<16x256xf32, #tpu.memory_space<vmem>>, vector<2x128xf32>
    %418 = vector.extract_strided_slice %413 {offsets = [2, 128], sizes = [2, 128], strides = [1, 1]} : vector<4x256xf32> to vector<2x128xf32>
    %419 = arith.addf %417, %418 : vector<2x128xf32>
    %420 = vector.extract_strided_slice %412 {offsets = [0, 0], sizes = [2, 32], strides = [1, 1]} : vector<4x32xf32> to vector<2x32xf32>
    %421 = vector.extract_strided_slice %416 {offsets = [0, 0], sizes = [2, 32], strides = [1, 1]} : vector<2x128xf32> to vector<2x32xf32>
    %422 = arith.negf %421 : vector<2x32xf32>
    %423 = math.exp %422 : vector<2x32xf32>
    %cst_175 = arith.constant 1.000000e+00 : f32
    %424 = vector.broadcast %cst_175 : f32 to vector<2x32xf32>
    %425 = arith.addf %424, %423 : vector<2x32xf32>
    %426 = arith.divf %424, %425 : vector<2x32xf32>
    %427 = vector.extract_strided_slice %416 {offsets = [0, 32], sizes = [2, 32], strides = [1, 1]} : vector<2x128xf32> to vector<2x32xf32>
    %428 = arith.negf %427 : vector<2x32xf32>
    %429 = math.exp %428 : vector<2x32xf32>
    %cst_176 = arith.constant 1.000000e+00 : f32
    %430 = vector.broadcast %cst_176 : f32 to vector<2x32xf32>
    %431 = arith.addf %430, %429 : vector<2x32xf32>
    %432 = arith.divf %430, %431 : vector<2x32xf32>
    %433 = vector.extract_strided_slice %416 {offsets = [0, 64], sizes = [2, 32], strides = [1, 1]} : vector<2x128xf32> to vector<2x32xf32>
    %434 = math.tanh %433 : vector<2x32xf32>
    %435 = vector.extract_strided_slice %416 {offsets = [0, 96], sizes = [2, 32], strides = [1, 1]} : vector<2x128xf32> to vector<2x32xf32>
    %436 = arith.negf %435 : vector<2x32xf32>
    %437 = math.exp %436 : vector<2x32xf32>
    %cst_177 = arith.constant 1.000000e+00 : f32
    %438 = vector.broadcast %cst_177 : f32 to vector<2x32xf32>
    %439 = arith.addf %438, %437 : vector<2x32xf32>
    %440 = arith.divf %438, %439 : vector<2x32xf32>
    %441 = arith.mulf %432, %420 : vector<2x32xf32>
    %442 = arith.mulf %426, %434 : vector<2x32xf32>
    %443 = arith.addf %441, %442 : vector<2x32xf32>
    %444 = math.tanh %443 : vector<2x32xf32>
    %445 = arith.mulf %440, %444 : vector<2x32xf32>
    %446 = vector.extract_strided_slice %412 {offsets = [2, 0], sizes = [2, 32], strides = [1, 1]} : vector<4x32xf32> to vector<2x32xf32>
    %447 = vector.extract_strided_slice %419 {offsets = [0, 0], sizes = [2, 32], strides = [1, 1]} : vector<2x128xf32> to vector<2x32xf32>
    %448 = arith.negf %447 : vector<2x32xf32>
    %449 = math.exp %448 : vector<2x32xf32>
    %cst_178 = arith.constant 1.000000e+00 : f32
    %450 = vector.broadcast %cst_178 : f32 to vector<2x32xf32>
    %451 = arith.addf %450, %449 : vector<2x32xf32>
    %452 = arith.divf %450, %451 : vector<2x32xf32>
    %453 = vector.extract_strided_slice %419 {offsets = [0, 32], sizes = [2, 32], strides = [1, 1]} : vector<2x128xf32> to vector<2x32xf32>
    %454 = arith.negf %453 : vector<2x32xf32>
    %455 = math.exp %454 : vector<2x32xf32>
    %cst_179 = arith.constant 1.000000e+00 : f32
    %456 = vector.broadcast %cst_179 : f32 to vector<2x32xf32>
    %457 = arith.addf %456, %455 : vector<2x32xf32>
    %458 = arith.divf %456, %457 : vector<2x32xf32>
    %459 = vector.extract_strided_slice %419 {offsets = [0, 64], sizes = [2, 32], strides = [1, 1]} : vector<2x128xf32> to vector<2x32xf32>
    %460 = math.tanh %459 : vector<2x32xf32>
    %461 = vector.extract_strided_slice %419 {offsets = [0, 96], sizes = [2, 32], strides = [1, 1]} : vector<2x128xf32> to vector<2x32xf32>
    %462 = arith.negf %461 : vector<2x32xf32>
    %463 = math.exp %462 : vector<2x32xf32>
    %cst_180 = arith.constant 1.000000e+00 : f32
    %464 = vector.broadcast %cst_180 : f32 to vector<2x32xf32>
    %465 = arith.addf %464, %463 : vector<2x32xf32>
    %466 = arith.divf %464, %465 : vector<2x32xf32>
    %467 = arith.mulf %458, %446 : vector<2x32xf32>
    %468 = arith.mulf %452, %460 : vector<2x32xf32>
    %469 = arith.addf %467, %468 : vector<2x32xf32>
    %470 = math.tanh %469 : vector<2x32xf32>
    %471 = arith.mulf %466, %470 : vector<2x32xf32>
    %c12_181 = arith.constant 12 : index
    %c0_182 = arith.constant 0 : index
    %472 = vector.load %arg12[%c12_181, %c0_182] : memref<16x64xf32, #tpu.memory_space<vmem>>, vector<2x32xf32>
    tpu.vector_store %arg12[%c12_181, %c0_182], %445 {strides = array<i32>} : memref<16x64xf32, #tpu.memory_space<vmem>>, vector<2x32xf32>,
    %c2_183 = arith.constant 2 : index
    %c32_184 = arith.constant 32 : index
    %473 = vector.load %arg12[%c2_183, %c32_184] : memref<16x64xf32, #tpu.memory_space<vmem>>, vector<2x32xf32>
    tpu.vector_store %arg12[%c2_183, %c32_184], %471 {strides = array<i32>} : memref<16x64xf32, #tpu.memory_space<vmem>>, vector<2x32xf32>,
    %c0_185 = arith.constant 0 : index
    %c0_186 = arith.constant 0 : index
    %474 = vector.load %arg14[%c0_185, %c0_186] : memref<4x32xf32, #tpu.memory_space<vmem>>, vector<2x32xf32>
    tpu.vector_store %arg14[%c0_185, %c0_186], %445 {strides = array<i32>} : memref<4x32xf32, #tpu.memory_space<vmem>>, vector<2x32xf32>,
    %c2_187 = arith.constant 2 : index
    %c0_188 = arith.constant 0 : index
    %475 = vector.load %arg14[%c2_187, %c0_188] : memref<4x32xf32, #tpu.memory_space<vmem>>, vector<2x32xf32>
    tpu.vector_store %arg14[%c2_187, %c0_188], %471 {strides = array<i32>} : memref<4x32xf32, #tpu.memory_space<vmem>>, vector<2x32xf32>,
    %c0_189 = arith.constant 0 : index
    %c0_190 = arith.constant 0 : index
    %476 = vector.load %arg15[%c0_189, %c0_190] : memref<4x32xf32, #tpu.memory_space<vmem>>, vector<2x32xf32>
    tpu.vector_store %arg15[%c0_189, %c0_190], %443 {strides = array<i32>} : memref<4x32xf32, #tpu.memory_space<vmem>>, vector<2x32xf32>,
    %c2_191 = arith.constant 2 : index
    %c0_192 = arith.constant 0 : index
    %477 = vector.load %arg15[%c2_191, %c0_192] : memref<4x32xf32, #tpu.memory_space<vmem>>, vector<2x32xf32>
    tpu.vector_store %arg15[%c2_191, %c0_192], %469 {strides = array<i32>} : memref<4x32xf32, #tpu.memory_space<vmem>>, vector<2x32xf32>,
    %c0_193 = arith.constant 0 : index
    %c0_194 = arith.constant 0 : index
    %478 = vector.load %arg14[%c0_193, %c0_194] : memref<4x32xf32, #tpu.memory_space<vmem>>, vector<4x32xf32>
    %c0_195 = arith.constant 0 : index
    %c0_196 = arith.constant 0 : index
    %479 = vector.load %arg15[%c0_195, %c0_196] : memref<4x32xf32, #tpu.memory_space<vmem>>, vector<4x32xf32>
    %cst_197 = arith.constant dense<0.000000e+00> : vector<4x256xf32>
    %480 = tpu.matmul %478, %8, %cst_197 {dimension_numbers = #tpu.dot_dimension_numbers<[1], [0], [0], [1], [0, 0, 1, 1], [], []>} : vector<4x32xf32>, vector<32x256xf32>, vector<4x256xf32> -> vector<4x256xf32>
    %c14_198 = arith.constant 14 : index
    %c0_199 = arith.constant 0 : index
    %481 = vector.load %arg11[%c14_198, %c0_199] : memref<16x256xf32, #tpu.memory_space<vmem>>, vector<2x128xf32>
    %482 = vector.extract_strided_slice %480 {offsets = [0, 0], sizes = [2, 128], strides = [1, 1]} : vector<4x256xf32> to vector<2x128xf32>
    %483 = arith.addf %481, %482 : vector<2x128xf32>
    %c0_200 = arith.constant 0 : index
    %c128_201 = arith.constant 128 : index
    %484 = vector.load %arg11[%c0_200, %c128_201] : memref<16x256xf32, #tpu.memory_space<vmem>>, vector<2x128xf32>
    %485 = vector.extract_strided_slice %480 {offsets = [2, 128], sizes = [2, 128], strides = [1, 1]} : vector<4x256xf32> to vector<2x128xf32>
    %486 = arith.addf %484, %485 : vector<2x128xf32>
    %487 = vector.extract_strided_slice %479 {offsets = [0, 0], sizes = [2, 32], strides = [1, 1]} : vector<4x32xf32> to vector<2x32xf32>
    %488 = vector.extract_strided_slice %483 {offsets = [0, 0], sizes = [2, 32], strides = [1, 1]} : vector<2x128xf32> to vector<2x32xf32>
    %489 = arith.negf %488 : vector<2x32xf32>
    %490 = math.exp %489 : vector<2x32xf32>
    %cst_202 = arith.constant 1.000000e+00 : f32
    %491 = vector.broadcast %cst_202 : f32 to vector<2x32xf32>
    %492 = arith.addf %491, %490 : vector<2x32xf32>
    %493 = arith.divf %491, %492 : vector<2x32xf32>
    %494 = vector.extract_strided_slice %483 {offsets = [0, 32], sizes = [2, 32], strides = [1, 1]} : vector<2x128xf32> to vector<2x32xf32>
    %495 = arith.negf %494 : vector<2x32xf32>
    %496 = math.exp %495 : vector<2x32xf32>
    %cst_203 = arith.constant 1.000000e+00 : f32
    %497 = vector.broadcast %cst_203 : f32 to vector<2x32xf32>
    %498 = arith.addf %497, %496 : vector<2x32xf32>
    %499 = arith.divf %497, %498 : vector<2x32xf32>
    %500 = vector.extract_strided_slice %483 {offsets = [0, 64], sizes = [2, 32], strides = [1, 1]} : vector<2x128xf32> to vector<2x32xf32>
    %501 = math.tanh %500 : vector<2x32xf32>
    %502 = vector.extract_strided_slice %483 {offsets = [0, 96], sizes = [2, 32], strides = [1, 1]} : vector<2x128xf32> to vector<2x32xf32>
    %503 = arith.negf %502 : vector<2x32xf32>
    %504 = math.exp %503 : vector<2x32xf32>
    %cst_204 = arith.constant 1.000000e+00 : f32
    %505 = vector.broadcast %cst_204 : f32 to vector<2x32xf32>
    %506 = arith.addf %505, %504 : vector<2x32xf32>
    %507 = arith.divf %505, %506 : vector<2x32xf32>
    %508 = arith.mulf %499, %487 : vector<2x32xf32>
    %509 = arith.mulf %493, %501 : vector<2x32xf32>
    %510 = arith.addf %508, %509 : vector<2x32xf32>
    %511 = math.tanh %510 : vector<2x32xf32>
    %512 = arith.mulf %507, %511 : vector<2x32xf32>
    %513 = vector.extract_strided_slice %479 {offsets = [2, 0], sizes = [2, 32], strides = [1, 1]} : vector<4x32xf32> to vector<2x32xf32>
    %514 = vector.extract_strided_slice %486 {offsets = [0, 0], sizes = [2, 32], strides = [1, 1]} : vector<2x128xf32> to vector<2x32xf32>
    %515 = arith.negf %514 : vector<2x32xf32>
    %516 = math.exp %515 : vector<2x32xf32>
    %cst_205 = arith.constant 1.000000e+00 : f32
    %517 = vector.broadcast %cst_205 : f32 to vector<2x32xf32>
    %518 = arith.addf %517, %516 : vector<2x32xf32>
    %519 = arith.divf %517, %518 : vector<2x32xf32>
    %520 = vector.extract_strided_slice %486 {offsets = [0, 32], sizes = [2, 32], strides = [1, 1]} : vector<2x128xf32> to vector<2x32xf32>
    %521 = arith.negf %520 : vector<2x32xf32>
    %522 = math.exp %521 : vector<2x32xf32>
    %cst_206 = arith.constant 1.000000e+00 : f32
    %523 = vector.broadcast %cst_206 : f32 to vector<2x32xf32>
    %524 = arith.addf %523, %522 : vector<2x32xf32>
    %525 = arith.divf %523, %524 : vector<2x32xf32>
    %526 = vector.extract_strided_slice %486 {offsets = [0, 64], sizes = [2, 32], strides = [1, 1]} : vector<2x128xf32> to vector<2x32xf32>
    %527 = math.tanh %526 : vector<2x32xf32>
    %528 = vector.extract_strided_slice %486 {offsets = [0, 96], sizes = [2, 32], strides = [1, 1]} : vector<2x128xf32> to vector<2x32xf32>
    %529 = arith.negf %528 : vector<2x32xf32>
    %530 = math.exp %529 : vector<2x32xf32>
    %cst_207 = arith.constant 1.000000e+00 : f32
    %531 = vector.broadcast %cst_207 : f32 to vector<2x32xf32>
    %532 = arith.addf %531, %530 : vector<2x32xf32>
    %533 = arith.divf %531, %532 : vector<2x32xf32>
    %534 = arith.mulf %525, %513 : vector<2x32xf32>
    %535 = arith.mulf %519, %527 : vector<2x32xf32>
    %536 = arith.addf %534, %535 : vector<2x32xf32>
    %537 = math.tanh %536 : vector<2x32xf32>
    %538 = arith.mulf %533, %537 : vector<2x32xf32>
    %c14_208 = arith.constant 14 : index
    %c0_209 = arith.constant 0 : index
    %539 = vector.load %arg12[%c14_208, %c0_209] : memref<16x64xf32, #tpu.memory_space<vmem>>, vector<2x32xf32>
    tpu.vector_store %arg12[%c14_208, %c0_209], %512 {strides = array<i32>} : memref<16x64xf32, #tpu.memory_space<vmem>>, vector<2x32xf32>,
    %c0_210 = arith.constant 0 : index
    %c32_211 = arith.constant 32 : index
    %540 = vector.load %arg12[%c0_210, %c32_211] : memref<16x64xf32, #tpu.memory_space<vmem>>, vector<2x32xf32>
    tpu.vector_store %arg12[%c0_210, %c32_211], %538 {strides = array<i32>} : memref<16x64xf32, #tpu.memory_space<vmem>>, vector<2x32xf32>,
    %c0_212 = arith.constant 0 : index
    %c0_213 = arith.constant 0 : index
    %541 = vector.load %arg14[%c0_212, %c0_213] : memref<4x32xf32, #tpu.memory_space<vmem>>, vector<2x32xf32>
    tpu.vector_store %arg14[%c0_212, %c0_213], %512 {strides = array<i32>} : memref<4x32xf32, #tpu.memory_space<vmem>>, vector<2x32xf32>,
    %c2_214 = arith.constant 2 : index
    %c0_215 = arith.constant 0 : index
    %542 = vector.load %arg14[%c2_214, %c0_215] : memref<4x32xf32, #tpu.memory_space<vmem>>, vector<2x32xf32>
    tpu.vector_store %arg14[%c2_214, %c0_215], %538 {strides = array<i32>} : memref<4x32xf32, #tpu.memory_space<vmem>>, vector<2x32xf32>,
    %c0_216 = arith.constant 0 : index
    %c0_217 = arith.constant 0 : index
    %543 = vector.load %arg15[%c0_216, %c0_217] : memref<4x32xf32, #tpu.memory_space<vmem>>, vector<2x32xf32>
    tpu.vector_store %arg15[%c0_216, %c0_217], %510 {strides = array<i32>} : memref<4x32xf32, #tpu.memory_space<vmem>>, vector<2x32xf32>,
    %c2_218 = arith.constant 2 : index
    %c0_219 = arith.constant 0 : index
    %544 = vector.load %arg15[%c2_218, %c0_219] : memref<4x32xf32, #tpu.memory_space<vmem>>, vector<2x32xf32>
    tpu.vector_store %arg15[%c2_218, %c0_219], %536 {strides = array<i32>} : memref<4x32xf32, #tpu.memory_space<vmem>>, vector<2x32xf32>,
    %c0_220 = arith.constant 0 : index
    %c0_221 = arith.constant 0 : index
    %545 = vector.load %arg12[%c0_220, %c0_221] : memref<16x64xf32, #tpu.memory_space<vmem>>, vector<16x64xf32>
    %c0_222 = arith.constant 0 : index
    %c0_223 = arith.constant 0 : index
    %546 = vector.load %arg3[%c0_222, %c0_223] : memref<64x192xf32, #tpu.memory_space<vmem>>, vector<64x192xf32>
    %cst_224 = arith.constant dense<0.000000e+00> : vector<16x192xf32>
    %547 = tpu.matmul %545, %546, %cst_224 {dimension_numbers = #tpu.dot_dimension_numbers<[1], [0], [0], [1], [0, 0, 1, 1], [], []>} : vector<16x64xf32>, vector<64x192xf32>, vector<16x192xf32> -> vector<16x192xf32>
    %c0_225 = arith.constant 0 : index
    %c0_226 = arith.constant 0 : index
    %548 = vector.load %arg13[%c0_225, %c0_226] : memref<16x192xf32, #tpu.memory_space<vmem>>, vector<16x192xf32>
    tpu.vector_store %arg13[%c0_225, %c0_226], %547 {strides = array<i32>} : memref<16x192xf32, #tpu.memory_space<vmem>>, vector<16x192xf32>,
    %cst_227 = arith.constant 0.000000e+00 : f32
    %549 = vector.broadcast %cst_227 : f32 to vector<4x32xf32>
    %c0_228 = arith.constant 0 : index
    %c0_229 = arith.constant 0 : index
    %550 = vector.load %arg16[%c0_228, %c0_229] : memref<4x32xf32, #tpu.memory_space<vmem>>, vector<4x32xf32>
    tpu.vector_store %arg16[%c0_228, %c0_229], %549 {strides = array<i32>} : memref<4x32xf32, #tpu.memory_space<vmem>>, vector<4x32xf32>,
    %c0_230 = arith.constant 0 : index
    %c0_231 = arith.constant 0 : index
    %551 = vector.load %arg4[%c0_230, %c0_231] : memref<32x192xf32, #tpu.memory_space<vmem>>, vector<32x192xf32>
    %cst_232 = arith.constant 0.000000e+00 : f32
    %552 = vector.broadcast %cst_232 : f32 to vector<2x32xf32>
    %cst_233 = arith.constant 0.000000e+00 : f32
    %553 = vector.broadcast %cst_233 : f32 to vector<2x32xf32>
    %cst_234 = arith.constant 0xFF800000 : f32
    %554 = vector.broadcast %cst_234 : f32 to vector<2x32xf32>
    %cst_235 = arith.constant 0xFF800000 : f32
    %555 = vector.broadcast %cst_235 : f32 to vector<2x32xf32>
    %c0_236 = arith.constant 0 : index
    %c0_237 = arith.constant 0 : index
    %556 = vector.load %arg16[%c0_236, %c0_237] : memref<4x32xf32, #tpu.memory_space<vmem>>, vector<4x32xf32>
    %cst_238 = arith.constant dense<0.000000e+00> : vector<4x192xf32>
    %557 = tpu.matmul %556, %551, %cst_238 {dimension_numbers = #tpu.dot_dimension_numbers<[1], [0], [0], [1], [0, 0, 1, 1], [], []>} : vector<4x32xf32>, vector<32x192xf32>, vector<4x192xf32> -> vector<4x192xf32>
    %c0_239 = arith.constant 0 : index
    %c0_240 = arith.constant 0 : index
    %558 = vector.load %arg13[%c0_239, %c0_240] : memref<16x192xf32, #tpu.memory_space<vmem>>, vector<2x96xf32>
    %c14_241 = arith.constant 14 : index
    %c96 = arith.constant 96 : index
    %559 = vector.load %arg13[%c14_241, %c96] : memref<16x192xf32, #tpu.memory_space<vmem>>, vector<2x96xf32>
    %560 = vector.extract_strided_slice %557 {offsets = [0, 0], sizes = [2, 96], strides = [1, 1]} : vector<4x192xf32> to vector<2x96xf32>
    %561 = vector.extract_strided_slice %556 {offsets = [0, 0], sizes = [2, 32], strides = [1, 1]} : vector<4x32xf32> to vector<2x32xf32>
    %562 = vector.extract_strided_slice %558 {offsets = [0, 0], sizes = [2, 32], strides = [1, 1]} : vector<2x96xf32> to vector<2x32xf32>
    %563 = vector.extract_strided_slice %560 {offsets = [0, 0], sizes = [2, 32], strides = [1, 1]} : vector<2x96xf32> to vector<2x32xf32>
    %564 = arith.addf %562, %563 : vector<2x32xf32>
    %565 = arith.negf %564 : vector<2x32xf32>
    %566 = math.exp %565 : vector<2x32xf32>
    %cst_242 = arith.constant 1.000000e+00 : f32
    %567 = vector.broadcast %cst_242 : f32 to vector<2x32xf32>
    %568 = arith.addf %567, %566 : vector<2x32xf32>
    %569 = arith.divf %567, %568 : vector<2x32xf32>
    %570 = vector.extract_strided_slice %558 {offsets = [0, 32], sizes = [2, 32], strides = [1, 1]} : vector<2x96xf32> to vector<2x32xf32>
    %571 = vector.extract_strided_slice %560 {offsets = [0, 32], sizes = [2, 32], strides = [1, 1]} : vector<2x96xf32> to vector<2x32xf32>
    %572 = arith.addf %570, %571 : vector<2x32xf32>
    %573 = arith.negf %572 : vector<2x32xf32>
    %574 = math.exp %573 : vector<2x32xf32>
    %cst_243 = arith.constant 1.000000e+00 : f32
    %575 = vector.broadcast %cst_243 : f32 to vector<2x32xf32>
    %576 = arith.addf %575, %574 : vector<2x32xf32>
    %577 = arith.divf %575, %576 : vector<2x32xf32>
    %578 = vector.extract_strided_slice %558 {offsets = [0, 64], sizes = [2, 32], strides = [1, 1]} : vector<2x96xf32> to vector<2x32xf32>
    %579 = vector.extract_strided_slice %560 {offsets = [0, 64], sizes = [2, 32], strides = [1, 1]} : vector<2x96xf32> to vector<2x32xf32>
    %580 = arith.mulf %569, %579 : vector<2x32xf32>
    %581 = arith.addf %578, %580 : vector<2x32xf32>
    %582 = math.tanh %581 : vector<2x32xf32>
    %cst_244 = arith.constant 1.000000e+00 : f32
    %583 = vector.broadcast %cst_244 : f32 to vector<2x32xf32>
    %584 = arith.subf %583, %577 : vector<2x32xf32>
    %585 = arith.mulf %584, %582 : vector<2x32xf32>
    %586 = arith.mulf %577, %561 : vector<2x32xf32>
    %587 = arith.addf %585, %586 : vector<2x32xf32>
    %588 = vector.extract_strided_slice %557 {offsets = [2, 96], sizes = [2, 96], strides = [1, 1]} : vector<4x192xf32> to vector<2x96xf32>
    %589 = vector.extract_strided_slice %556 {offsets = [2, 0], sizes = [2, 32], strides = [1, 1]} : vector<4x32xf32> to vector<2x32xf32>
    %590 = vector.extract_strided_slice %559 {offsets = [0, 0], sizes = [2, 32], strides = [1, 1]} : vector<2x96xf32> to vector<2x32xf32>
    %591 = vector.extract_strided_slice %588 {offsets = [0, 0], sizes = [2, 32], strides = [1, 1]} : vector<2x96xf32> to vector<2x32xf32>
    %592 = arith.addf %590, %591 : vector<2x32xf32>
    %593 = arith.negf %592 : vector<2x32xf32>
    %594 = math.exp %593 : vector<2x32xf32>
    %cst_245 = arith.constant 1.000000e+00 : f32
    %595 = vector.broadcast %cst_245 : f32 to vector<2x32xf32>
    %596 = arith.addf %595, %594 : vector<2x32xf32>
    %597 = arith.divf %595, %596 : vector<2x32xf32>
    %598 = vector.extract_strided_slice %559 {offsets = [0, 32], sizes = [2, 32], strides = [1, 1]} : vector<2x96xf32> to vector<2x32xf32>
    %599 = vector.extract_strided_slice %588 {offsets = [0, 32], sizes = [2, 32], strides = [1, 1]} : vector<2x96xf32> to vector<2x32xf32>
    %600 = arith.addf %598, %599 : vector<2x32xf32>
    %601 = arith.negf %600 : vector<2x32xf32>
    %602 = math.exp %601 : vector<2x32xf32>
    %cst_246 = arith.constant 1.000000e+00 : f32
    %603 = vector.broadcast %cst_246 : f32 to vector<2x32xf32>
    %604 = arith.addf %603, %602 : vector<2x32xf32>
    %605 = arith.divf %603, %604 : vector<2x32xf32>
    %606 = vector.extract_strided_slice %559 {offsets = [0, 64], sizes = [2, 32], strides = [1, 1]} : vector<2x96xf32> to vector<2x32xf32>
    %607 = vector.extract_strided_slice %588 {offsets = [0, 64], sizes = [2, 32], strides = [1, 1]} : vector<2x96xf32> to vector<2x32xf32>
    %608 = arith.mulf %597, %607 : vector<2x32xf32>
    %609 = arith.addf %606, %608 : vector<2x32xf32>
    %610 = math.tanh %609 : vector<2x32xf32>
    %cst_247 = arith.constant 1.000000e+00 : f32
    %611 = vector.broadcast %cst_247 : f32 to vector<2x32xf32>
    %612 = arith.subf %611, %605 : vector<2x32xf32>
    %613 = arith.mulf %612, %610 : vector<2x32xf32>
    %614 = arith.mulf %605, %589 : vector<2x32xf32>
    %615 = arith.addf %613, %614 : vector<2x32xf32>
    %c0_248 = arith.constant 0 : index
    %c0_249 = arith.constant 0 : index
    %616 = vector.load %arg16[%c0_248, %c0_249] : memref<4x32xf32, #tpu.memory_space<vmem>>, vector<2x32xf32>
    tpu.vector_store %arg16[%c0_248, %c0_249], %587 {strides = array<i32>} : memref<4x32xf32, #tpu.memory_space<vmem>>, vector<2x32xf32>,
    %c2_250 = arith.constant 2 : index
    %c0_251 = arith.constant 0 : index
    %617 = vector.load %arg16[%c2_250, %c0_251] : memref<4x32xf32, #tpu.memory_space<vmem>>, vector<2x32xf32>
    tpu.vector_store %arg16[%c2_250, %c0_251], %615 {strides = array<i32>} : memref<4x32xf32, #tpu.memory_space<vmem>>, vector<2x32xf32>,
    %618 = arith.addf %552, %587 : vector<2x32xf32>
    %619 = arith.addf %553, %615 : vector<2x32xf32>
    %620 = arith.maximumf %554, %587 : vector<2x32xf32>
    %621 = arith.maximumf %555, %615 : vector<2x32xf32>
    %c0_252 = arith.constant 0 : index
    %c0_253 = arith.constant 0 : index
    %622 = vector.load %arg16[%c0_252, %c0_253] : memref<4x32xf32, #tpu.memory_space<vmem>>, vector<4x32xf32>
    %cst_254 = arith.constant dense<0.000000e+00> : vector<4x192xf32>
    %623 = tpu.matmul %622, %551, %cst_254 {dimension_numbers = #tpu.dot_dimension_numbers<[1], [0], [0], [1], [0, 0, 1, 1], [], []>} : vector<4x32xf32>, vector<32x192xf32>, vector<4x192xf32> -> vector<4x192xf32>
    %c2_255 = arith.constant 2 : index
    %c0_256 = arith.constant 0 : index
    %624 = vector.load %arg13[%c2_255, %c0_256] : memref<16x192xf32, #tpu.memory_space<vmem>>, vector<2x96xf32>
    %c12_257 = arith.constant 12 : index
    %c96_258 = arith.constant 96 : index
    %625 = vector.load %arg13[%c12_257, %c96_258] : memref<16x192xf32, #tpu.memory_space<vmem>>, vector<2x96xf32>
    %626 = vector.extract_strided_slice %623 {offsets = [0, 0], sizes = [2, 96], strides = [1, 1]} : vector<4x192xf32> to vector<2x96xf32>
    %627 = vector.extract_strided_slice %622 {offsets = [0, 0], sizes = [2, 32], strides = [1, 1]} : vector<4x32xf32> to vector<2x32xf32>
    %628 = vector.extract_strided_slice %624 {offsets = [0, 0], sizes = [2, 32], strides = [1, 1]} : vector<2x96xf32> to vector<2x32xf32>
    %629 = vector.extract_strided_slice %626 {offsets = [0, 0], sizes = [2, 32], strides = [1, 1]} : vector<2x96xf32> to vector<2x32xf32>
    %630 = arith.addf %628, %629 : vector<2x32xf32>
    %631 = arith.negf %630 : vector<2x32xf32>
    %632 = math.exp %631 : vector<2x32xf32>
    %cst_259 = arith.constant 1.000000e+00 : f32
    %633 = vector.broadcast %cst_259 : f32 to vector<2x32xf32>
    %634 = arith.addf %633, %632 : vector<2x32xf32>
    %635 = arith.divf %633, %634 : vector<2x32xf32>
    %636 = vector.extract_strided_slice %624 {offsets = [0, 32], sizes = [2, 32], strides = [1, 1]} : vector<2x96xf32> to vector<2x32xf32>
    %637 = vector.extract_strided_slice %626 {offsets = [0, 32], sizes = [2, 32], strides = [1, 1]} : vector<2x96xf32> to vector<2x32xf32>
    %638 = arith.addf %636, %637 : vector<2x32xf32>
    %639 = arith.negf %638 : vector<2x32xf32>
    %640 = math.exp %639 : vector<2x32xf32>
    %cst_260 = arith.constant 1.000000e+00 : f32
    %641 = vector.broadcast %cst_260 : f32 to vector<2x32xf32>
    %642 = arith.addf %641, %640 : vector<2x32xf32>
    %643 = arith.divf %641, %642 : vector<2x32xf32>
    %644 = vector.extract_strided_slice %624 {offsets = [0, 64], sizes = [2, 32], strides = [1, 1]} : vector<2x96xf32> to vector<2x32xf32>
    %645 = vector.extract_strided_slice %626 {offsets = [0, 64], sizes = [2, 32], strides = [1, 1]} : vector<2x96xf32> to vector<2x32xf32>
    %646 = arith.mulf %635, %645 : vector<2x32xf32>
    %647 = arith.addf %644, %646 : vector<2x32xf32>
    %648 = math.tanh %647 : vector<2x32xf32>
    %cst_261 = arith.constant 1.000000e+00 : f32
    %649 = vector.broadcast %cst_261 : f32 to vector<2x32xf32>
    %650 = arith.subf %649, %643 : vector<2x32xf32>
    %651 = arith.mulf %650, %648 : vector<2x32xf32>
    %652 = arith.mulf %643, %627 : vector<2x32xf32>
    %653 = arith.addf %651, %652 : vector<2x32xf32>
    %654 = vector.extract_strided_slice %623 {offsets = [2, 96], sizes = [2, 96], strides = [1, 1]} : vector<4x192xf32> to vector<2x96xf32>
    %655 = vector.extract_strided_slice %622 {offsets = [2, 0], sizes = [2, 32], strides = [1, 1]} : vector<4x32xf32> to vector<2x32xf32>
    %656 = vector.extract_strided_slice %625 {offsets = [0, 0], sizes = [2, 32], strides = [1, 1]} : vector<2x96xf32> to vector<2x32xf32>
    %657 = vector.extract_strided_slice %654 {offsets = [0, 0], sizes = [2, 32], strides = [1, 1]} : vector<2x96xf32> to vector<2x32xf32>
    %658 = arith.addf %656, %657 : vector<2x32xf32>
    %659 = arith.negf %658 : vector<2x32xf32>
    %660 = math.exp %659 : vector<2x32xf32>
    %cst_262 = arith.constant 1.000000e+00 : f32
    %661 = vector.broadcast %cst_262 : f32 to vector<2x32xf32>
    %662 = arith.addf %661, %660 : vector<2x32xf32>
    %663 = arith.divf %661, %662 : vector<2x32xf32>
    %664 = vector.extract_strided_slice %625 {offsets = [0, 32], sizes = [2, 32], strides = [1, 1]} : vector<2x96xf32> to vector<2x32xf32>
    %665 = vector.extract_strided_slice %654 {offsets = [0, 32], sizes = [2, 32], strides = [1, 1]} : vector<2x96xf32> to vector<2x32xf32>
    %666 = arith.addf %664, %665 : vector<2x32xf32>
    %667 = arith.negf %666 : vector<2x32xf32>
    %668 = math.exp %667 : vector<2x32xf32>
    %cst_263 = arith.constant 1.000000e+00 : f32
    %669 = vector.broadcast %cst_263 : f32 to vector<2x32xf32>
    %670 = arith.addf %669, %668 : vector<2x32xf32>
    %671 = arith.divf %669, %670 : vector<2x32xf32>
    %672 = vector.extract_strided_slice %625 {offsets = [0, 64], sizes = [2, 32], strides = [1, 1]} : vector<2x96xf32> to vector<2x32xf32>
    %673 = vector.extract_strided_slice %654 {offsets = [0, 64], sizes = [2, 32], strides = [1, 1]} : vector<2x96xf32> to vector<2x32xf32>
    %674 = arith.mulf %663, %673 : vector<2x32xf32>
    %675 = arith.addf %672, %674 : vector<2x32xf32>
    %676 = math.tanh %675 : vector<2x32xf32>
    %cst_264 = arith.constant 1.000000e+00 : f32
    %677 = vector.broadcast %cst_264 : f32 to vector<2x32xf32>
    %678 = arith.subf %677, %671 : vector<2x32xf32>
    %679 = arith.mulf %678, %676 : vector<2x32xf32>
    %680 = arith.mulf %671, %655 : vector<2x32xf32>
    %681 = arith.addf %679, %680 : vector<2x32xf32>
    %c0_265 = arith.constant 0 : index
    %c0_266 = arith.constant 0 : index
    %682 = vector.load %arg16[%c0_265, %c0_266] : memref<4x32xf32, #tpu.memory_space<vmem>>, vector<2x32xf32>
    tpu.vector_store %arg16[%c0_265, %c0_266], %653 {strides = array<i32>} : memref<4x32xf32, #tpu.memory_space<vmem>>, vector<2x32xf32>,
    %c2_267 = arith.constant 2 : index
    %c0_268 = arith.constant 0 : index
    %683 = vector.load %arg16[%c2_267, %c0_268] : memref<4x32xf32, #tpu.memory_space<vmem>>, vector<2x32xf32>
    tpu.vector_store %arg16[%c2_267, %c0_268], %681 {strides = array<i32>} : memref<4x32xf32, #tpu.memory_space<vmem>>, vector<2x32xf32>,
    %684 = arith.addf %618, %653 : vector<2x32xf32>
    %685 = arith.addf %619, %681 : vector<2x32xf32>
    %686 = arith.maximumf %620, %653 : vector<2x32xf32>
    %687 = arith.maximumf %621, %681 : vector<2x32xf32>
    %c0_269 = arith.constant 0 : index
    %c0_270 = arith.constant 0 : index
    %688 = vector.load %arg16[%c0_269, %c0_270] : memref<4x32xf32, #tpu.memory_space<vmem>>, vector<4x32xf32>
    %cst_271 = arith.constant dense<0.000000e+00> : vector<4x192xf32>
    %689 = tpu.matmul %688, %551, %cst_271 {dimension_numbers = #tpu.dot_dimension_numbers<[1], [0], [0], [1], [0, 0, 1, 1], [], []>} : vector<4x32xf32>, vector<32x192xf32>, vector<4x192xf32> -> vector<4x192xf32>
    %c4_272 = arith.constant 4 : index
    %c0_273 = arith.constant 0 : index
    %690 = vector.load %arg13[%c4_272, %c0_273] : memref<16x192xf32, #tpu.memory_space<vmem>>, vector<2x96xf32>
    %c10_274 = arith.constant 10 : index
    %c96_275 = arith.constant 96 : index
    %691 = vector.load %arg13[%c10_274, %c96_275] : memref<16x192xf32, #tpu.memory_space<vmem>>, vector<2x96xf32>
    %692 = vector.extract_strided_slice %689 {offsets = [0, 0], sizes = [2, 96], strides = [1, 1]} : vector<4x192xf32> to vector<2x96xf32>
    %693 = vector.extract_strided_slice %688 {offsets = [0, 0], sizes = [2, 32], strides = [1, 1]} : vector<4x32xf32> to vector<2x32xf32>
    %694 = vector.extract_strided_slice %690 {offsets = [0, 0], sizes = [2, 32], strides = [1, 1]} : vector<2x96xf32> to vector<2x32xf32>
    %695 = vector.extract_strided_slice %692 {offsets = [0, 0], sizes = [2, 32], strides = [1, 1]} : vector<2x96xf32> to vector<2x32xf32>
    %696 = arith.addf %694, %695 : vector<2x32xf32>
    %697 = arith.negf %696 : vector<2x32xf32>
    %698 = math.exp %697 : vector<2x32xf32>
    %cst_276 = arith.constant 1.000000e+00 : f32
    %699 = vector.broadcast %cst_276 : f32 to vector<2x32xf32>
    %700 = arith.addf %699, %698 : vector<2x32xf32>
    %701 = arith.divf %699, %700 : vector<2x32xf32>
    %702 = vector.extract_strided_slice %690 {offsets = [0, 32], sizes = [2, 32], strides = [1, 1]} : vector<2x96xf32> to vector<2x32xf32>
    %703 = vector.extract_strided_slice %692 {offsets = [0, 32], sizes = [2, 32], strides = [1, 1]} : vector<2x96xf32> to vector<2x32xf32>
    %704 = arith.addf %702, %703 : vector<2x32xf32>
    %705 = arith.negf %704 : vector<2x32xf32>
    %706 = math.exp %705 : vector<2x32xf32>
    %cst_277 = arith.constant 1.000000e+00 : f32
    %707 = vector.broadcast %cst_277 : f32 to vector<2x32xf32>
    %708 = arith.addf %707, %706 : vector<2x32xf32>
    %709 = arith.divf %707, %708 : vector<2x32xf32>
    %710 = vector.extract_strided_slice %690 {offsets = [0, 64], sizes = [2, 32], strides = [1, 1]} : vector<2x96xf32> to vector<2x32xf32>
    %711 = vector.extract_strided_slice %692 {offsets = [0, 64], sizes = [2, 32], strides = [1, 1]} : vector<2x96xf32> to vector<2x32xf32>
    %712 = arith.mulf %701, %711 : vector<2x32xf32>
    %713 = arith.addf %710, %712 : vector<2x32xf32>
    %714 = math.tanh %713 : vector<2x32xf32>
    %cst_278 = arith.constant 1.000000e+00 : f32
    %715 = vector.broadcast %cst_278 : f32 to vector<2x32xf32>
    %716 = arith.subf %715, %709 : vector<2x32xf32>
    %717 = arith.mulf %716, %714 : vector<2x32xf32>
    %718 = arith.mulf %709, %693 : vector<2x32xf32>
    %719 = arith.addf %717, %718 : vector<2x32xf32>
    %720 = vector.extract_strided_slice %689 {offsets = [2, 96], sizes = [2, 96], strides = [1, 1]} : vector<4x192xf32> to vector<2x96xf32>
    %721 = vector.extract_strided_slice %688 {offsets = [2, 0], sizes = [2, 32], strides = [1, 1]} : vector<4x32xf32> to vector<2x32xf32>
    %722 = vector.extract_strided_slice %691 {offsets = [0, 0], sizes = [2, 32], strides = [1, 1]} : vector<2x96xf32> to vector<2x32xf32>
    %723 = vector.extract_strided_slice %720 {offsets = [0, 0], sizes = [2, 32], strides = [1, 1]} : vector<2x96xf32> to vector<2x32xf32>
    %724 = arith.addf %722, %723 : vector<2x32xf32>
    %725 = arith.negf %724 : vector<2x32xf32>
    %726 = math.exp %725 : vector<2x32xf32>
    %cst_279 = arith.constant 1.000000e+00 : f32
    %727 = vector.broadcast %cst_279 : f32 to vector<2x32xf32>
    %728 = arith.addf %727, %726 : vector<2x32xf32>
    %729 = arith.divf %727, %728 : vector<2x32xf32>
    %730 = vector.extract_strided_slice %691 {offsets = [0, 32], sizes = [2, 32], strides = [1, 1]} : vector<2x96xf32> to vector<2x32xf32>
    %731 = vector.extract_strided_slice %720 {offsets = [0, 32], sizes = [2, 32], strides = [1, 1]} : vector<2x96xf32> to vector<2x32xf32>
    %732 = arith.addf %730, %731 : vector<2x32xf32>
    %733 = arith.negf %732 : vector<2x32xf32>
    %734 = math.exp %733 : vector<2x32xf32>
    %cst_280 = arith.constant 1.000000e+00 : f32
    %735 = vector.broadcast %cst_280 : f32 to vector<2x32xf32>
    %736 = arith.addf %735, %734 : vector<2x32xf32>
    %737 = arith.divf %735, %736 : vector<2x32xf32>
    %738 = vector.extract_strided_slice %691 {offsets = [0, 64], sizes = [2, 32], strides = [1, 1]} : vector<2x96xf32> to vector<2x32xf32>
    %739 = vector.extract_strided_slice %720 {offsets = [0, 64], sizes = [2, 32], strides = [1, 1]} : vector<2x96xf32> to vector<2x32xf32>
    %740 = arith.mulf %729, %739 : vector<2x32xf32>
    %741 = arith.addf %738, %740 : vector<2x32xf32>
    %742 = math.tanh %741 : vector<2x32xf32>
    %cst_281 = arith.constant 1.000000e+00 : f32
    %743 = vector.broadcast %cst_281 : f32 to vector<2x32xf32>
    %744 = arith.subf %743, %737 : vector<2x32xf32>
    %745 = arith.mulf %744, %742 : vector<2x32xf32>
    %746 = arith.mulf %737, %721 : vector<2x32xf32>
    %747 = arith.addf %745, %746 : vector<2x32xf32>
    %c0_282 = arith.constant 0 : index
    %c0_283 = arith.constant 0 : index
    %748 = vector.load %arg16[%c0_282, %c0_283] : memref<4x32xf32, #tpu.memory_space<vmem>>, vector<2x32xf32>
    tpu.vector_store %arg16[%c0_282, %c0_283], %719 {strides = array<i32>} : memref<4x32xf32, #tpu.memory_space<vmem>>, vector<2x32xf32>,
    %c2_284 = arith.constant 2 : index
    %c0_285 = arith.constant 0 : index
    %749 = vector.load %arg16[%c2_284, %c0_285] : memref<4x32xf32, #tpu.memory_space<vmem>>, vector<2x32xf32>
    tpu.vector_store %arg16[%c2_284, %c0_285], %747 {strides = array<i32>} : memref<4x32xf32, #tpu.memory_space<vmem>>, vector<2x32xf32>,
    %750 = arith.addf %684, %719 : vector<2x32xf32>
    %751 = arith.addf %685, %747 : vector<2x32xf32>
    %752 = arith.maximumf %686, %719 : vector<2x32xf32>
    %753 = arith.maximumf %687, %747 : vector<2x32xf32>
    %c0_286 = arith.constant 0 : index
    %c0_287 = arith.constant 0 : index
    %754 = vector.load %arg16[%c0_286, %c0_287] : memref<4x32xf32, #tpu.memory_space<vmem>>, vector<4x32xf32>
    %cst_288 = arith.constant dense<0.000000e+00> : vector<4x192xf32>
    %755 = tpu.matmul %754, %551, %cst_288 {dimension_numbers = #tpu.dot_dimension_numbers<[1], [0], [0], [1], [0, 0, 1, 1], [], []>} : vector<4x32xf32>, vector<32x192xf32>, vector<4x192xf32> -> vector<4x192xf32>
    %c6_289 = arith.constant 6 : index
    %c0_290 = arith.constant 0 : index
    %756 = vector.load %arg13[%c6_289, %c0_290] : memref<16x192xf32, #tpu.memory_space<vmem>>, vector<2x96xf32>
    %c8_291 = arith.constant 8 : index
    %c96_292 = arith.constant 96 : index
    %757 = vector.load %arg13[%c8_291, %c96_292] : memref<16x192xf32, #tpu.memory_space<vmem>>, vector<2x96xf32>
    %758 = vector.extract_strided_slice %755 {offsets = [0, 0], sizes = [2, 96], strides = [1, 1]} : vector<4x192xf32> to vector<2x96xf32>
    %759 = vector.extract_strided_slice %754 {offsets = [0, 0], sizes = [2, 32], strides = [1, 1]} : vector<4x32xf32> to vector<2x32xf32>
    %760 = vector.extract_strided_slice %756 {offsets = [0, 0], sizes = [2, 32], strides = [1, 1]} : vector<2x96xf32> to vector<2x32xf32>
    %761 = vector.extract_strided_slice %758 {offsets = [0, 0], sizes = [2, 32], strides = [1, 1]} : vector<2x96xf32> to vector<2x32xf32>
    %762 = arith.addf %760, %761 : vector<2x32xf32>
    %763 = arith.negf %762 : vector<2x32xf32>
    %764 = math.exp %763 : vector<2x32xf32>
    %cst_293 = arith.constant 1.000000e+00 : f32
    %765 = vector.broadcast %cst_293 : f32 to vector<2x32xf32>
    %766 = arith.addf %765, %764 : vector<2x32xf32>
    %767 = arith.divf %765, %766 : vector<2x32xf32>
    %768 = vector.extract_strided_slice %756 {offsets = [0, 32], sizes = [2, 32], strides = [1, 1]} : vector<2x96xf32> to vector<2x32xf32>
    %769 = vector.extract_strided_slice %758 {offsets = [0, 32], sizes = [2, 32], strides = [1, 1]} : vector<2x96xf32> to vector<2x32xf32>
    %770 = arith.addf %768, %769 : vector<2x32xf32>
    %771 = arith.negf %770 : vector<2x32xf32>
    %772 = math.exp %771 : vector<2x32xf32>
    %cst_294 = arith.constant 1.000000e+00 : f32
    %773 = vector.broadcast %cst_294 : f32 to vector<2x32xf32>
    %774 = arith.addf %773, %772 : vector<2x32xf32>
    %775 = arith.divf %773, %774 : vector<2x32xf32>
    %776 = vector.extract_strided_slice %756 {offsets = [0, 64], sizes = [2, 32], strides = [1, 1]} : vector<2x96xf32> to vector<2x32xf32>
    %777 = vector.extract_strided_slice %758 {offsets = [0, 64], sizes = [2, 32], strides = [1, 1]} : vector<2x96xf32> to vector<2x32xf32>
    %778 = arith.mulf %767, %777 : vector<2x32xf32>
    %779 = arith.addf %776, %778 : vector<2x32xf32>
    %780 = math.tanh %779 : vector<2x32xf32>
    %cst_295 = arith.constant 1.000000e+00 : f32
    %781 = vector.broadcast %cst_295 : f32 to vector<2x32xf32>
    %782 = arith.subf %781, %775 : vector<2x32xf32>
    %783 = arith.mulf %782, %780 : vector<2x32xf32>
    %784 = arith.mulf %775, %759 : vector<2x32xf32>
    %785 = arith.addf %783, %784 : vector<2x32xf32>
    %786 = vector.extract_strided_slice %755 {offsets = [2, 96], sizes = [2, 96], strides = [1, 1]} : vector<4x192xf32> to vector<2x96xf32>
    %787 = vector.extract_strided_slice %754 {offsets = [2, 0], sizes = [2, 32], strides = [1, 1]} : vector<4x32xf32> to vector<2x32xf32>
    %788 = vector.extract_strided_slice %757 {offsets = [0, 0], sizes = [2, 32], strides = [1, 1]} : vector<2x96xf32> to vector<2x32xf32>
    %789 = vector.extract_strided_slice %786 {offsets = [0, 0], sizes = [2, 32], strides = [1, 1]} : vector<2x96xf32> to vector<2x32xf32>
    %790 = arith.addf %788, %789 : vector<2x32xf32>
    %791 = arith.negf %790 : vector<2x32xf32>
    %792 = math.exp %791 : vector<2x32xf32>
    %cst_296 = arith.constant 1.000000e+00 : f32
    %793 = vector.broadcast %cst_296 : f32 to vector<2x32xf32>
    %794 = arith.addf %793, %792 : vector<2x32xf32>
    %795 = arith.divf %793, %794 : vector<2x32xf32>
    %796 = vector.extract_strided_slice %757 {offsets = [0, 32], sizes = [2, 32], strides = [1, 1]} : vector<2x96xf32> to vector<2x32xf32>
    %797 = vector.extract_strided_slice %786 {offsets = [0, 32], sizes = [2, 32], strides = [1, 1]} : vector<2x96xf32> to vector<2x32xf32>
    %798 = arith.addf %796, %797 : vector<2x32xf32>
    %799 = arith.negf %798 : vector<2x32xf32>
    %800 = math.exp %799 : vector<2x32xf32>
    %cst_297 = arith.constant 1.000000e+00 : f32
    %801 = vector.broadcast %cst_297 : f32 to vector<2x32xf32>
    %802 = arith.addf %801, %800 : vector<2x32xf32>
    %803 = arith.divf %801, %802 : vector<2x32xf32>
    %804 = vector.extract_strided_slice %757 {offsets = [0, 64], sizes = [2, 32], strides = [1, 1]} : vector<2x96xf32> to vector<2x32xf32>
    %805 = vector.extract_strided_slice %786 {offsets = [0, 64], sizes = [2, 32], strides = [1, 1]} : vector<2x96xf32> to vector<2x32xf32>
    %806 = arith.mulf %795, %805 : vector<2x32xf32>
    %807 = arith.addf %804, %806 : vector<2x32xf32>
    %808 = math.tanh %807 : vector<2x32xf32>
    %cst_298 = arith.constant 1.000000e+00 : f32
    %809 = vector.broadcast %cst_298 : f32 to vector<2x32xf32>
    %810 = arith.subf %809, %803 : vector<2x32xf32>
    %811 = arith.mulf %810, %808 : vector<2x32xf32>
    %812 = arith.mulf %803, %787 : vector<2x32xf32>
    %813 = arith.addf %811, %812 : vector<2x32xf32>
    %c0_299 = arith.constant 0 : index
    %c0_300 = arith.constant 0 : index
    %814 = vector.load %arg16[%c0_299, %c0_300] : memref<4x32xf32, #tpu.memory_space<vmem>>, vector<2x32xf32>
    tpu.vector_store %arg16[%c0_299, %c0_300], %785 {strides = array<i32>} : memref<4x32xf32, #tpu.memory_space<vmem>>, vector<2x32xf32>,
    %c2_301 = arith.constant 2 : index
    %c0_302 = arith.constant 0 : index
    %815 = vector.load %arg16[%c2_301, %c0_302] : memref<4x32xf32, #tpu.memory_space<vmem>>, vector<2x32xf32>
    tpu.vector_store %arg16[%c2_301, %c0_302], %813 {strides = array<i32>} : memref<4x32xf32, #tpu.memory_space<vmem>>, vector<2x32xf32>,
    %816 = arith.addf %750, %785 : vector<2x32xf32>
    %817 = arith.addf %751, %813 : vector<2x32xf32>
    %818 = arith.maximumf %752, %785 : vector<2x32xf32>
    %819 = arith.maximumf %753, %813 : vector<2x32xf32>
    %c0_303 = arith.constant 0 : index
    %c0_304 = arith.constant 0 : index
    %820 = vector.load %arg16[%c0_303, %c0_304] : memref<4x32xf32, #tpu.memory_space<vmem>>, vector<4x32xf32>
    %cst_305 = arith.constant dense<0.000000e+00> : vector<4x192xf32>
    %821 = tpu.matmul %820, %551, %cst_305 {dimension_numbers = #tpu.dot_dimension_numbers<[1], [0], [0], [1], [0, 0, 1, 1], [], []>} : vector<4x32xf32>, vector<32x192xf32>, vector<4x192xf32> -> vector<4x192xf32>
    %c8_306 = arith.constant 8 : index
    %c0_307 = arith.constant 0 : index
    %822 = vector.load %arg13[%c8_306, %c0_307] : memref<16x192xf32, #tpu.memory_space<vmem>>, vector<2x96xf32>
    %c6_308 = arith.constant 6 : index
    %c96_309 = arith.constant 96 : index
    %823 = vector.load %arg13[%c6_308, %c96_309] : memref<16x192xf32, #tpu.memory_space<vmem>>, vector<2x96xf32>
    %824 = vector.extract_strided_slice %821 {offsets = [0, 0], sizes = [2, 96], strides = [1, 1]} : vector<4x192xf32> to vector<2x96xf32>
    %825 = vector.extract_strided_slice %820 {offsets = [0, 0], sizes = [2, 32], strides = [1, 1]} : vector<4x32xf32> to vector<2x32xf32>
    %826 = vector.extract_strided_slice %822 {offsets = [0, 0], sizes = [2, 32], strides = [1, 1]} : vector<2x96xf32> to vector<2x32xf32>
    %827 = vector.extract_strided_slice %824 {offsets = [0, 0], sizes = [2, 32], strides = [1, 1]} : vector<2x96xf32> to vector<2x32xf32>
    %828 = arith.addf %826, %827 : vector<2x32xf32>
    %829 = arith.negf %828 : vector<2x32xf32>
    %830 = math.exp %829 : vector<2x32xf32>
    %cst_310 = arith.constant 1.000000e+00 : f32
    %831 = vector.broadcast %cst_310 : f32 to vector<2x32xf32>
    %832 = arith.addf %831, %830 : vector<2x32xf32>
    %833 = arith.divf %831, %832 : vector<2x32xf32>
    %834 = vector.extract_strided_slice %822 {offsets = [0, 32], sizes = [2, 32], strides = [1, 1]} : vector<2x96xf32> to vector<2x32xf32>
    %835 = vector.extract_strided_slice %824 {offsets = [0, 32], sizes = [2, 32], strides = [1, 1]} : vector<2x96xf32> to vector<2x32xf32>
    %836 = arith.addf %834, %835 : vector<2x32xf32>
    %837 = arith.negf %836 : vector<2x32xf32>
    %838 = math.exp %837 : vector<2x32xf32>
    %cst_311 = arith.constant 1.000000e+00 : f32
    %839 = vector.broadcast %cst_311 : f32 to vector<2x32xf32>
    %840 = arith.addf %839, %838 : vector<2x32xf32>
    %841 = arith.divf %839, %840 : vector<2x32xf32>
    %842 = vector.extract_strided_slice %822 {offsets = [0, 64], sizes = [2, 32], strides = [1, 1]} : vector<2x96xf32> to vector<2x32xf32>
    %843 = vector.extract_strided_slice %824 {offsets = [0, 64], sizes = [2, 32], strides = [1, 1]} : vector<2x96xf32> to vector<2x32xf32>
    %844 = arith.mulf %833, %843 : vector<2x32xf32>
    %845 = arith.addf %842, %844 : vector<2x32xf32>
    %846 = math.tanh %845 : vector<2x32xf32>
    %cst_312 = arith.constant 1.000000e+00 : f32
    %847 = vector.broadcast %cst_312 : f32 to vector<2x32xf32>
    %848 = arith.subf %847, %841 : vector<2x32xf32>
    %849 = arith.mulf %848, %846 : vector<2x32xf32>
    %850 = arith.mulf %841, %825 : vector<2x32xf32>
    %851 = arith.addf %849, %850 : vector<2x32xf32>
    %852 = vector.extract_strided_slice %821 {offsets = [2, 96], sizes = [2, 96], strides = [1, 1]} : vector<4x192xf32> to vector<2x96xf32>
    %853 = vector.extract_strided_slice %820 {offsets = [2, 0], sizes = [2, 32], strides = [1, 1]} : vector<4x32xf32> to vector<2x32xf32>
    %854 = vector.extract_strided_slice %823 {offsets = [0, 0], sizes = [2, 32], strides = [1, 1]} : vector<2x96xf32> to vector<2x32xf32>
    %855 = vector.extract_strided_slice %852 {offsets = [0, 0], sizes = [2, 32], strides = [1, 1]} : vector<2x96xf32> to vector<2x32xf32>
    %856 = arith.addf %854, %855 : vector<2x32xf32>
    %857 = arith.negf %856 : vector<2x32xf32>
    %858 = math.exp %857 : vector<2x32xf32>
    %cst_313 = arith.constant 1.000000e+00 : f32
    %859 = vector.broadcast %cst_313 : f32 to vector<2x32xf32>
    %860 = arith.addf %859, %858 : vector<2x32xf32>
    %861 = arith.divf %859, %860 : vector<2x32xf32>
    %862 = vector.extract_strided_slice %823 {offsets = [0, 32], sizes = [2, 32], strides = [1, 1]} : vector<2x96xf32> to vector<2x32xf32>
    %863 = vector.extract_strided_slice %852 {offsets = [0, 32], sizes = [2, 32], strides = [1, 1]} : vector<2x96xf32> to vector<2x32xf32>
    %864 = arith.addf %862, %863 : vector<2x32xf32>
    %865 = arith.negf %864 : vector<2x32xf32>
    %866 = math.exp %865 : vector<2x32xf32>
    %cst_314 = arith.constant 1.000000e+00 : f32
    %867 = vector.broadcast %cst_314 : f32 to vector<2x32xf32>
    %868 = arith.addf %867, %866 : vector<2x32xf32>
    %869 = arith.divf %867, %868 : vector<2x32xf32>
    %870 = vector.extract_strided_slice %823 {offsets = [0, 64], sizes = [2, 32], strides = [1, 1]} : vector<2x96xf32> to vector<2x32xf32>
    %871 = vector.extract_strided_slice %852 {offsets = [0, 64], sizes = [2, 32], strides = [1, 1]} : vector<2x96xf32> to vector<2x32xf32>
    %872 = arith.mulf %861, %871 : vector<2x32xf32>
    %873 = arith.addf %870, %872 : vector<2x32xf32>
    %874 = math.tanh %873 : vector<2x32xf32>
    %cst_315 = arith.constant 1.000000e+00 : f32
    %875 = vector.broadcast %cst_315 : f32 to vector<2x32xf32>
    %876 = arith.subf %875, %869 : vector<2x32xf32>
    %877 = arith.mulf %876, %874 : vector<2x32xf32>
    %878 = arith.mulf %869, %853 : vector<2x32xf32>
    %879 = arith.addf %877, %878 : vector<2x32xf32>
    %c0_316 = arith.constant 0 : index
    %c0_317 = arith.constant 0 : index
    %880 = vector.load %arg16[%c0_316, %c0_317] : memref<4x32xf32, #tpu.memory_space<vmem>>, vector<2x32xf32>
    tpu.vector_store %arg16[%c0_316, %c0_317], %851 {strides = array<i32>} : memref<4x32xf32, #tpu.memory_space<vmem>>, vector<2x32xf32>,
    %c2_318 = arith.constant 2 : index
    %c0_319 = arith.constant 0 : index
    %881 = vector.load %arg16[%c2_318, %c0_319] : memref<4x32xf32, #tpu.memory_space<vmem>>, vector<2x32xf32>
    tpu.vector_store %arg16[%c2_318, %c0_319], %879 {strides = array<i32>} : memref<4x32xf32, #tpu.memory_space<vmem>>, vector<2x32xf32>,
    %882 = arith.addf %816, %851 : vector<2x32xf32>
    %883 = arith.addf %817, %879 : vector<2x32xf32>
    %884 = arith.maximumf %818, %851 : vector<2x32xf32>
    %885 = arith.maximumf %819, %879 : vector<2x32xf32>
    %c0_320 = arith.constant 0 : index
    %c0_321 = arith.constant 0 : index
    %886 = vector.load %arg16[%c0_320, %c0_321] : memref<4x32xf32, #tpu.memory_space<vmem>>, vector<4x32xf32>
    %cst_322 = arith.constant dense<0.000000e+00> : vector<4x192xf32>
    %887 = tpu.matmul %886, %551, %cst_322 {dimension_numbers = #tpu.dot_dimension_numbers<[1], [0], [0], [1], [0, 0, 1, 1], [], []>} : vector<4x32xf32>, vector<32x192xf32>, vector<4x192xf32> -> vector<4x192xf32>
    %c10_323 = arith.constant 10 : index
    %c0_324 = arith.constant 0 : index
    %888 = vector.load %arg13[%c10_323, %c0_324] : memref<16x192xf32, #tpu.memory_space<vmem>>, vector<2x96xf32>
    %c4_325 = arith.constant 4 : index
    %c96_326 = arith.constant 96 : index
    %889 = vector.load %arg13[%c4_325, %c96_326] : memref<16x192xf32, #tpu.memory_space<vmem>>, vector<2x96xf32>
    %890 = vector.extract_strided_slice %887 {offsets = [0, 0], sizes = [2, 96], strides = [1, 1]} : vector<4x192xf32> to vector<2x96xf32>
    %891 = vector.extract_strided_slice %886 {offsets = [0, 0], sizes = [2, 32], strides = [1, 1]} : vector<4x32xf32> to vector<2x32xf32>
    %892 = vector.extract_strided_slice %888 {offsets = [0, 0], sizes = [2, 32], strides = [1, 1]} : vector<2x96xf32> to vector<2x32xf32>
    %893 = vector.extract_strided_slice %890 {offsets = [0, 0], sizes = [2, 32], strides = [1, 1]} : vector<2x96xf32> to vector<2x32xf32>
    %894 = arith.addf %892, %893 : vector<2x32xf32>
    %895 = arith.negf %894 : vector<2x32xf32>
    %896 = math.exp %895 : vector<2x32xf32>
    %cst_327 = arith.constant 1.000000e+00 : f32
    %897 = vector.broadcast %cst_327 : f32 to vector<2x32xf32>
    %898 = arith.addf %897, %896 : vector<2x32xf32>
    %899 = arith.divf %897, %898 : vector<2x32xf32>
    %900 = vector.extract_strided_slice %888 {offsets = [0, 32], sizes = [2, 32], strides = [1, 1]} : vector<2x96xf32> to vector<2x32xf32>
    %901 = vector.extract_strided_slice %890 {offsets = [0, 32], sizes = [2, 32], strides = [1, 1]} : vector<2x96xf32> to vector<2x32xf32>
    %902 = arith.addf %900, %901 : vector<2x32xf32>
    %903 = arith.negf %902 : vector<2x32xf32>
    %904 = math.exp %903 : vector<2x32xf32>
    %cst_328 = arith.constant 1.000000e+00 : f32
    %905 = vector.broadcast %cst_328 : f32 to vector<2x32xf32>
    %906 = arith.addf %905, %904 : vector<2x32xf32>
    %907 = arith.divf %905, %906 : vector<2x32xf32>
    %908 = vector.extract_strided_slice %888 {offsets = [0, 64], sizes = [2, 32], strides = [1, 1]} : vector<2x96xf32> to vector<2x32xf32>
    %909 = vector.extract_strided_slice %890 {offsets = [0, 64], sizes = [2, 32], strides = [1, 1]} : vector<2x96xf32> to vector<2x32xf32>
    %910 = arith.mulf %899, %909 : vector<2x32xf32>
    %911 = arith.addf %908, %910 : vector<2x32xf32>
    %912 = math.tanh %911 : vector<2x32xf32>
    %cst_329 = arith.constant 1.000000e+00 : f32
    %913 = vector.broadcast %cst_329 : f32 to vector<2x32xf32>
    %914 = arith.subf %913, %907 : vector<2x32xf32>
    %915 = arith.mulf %914, %912 : vector<2x32xf32>
    %916 = arith.mulf %907, %891 : vector<2x32xf32>
    %917 = arith.addf %915, %916 : vector<2x32xf32>
    %918 = vector.extract_strided_slice %887 {offsets = [2, 96], sizes = [2, 96], strides = [1, 1]} : vector<4x192xf32> to vector<2x96xf32>
    %919 = vector.extract_strided_slice %886 {offsets = [2, 0], sizes = [2, 32], strides = [1, 1]} : vector<4x32xf32> to vector<2x32xf32>
    %920 = vector.extract_strided_slice %889 {offsets = [0, 0], sizes = [2, 32], strides = [1, 1]} : vector<2x96xf32> to vector<2x32xf32>
    %921 = vector.extract_strided_slice %918 {offsets = [0, 0], sizes = [2, 32], strides = [1, 1]} : vector<2x96xf32> to vector<2x32xf32>
    %922 = arith.addf %920, %921 : vector<2x32xf32>
    %923 = arith.negf %922 : vector<2x32xf32>
    %924 = math.exp %923 : vector<2x32xf32>
    %cst_330 = arith.constant 1.000000e+00 : f32
    %925 = vector.broadcast %cst_330 : f32 to vector<2x32xf32>
    %926 = arith.addf %925, %924 : vector<2x32xf32>
    %927 = arith.divf %925, %926 : vector<2x32xf32>
    %928 = vector.extract_strided_slice %889 {offsets = [0, 32], sizes = [2, 32], strides = [1, 1]} : vector<2x96xf32> to vector<2x32xf32>
    %929 = vector.extract_strided_slice %918 {offsets = [0, 32], sizes = [2, 32], strides = [1, 1]} : vector<2x96xf32> to vector<2x32xf32>
    %930 = arith.addf %928, %929 : vector<2x32xf32>
    %931 = arith.negf %930 : vector<2x32xf32>
    %932 = math.exp %931 : vector<2x32xf32>
    %cst_331 = arith.constant 1.000000e+00 : f32
    %933 = vector.broadcast %cst_331 : f32 to vector<2x32xf32>
    %934 = arith.addf %933, %932 : vector<2x32xf32>
    %935 = arith.divf %933, %934 : vector<2x32xf32>
    %936 = vector.extract_strided_slice %889 {offsets = [0, 64], sizes = [2, 32], strides = [1, 1]} : vector<2x96xf32> to vector<2x32xf32>
    %937 = vector.extract_strided_slice %918 {offsets = [0, 64], sizes = [2, 32], strides = [1, 1]} : vector<2x96xf32> to vector<2x32xf32>
    %938 = arith.mulf %927, %937 : vector<2x32xf32>
    %939 = arith.addf %936, %938 : vector<2x32xf32>
    %940 = math.tanh %939 : vector<2x32xf32>
    %cst_332 = arith.constant 1.000000e+00 : f32
    %941 = vector.broadcast %cst_332 : f32 to vector<2x32xf32>
    %942 = arith.subf %941, %935 : vector<2x32xf32>
    %943 = arith.mulf %942, %940 : vector<2x32xf32>
    %944 = arith.mulf %935, %919 : vector<2x32xf32>
    %945 = arith.addf %943, %944 : vector<2x32xf32>
    %c0_333 = arith.constant 0 : index
    %c0_334 = arith.constant 0 : index
    %946 = vector.load %arg16[%c0_333, %c0_334] : memref<4x32xf32, #tpu.memory_space<vmem>>, vector<2x32xf32>
    tpu.vector_store %arg16[%c0_333, %c0_334], %917 {strides = array<i32>} : memref<4x32xf32, #tpu.memory_space<vmem>>, vector<2x32xf32>,
    %c2_335 = arith.constant 2 : index
    %c0_336 = arith.constant 0 : index
    %947 = vector.load %arg16[%c2_335, %c0_336] : memref<4x32xf32, #tpu.memory_space<vmem>>, vector<2x32xf32>
    tpu.vector_store %arg16[%c2_335, %c0_336], %945 {strides = array<i32>} : memref<4x32xf32, #tpu.memory_space<vmem>>, vector<2x32xf32>,
    %948 = arith.addf %882, %917 : vector<2x32xf32>
    %949 = arith.addf %883, %945 : vector<2x32xf32>
    %950 = arith.maximumf %884, %917 : vector<2x32xf32>
    %951 = arith.maximumf %885, %945 : vector<2x32xf32>
    %c0_337 = arith.constant 0 : index
    %c0_338 = arith.constant 0 : index
    %952 = vector.load %arg16[%c0_337, %c0_338] : memref<4x32xf32, #tpu.memory_space<vmem>>, vector<4x32xf32>
    %cst_339 = arith.constant dense<0.000000e+00> : vector<4x192xf32>
    %953 = tpu.matmul %952, %551, %cst_339 {dimension_numbers = #tpu.dot_dimension_numbers<[1], [0], [0], [1], [0, 0, 1, 1], [], []>} : vector<4x32xf32>, vector<32x192xf32>, vector<4x192xf32> -> vector<4x192xf32>
    %c12_340 = arith.constant 12 : index
    %c0_341 = arith.constant 0 : index
    %954 = vector.load %arg13[%c12_340, %c0_341] : memref<16x192xf32, #tpu.memory_space<vmem>>, vector<2x96xf32>
    %c2_342 = arith.constant 2 : index
    %c96_343 = arith.constant 96 : index
    %955 = vector.load %arg13[%c2_342, %c96_343] : memref<16x192xf32, #tpu.memory_space<vmem>>, vector<2x96xf32>
    %956 = vector.extract_strided_slice %953 {offsets = [0, 0], sizes = [2, 96], strides = [1, 1]} : vector<4x192xf32> to vector<2x96xf32>
    %957 = vector.extract_strided_slice %952 {offsets = [0, 0], sizes = [2, 32], strides = [1, 1]} : vector<4x32xf32> to vector<2x32xf32>
    %958 = vector.extract_strided_slice %954 {offsets = [0, 0], sizes = [2, 32], strides = [1, 1]} : vector<2x96xf32> to vector<2x32xf32>
    %959 = vector.extract_strided_slice %956 {offsets = [0, 0], sizes = [2, 32], strides = [1, 1]} : vector<2x96xf32> to vector<2x32xf32>
    %960 = arith.addf %958, %959 : vector<2x32xf32>
    %961 = arith.negf %960 : vector<2x32xf32>
    %962 = math.exp %961 : vector<2x32xf32>
    %cst_344 = arith.constant 1.000000e+00 : f32
    %963 = vector.broadcast %cst_344 : f32 to vector<2x32xf32>
    %964 = arith.addf %963, %962 : vector<2x32xf32>
    %965 = arith.divf %963, %964 : vector<2x32xf32>
    %966 = vector.extract_strided_slice %954 {offsets = [0, 32], sizes = [2, 32], strides = [1, 1]} : vector<2x96xf32> to vector<2x32xf32>
    %967 = vector.extract_strided_slice %956 {offsets = [0, 32], sizes = [2, 32], strides = [1, 1]} : vector<2x96xf32> to vector<2x32xf32>
    %968 = arith.addf %966, %967 : vector<2x32xf32>
    %969 = arith.negf %968 : vector<2x32xf32>
    %970 = math.exp %969 : vector<2x32xf32>
    %cst_345 = arith.constant 1.000000e+00 : f32
    %971 = vector.broadcast %cst_345 : f32 to vector<2x32xf32>
    %972 = arith.addf %971, %970 : vector<2x32xf32>
    %973 = arith.divf %971, %972 : vector<2x32xf32>
    %974 = vector.extract_strided_slice %954 {offsets = [0, 64], sizes = [2, 32], strides = [1, 1]} : vector<2x96xf32> to vector<2x32xf32>
    %975 = vector.extract_strided_slice %956 {offsets = [0, 64], sizes = [2, 32], strides = [1, 1]} : vector<2x96xf32> to vector<2x32xf32>
    %976 = arith.mulf %965, %975 : vector<2x32xf32>
    %977 = arith.addf %974, %976 : vector<2x32xf32>
    %978 = math.tanh %977 : vector<2x32xf32>
    %cst_346 = arith.constant 1.000000e+00 : f32
    %979 = vector.broadcast %cst_346 : f32 to vector<2x32xf32>
    %980 = arith.subf %979, %973 : vector<2x32xf32>
    %981 = arith.mulf %980, %978 : vector<2x32xf32>
    %982 = arith.mulf %973, %957 : vector<2x32xf32>
    %983 = arith.addf %981, %982 : vector<2x32xf32>
    %984 = vector.extract_strided_slice %953 {offsets = [2, 96], sizes = [2, 96], strides = [1, 1]} : vector<4x192xf32> to vector<2x96xf32>
    %985 = vector.extract_strided_slice %952 {offsets = [2, 0], sizes = [2, 32], strides = [1, 1]} : vector<4x32xf32> to vector<2x32xf32>
    %986 = vector.extract_strided_slice %955 {offsets = [0, 0], sizes = [2, 32], strides = [1, 1]} : vector<2x96xf32> to vector<2x32xf32>
    %987 = vector.extract_strided_slice %984 {offsets = [0, 0], sizes = [2, 32], strides = [1, 1]} : vector<2x96xf32> to vector<2x32xf32>
    %988 = arith.addf %986, %987 : vector<2x32xf32>
    %989 = arith.negf %988 : vector<2x32xf32>
    %990 = math.exp %989 : vector<2x32xf32>
    %cst_347 = arith.constant 1.000000e+00 : f32
    %991 = vector.broadcast %cst_347 : f32 to vector<2x32xf32>
    %992 = arith.addf %991, %990 : vector<2x32xf32>
    %993 = arith.divf %991, %992 : vector<2x32xf32>
    %994 = vector.extract_strided_slice %955 {offsets = [0, 32], sizes = [2, 32], strides = [1, 1]} : vector<2x96xf32> to vector<2x32xf32>
    %995 = vector.extract_strided_slice %984 {offsets = [0, 32], sizes = [2, 32], strides = [1, 1]} : vector<2x96xf32> to vector<2x32xf32>
    %996 = arith.addf %994, %995 : vector<2x32xf32>
    %997 = arith.negf %996 : vector<2x32xf32>
    %998 = math.exp %997 : vector<2x32xf32>
    %cst_348 = arith.constant 1.000000e+00 : f32
    %999 = vector.broadcast %cst_348 : f32 to vector<2x32xf32>
    %1000 = arith.addf %999, %998 : vector<2x32xf32>
    %1001 = arith.divf %999, %1000 : vector<2x32xf32>
    %1002 = vector.extract_strided_slice %955 {offsets = [0, 64], sizes = [2, 32], strides = [1, 1]} : vector<2x96xf32> to vector<2x32xf32>
    %1003 = vector.extract_strided_slice %984 {offsets = [0, 64], sizes = [2, 32], strides = [1, 1]} : vector<2x96xf32> to vector<2x32xf32>
    %1004 = arith.mulf %993, %1003 : vector<2x32xf32>
    %1005 = arith.addf %1002, %1004 : vector<2x32xf32>
    %1006 = math.tanh %1005 : vector<2x32xf32>
    %cst_349 = arith.constant 1.000000e+00 : f32
    %1007 = vector.broadcast %cst_349 : f32 to vector<2x32xf32>
    %1008 = arith.subf %1007, %1001 : vector<2x32xf32>
    %1009 = arith.mulf %1008, %1006 : vector<2x32xf32>
    %1010 = arith.mulf %1001, %985 : vector<2x32xf32>
    %1011 = arith.addf %1009, %1010 : vector<2x32xf32>
    %c0_350 = arith.constant 0 : index
    %c0_351 = arith.constant 0 : index
    %1012 = vector.load %arg16[%c0_350, %c0_351] : memref<4x32xf32, #tpu.memory_space<vmem>>, vector<2x32xf32>
    tpu.vector_store %arg16[%c0_350, %c0_351], %983 {strides = array<i32>} : memref<4x32xf32, #tpu.memory_space<vmem>>, vector<2x32xf32>,
    %c2_352 = arith.constant 2 : index
    %c0_353 = arith.constant 0 : index
    %1013 = vector.load %arg16[%c2_352, %c0_353] : memref<4x32xf32, #tpu.memory_space<vmem>>, vector<2x32xf32>
    tpu.vector_store %arg16[%c2_352, %c0_353], %1011 {strides = array<i32>} : memref<4x32xf32, #tpu.memory_space<vmem>>, vector<2x32xf32>,
    %1014 = arith.addf %948, %983 : vector<2x32xf32>
    %1015 = arith.addf %949, %1011 : vector<2x32xf32>
    %1016 = arith.maximumf %950, %983 : vector<2x32xf32>
    %1017 = arith.maximumf %951, %1011 : vector<2x32xf32>
    %c0_354 = arith.constant 0 : index
    %c0_355 = arith.constant 0 : index
    %1018 = vector.load %arg16[%c0_354, %c0_355] : memref<4x32xf32, #tpu.memory_space<vmem>>, vector<4x32xf32>
    %cst_356 = arith.constant dense<0.000000e+00> : vector<4x192xf32>
    %1019 = tpu.matmul %1018, %551, %cst_356 {dimension_numbers = #tpu.dot_dimension_numbers<[1], [0], [0], [1], [0, 0, 1, 1], [], []>} : vector<4x32xf32>, vector<32x192xf32>, vector<4x192xf32> -> vector<4x192xf32>
    %c14_357 = arith.constant 14 : index
    %c0_358 = arith.constant 0 : index
    %1020 = vector.load %arg13[%c14_357, %c0_358] : memref<16x192xf32, #tpu.memory_space<vmem>>, vector<2x96xf32>
    %c0_359 = arith.constant 0 : index
    %c96_360 = arith.constant 96 : index
    %1021 = vector.load %arg13[%c0_359, %c96_360] : memref<16x192xf32, #tpu.memory_space<vmem>>, vector<2x96xf32>
    %1022 = vector.extract_strided_slice %1019 {offsets = [0, 0], sizes = [2, 96], strides = [1, 1]} : vector<4x192xf32> to vector<2x96xf32>
    %1023 = vector.extract_strided_slice %1018 {offsets = [0, 0], sizes = [2, 32], strides = [1, 1]} : vector<4x32xf32> to vector<2x32xf32>
    %1024 = vector.extract_strided_slice %1020 {offsets = [0, 0], sizes = [2, 32], strides = [1, 1]} : vector<2x96xf32> to vector<2x32xf32>
    %1025 = vector.extract_strided_slice %1022 {offsets = [0, 0], sizes = [2, 32], strides = [1, 1]} : vector<2x96xf32> to vector<2x32xf32>
    %1026 = arith.addf %1024, %1025 : vector<2x32xf32>
    %1027 = arith.negf %1026 : vector<2x32xf32>
    %1028 = math.exp %1027 : vector<2x32xf32>
    %cst_361 = arith.constant 1.000000e+00 : f32
    %1029 = vector.broadcast %cst_361 : f32 to vector<2x32xf32>
    %1030 = arith.addf %1029, %1028 : vector<2x32xf32>
    %1031 = arith.divf %1029, %1030 : vector<2x32xf32>
    %1032 = vector.extract_strided_slice %1020 {offsets = [0, 32], sizes = [2, 32], strides = [1, 1]} : vector<2x96xf32> to vector<2x32xf32>
    %1033 = vector.extract_strided_slice %1022 {offsets = [0, 32], sizes = [2, 32], strides = [1, 1]} : vector<2x96xf32> to vector<2x32xf32>
    %1034 = arith.addf %1032, %1033 : vector<2x32xf32>
    %1035 = arith.negf %1034 : vector<2x32xf32>
    %1036 = math.exp %1035 : vector<2x32xf32>
    %cst_362 = arith.constant 1.000000e+00 : f32
    %1037 = vector.broadcast %cst_362 : f32 to vector<2x32xf32>
    %1038 = arith.addf %1037, %1036 : vector<2x32xf32>
    %1039 = arith.divf %1037, %1038 : vector<2x32xf32>
    %1040 = vector.extract_strided_slice %1020 {offsets = [0, 64], sizes = [2, 32], strides = [1, 1]} : vector<2x96xf32> to vector<2x32xf32>
    %1041 = vector.extract_strided_slice %1022 {offsets = [0, 64], sizes = [2, 32], strides = [1, 1]} : vector<2x96xf32> to vector<2x32xf32>
    %1042 = arith.mulf %1031, %1041 : vector<2x32xf32>
    %1043 = arith.addf %1040, %1042 : vector<2x32xf32>
    %1044 = math.tanh %1043 : vector<2x32xf32>
    %cst_363 = arith.constant 1.000000e+00 : f32
    %1045 = vector.broadcast %cst_363 : f32 to vector<2x32xf32>
    %1046 = arith.subf %1045, %1039 : vector<2x32xf32>
    %1047 = arith.mulf %1046, %1044 : vector<2x32xf32>
    %1048 = arith.mulf %1039, %1023 : vector<2x32xf32>
    %1049 = arith.addf %1047, %1048 : vector<2x32xf32>
    %1050 = vector.extract_strided_slice %1019 {offsets = [2, 96], sizes = [2, 96], strides = [1, 1]} : vector<4x192xf32> to vector<2x96xf32>
    %1051 = vector.extract_strided_slice %1018 {offsets = [2, 0], sizes = [2, 32], strides = [1, 1]} : vector<4x32xf32> to vector<2x32xf32>
    %1052 = vector.extract_strided_slice %1021 {offsets = [0, 0], sizes = [2, 32], strides = [1, 1]} : vector<2x96xf32> to vector<2x32xf32>
    %1053 = vector.extract_strided_slice %1050 {offsets = [0, 0], sizes = [2, 32], strides = [1, 1]} : vector<2x96xf32> to vector<2x32xf32>
    %1054 = arith.addf %1052, %1053 : vector<2x32xf32>
    %1055 = arith.negf %1054 : vector<2x32xf32>
    %1056 = math.exp %1055 : vector<2x32xf32>
    %cst_364 = arith.constant 1.000000e+00 : f32
    %1057 = vector.broadcast %cst_364 : f32 to vector<2x32xf32>
    %1058 = arith.addf %1057, %1056 : vector<2x32xf32>
    %1059 = arith.divf %1057, %1058 : vector<2x32xf32>
    %1060 = vector.extract_strided_slice %1021 {offsets = [0, 32], sizes = [2, 32], strides = [1, 1]} : vector<2x96xf32> to vector<2x32xf32>
    %1061 = vector.extract_strided_slice %1050 {offsets = [0, 32], sizes = [2, 32], strides = [1, 1]} : vector<2x96xf32> to vector<2x32xf32>
    %1062 = arith.addf %1060, %1061 : vector<2x32xf32>
    %1063 = arith.negf %1062 : vector<2x32xf32>
    %1064 = math.exp %1063 : vector<2x32xf32>
    %cst_365 = arith.constant 1.000000e+00 : f32
    %1065 = vector.broadcast %cst_365 : f32 to vector<2x32xf32>
    %1066 = arith.addf %1065, %1064 : vector<2x32xf32>
    %1067 = arith.divf %1065, %1066 : vector<2x32xf32>
    %1068 = vector.extract_strided_slice %1021 {offsets = [0, 64], sizes = [2, 32], strides = [1, 1]} : vector<2x96xf32> to vector<2x32xf32>
    %1069 = vector.extract_strided_slice %1050 {offsets = [0, 64], sizes = [2, 32], strides = [1, 1]} : vector<2x96xf32> to vector<2x32xf32>
    %1070 = arith.mulf %1059, %1069 : vector<2x32xf32>
    %1071 = arith.addf %1068, %1070 : vector<2x32xf32>
    %1072 = math.tanh %1071 : vector<2x32xf32>
    %cst_366 = arith.constant 1.000000e+00 : f32
    %1073 = vector.broadcast %cst_366 : f32 to vector<2x32xf32>
    %1074 = arith.subf %1073, %1067 : vector<2x32xf32>
    %1075 = arith.mulf %1074, %1072 : vector<2x32xf32>
    %1076 = arith.mulf %1067, %1051 : vector<2x32xf32>
    %1077 = arith.addf %1075, %1076 : vector<2x32xf32>
    %c0_367 = arith.constant 0 : index
    %c0_368 = arith.constant 0 : index
    %1078 = vector.load %arg16[%c0_367, %c0_368] : memref<4x32xf32, #tpu.memory_space<vmem>>, vector<2x32xf32>
    tpu.vector_store %arg16[%c0_367, %c0_368], %1049 {strides = array<i32>} : memref<4x32xf32, #tpu.memory_space<vmem>>, vector<2x32xf32>,
    %c2_369 = arith.constant 2 : index
    %c0_370 = arith.constant 0 : index
    %1079 = vector.load %arg16[%c2_369, %c0_370] : memref<4x32xf32, #tpu.memory_space<vmem>>, vector<2x32xf32>
    tpu.vector_store %arg16[%c2_369, %c0_370], %1077 {strides = array<i32>} : memref<4x32xf32, #tpu.memory_space<vmem>>, vector<2x32xf32>,
    %1080 = arith.addf %1014, %1049 : vector<2x32xf32>
    %1081 = arith.addf %1015, %1077 : vector<2x32xf32>
    %1082 = arith.maximumf %1016, %1049 : vector<2x32xf32>
    %1083 = arith.maximumf %1017, %1077 : vector<2x32xf32>
    %1084 = vector.extract_strided_slice %1049 {offsets = [0, 0], sizes = [1, 32], strides = [1, 1]} : vector<2x32xf32> to vector<1x32xf32>
    %c0_371 = arith.constant 0 : index
    %c0_372 = arith.constant 0 : index
    %1085 = vector.load %arg17[%c0_371, %c0_372] : memref<2x64xf32, #tpu.memory_space<vmem>>, vector<1x32xf32>
    tpu.vector_store %arg17[%c0_371, %c0_372], %1084 {strides = array<i32>} : memref<2x64xf32, #tpu.memory_space<vmem>>, vector<1x32xf32>,
    %1086 = vector.extract_strided_slice %1049 {offsets = [1, 0], sizes = [1, 32], strides = [1, 1]} : vector<2x32xf32> to vector<1x32xf32>
    %c0_373 = arith.constant 0 : index
    %c32_374 = arith.constant 32 : index
    %1087 = vector.load %arg17[%c0_373, %c32_374] : memref<2x64xf32, #tpu.memory_space<vmem>>, vector<1x32xf32>
    tpu.vector_store %arg17[%c0_373, %c32_374], %1086 {strides = array<i32>} : memref<2x64xf32, #tpu.memory_space<vmem>>, vector<1x32xf32>,
    %1088 = vector.extract_strided_slice %1077 {offsets = [0, 0], sizes = [1, 32], strides = [1, 1]} : vector<2x32xf32> to vector<1x32xf32>
    %c1 = arith.constant 1 : index
    %c0_375 = arith.constant 0 : index
    %1089 = vector.load %arg17[%c1, %c0_375] : memref<2x64xf32, #tpu.memory_space<vmem>>, vector<1x32xf32>
    tpu.vector_store %arg17[%c1, %c0_375], %1088 {strides = array<i32>} : memref<2x64xf32, #tpu.memory_space<vmem>>, vector<1x32xf32>,
    %1090 = vector.extract_strided_slice %1077 {offsets = [1, 0], sizes = [1, 32], strides = [1, 1]} : vector<2x32xf32> to vector<1x32xf32>
    %c1_376 = arith.constant 1 : index
    %c32_377 = arith.constant 32 : index
    %1091 = vector.load %arg17[%c1_376, %c32_377] : memref<2x64xf32, #tpu.memory_space<vmem>>, vector<1x32xf32>
    tpu.vector_store %arg17[%c1_376, %c32_377], %1090 {strides = array<i32>} : memref<2x64xf32, #tpu.memory_space<vmem>>, vector<1x32xf32>,
    %c0_378 = arith.constant 0 : index
    %c0_379 = arith.constant 0 : index
    %1092 = vector.load %arg17[%c0_378, %c0_379] : memref<2x64xf32, #tpu.memory_space<vmem>>, vector<2x64xf32>
    %cst_380 = arith.constant 1.250000e-01 : f32
    %1093 = vector.broadcast %cst_380 : f32 to vector<2x32xf32>
    %1094 = arith.mulf %1080, %1093 : vector<2x32xf32>
    %cst_381 = arith.constant 1.250000e-01 : f32
    %1095 = vector.broadcast %cst_381 : f32 to vector<2x32xf32>
    %1096 = arith.mulf %1081, %1095 : vector<2x32xf32>
    %c0_382 = arith.constant 0 : index
    %c0_383 = arith.constant 0 : index
    %1097 = vector.load %arg6[%c0_382, %c0_383] : memref<196x32xf32, #tpu.memory_space<vmem>>, vector<64x32xf32>
    %cst_384 = arith.constant dense<0.000000e+00> : vector<2x32xf32>
    %1098 = tpu.matmul %1092, %1097, %cst_384 {dimension_numbers = #tpu.dot_dimension_numbers<[1], [0], [0], [1], [0, 0, 1, 1], [], []>} : vector<2x64xf32>, vector<64x32xf32>, vector<2x32xf32> -> vector<2x32xf32>
    %c64 = arith.constant 64 : index
    %c0_385 = arith.constant 0 : index
    %1099 = vector.load %arg6[%c64, %c0_385] : memref<196x32xf32, #tpu.memory_space<vmem>>, vector<32x32xf32>
    %cst_386 = arith.constant dense<0.000000e+00> : vector<2x32xf32>
    %1100 = tpu.matmul %1094, %1099, %cst_386 {dimension_numbers = #tpu.dot_dimension_numbers<[1], [0], [0], [1], [0, 0, 1, 1], [], []>} : vector<2x32xf32>, vector<32x32xf32>, vector<2x32xf32> -> vector<2x32xf32>
    %1101 = arith.addf %1098, %1100 : vector<2x32xf32>
    %c96_387 = arith.constant 96 : index
    %c0_388 = arith.constant 0 : index
    %1102 = vector.load %arg6[%c96_387, %c0_388] : memref<196x32xf32, #tpu.memory_space<vmem>>, vector<32x32xf32>
    %cst_389 = arith.constant dense<0.000000e+00> : vector<2x32xf32>
    %1103 = tpu.matmul %1096, %1102, %cst_389 {dimension_numbers = #tpu.dot_dimension_numbers<[1], [0], [0], [1], [0, 0, 1, 1], [], []>} : vector<2x32xf32>, vector<32x32xf32>, vector<2x32xf32> -> vector<2x32xf32>
    %1104 = arith.addf %1101, %1103 : vector<2x32xf32>
    %c128_390 = arith.constant 128 : index
    %c0_391 = arith.constant 0 : index
    %1105 = vector.load %arg6[%c128_390, %c0_391] : memref<196x32xf32, #tpu.memory_space<vmem>>, vector<32x32xf32>
    %cst_392 = arith.constant dense<0.000000e+00> : vector<2x32xf32>
    %1106 = tpu.matmul %1082, %1105, %cst_392 {dimension_numbers = #tpu.dot_dimension_numbers<[1], [0], [0], [1], [0, 0, 1, 1], [], []>} : vector<2x32xf32>, vector<32x32xf32>, vector<2x32xf32> -> vector<2x32xf32>
    %1107 = arith.addf %1104, %1106 : vector<2x32xf32>
    %c160 = arith.constant 160 : index
    %c0_393 = arith.constant 0 : index
    %1108 = vector.load %arg6[%c160, %c0_393] : memref<196x32xf32, #tpu.memory_space<vmem>>, vector<32x32xf32>
    %cst_394 = arith.constant dense<0.000000e+00> : vector<2x32xf32>
    %1109 = tpu.matmul %1083, %1108, %cst_394 {dimension_numbers = #tpu.dot_dimension_numbers<[1], [0], [0], [1], [0, 0, 1, 1], [], []>} : vector<2x32xf32>, vector<32x32xf32>, vector<2x32xf32> -> vector<2x32xf32>
    %1110 = arith.addf %1107, %1109 : vector<2x32xf32>
    %c0_395 = arith.constant 0 : index
    %c0_396 = arith.constant 0 : index
    %1111 = vector.load %arg5[%c0_395, %c0_396] : memref<2x4xf32, #tpu.memory_space<vmem>>, vector<2x4xf32>
    %c192 = arith.constant 192 : index
    %c0_397 = arith.constant 0 : index
    %1112 = vector.load %arg6[%c192, %c0_397] : memref<196x32xf32, #tpu.memory_space<vmem>>, vector<4x32xf32>
    %cst_398 = arith.constant dense<0.000000e+00> : vector<2x32xf32>
    %1113 = tpu.matmul %1111, %1112, %cst_398 {dimension_numbers = #tpu.dot_dimension_numbers<[1], [0], [0], [1], [0, 0, 1, 1], [], []>} : vector<2x4xf32>, vector<4x32xf32>, vector<2x32xf32> -> vector<2x32xf32>
    %1114 = arith.addf %1110, %1113 : vector<2x32xf32>
    %c0_399 = arith.constant 0 : index
    %c0_400 = arith.constant 0 : index
    %1115 = vector.load %arg7[%c0_399, %c0_400] : memref<1x32xf32, #tpu.memory_space<vmem>>, vector<1x32xf32>
    %1116 = vector.broadcast %1115 : vector<1x32xf32> to vector<2x32xf32>
    %1117 = arith.addf %1114, %1116 : vector<2x32xf32>
    %cst_401 = arith.constant 0.000000e+00 : f32
    %1118 = vector.broadcast %cst_401 : f32 to vector<2x32xf32>
    %1119 = arith.maximumf %1117, %1118 : vector<2x32xf32>
    %c0_402 = arith.constant 0 : index
    %c0_403 = arith.constant 0 : index
    %1120 = vector.load %arg8[%c0_402, %c0_403] : memref<32x1xf32, #tpu.memory_space<vmem>>, vector<32x1xf32>
    %cst_404 = arith.constant dense<0.000000e+00> : vector<2x1xf32>
    %1121 = tpu.matmul %1119, %1120, %cst_404 {dimension_numbers = #tpu.dot_dimension_numbers<[1], [0], [0], [1], [0, 0, 1, 1], [], []>} : vector<2x32xf32>, vector<32x1xf32>, vector<2x1xf32> -> vector<2x1xf32>
    %c0_405 = arith.constant 0 : index
    %c0_406 = arith.constant 0 : index
    %1122 = vector.load %arg9[%c0_405, %c0_406] : memref<1x1xf32, #tpu.memory_space<vmem>>, vector<1x1xf32>
    %1123 = vector.broadcast %1122 : vector<1x1xf32> to vector<2x1xf32>
    %1124 = arith.addf %1121, %1123 : vector<2x1xf32>
    %c0_407 = arith.constant 0 : index
    %c0_408 = arith.constant 0 : index
    %1125 = vector.load %arg10[%c0_407, %c0_408] : memref<2x1xf32, #tpu.memory_space<vmem>>, vector<2x1xf32>
    tpu.vector_store %arg10[%c0_407, %c0_408], %1124 {strides = array<i32>} : memref<2x1xf32, #tpu.memory_space<vmem>>, vector<2x1xf32>,
    return
  }
}

</mosaic_0001>

<llo_original>
// kernel: neural_net_forward.1
$region0: #{neural_net_forward.1}
  #allocation0 [shape = 'u32[]', space=smem, size = 0x4, offset = 0x4, fixed_abs, tag = 'smem constant byte address 0x4 - core index']
  #allocation1 [shape = 'u32[72,128]{1,0:T(1,128)}', space=vmem, size = 0x9000, scoped, tag = 'internal scratch']
  #allocation2 [shape = 'f32[16,256]{1,0:T(8,128)}', space=vmem, size = 0x4000, scoped, tag = 'scratch operand']
  #allocation3 [shape = 'f32[16,64]{1,0:T(8,128)}', space=vmem, size = 0x2000, scoped, tag = 'scratch operand']
  #allocation4 [shape = 'f32[16,192]{1,0:T(8,128)}', space=vmem, size = 0x4000, scoped, tag = 'scratch operand']
  #allocation5 [shape = 'f32[4,32]{1,0:T(4,128)}', space=vmem, size = 0x800, scoped, tag = 'scratch operand']
  #allocation6 [shape = 'f32[4,32]{1,0:T(4,128)}', space=vmem, size = 0x800, scoped, tag = 'scratch operand']
  #allocation7 [shape = 'f32[4,32]{1,0:T(4,128)}', space=vmem, size = 0x800, scoped, tag = 'scratch operand']
  #allocation8 [shape = 'f32[2,64]{1,0:T(2,128)}', space=vmem, size = 0x400, scoped, tag = 'scratch operand']
  #allocation9 [shape = 'f32[1,1]{1,0:T(1,128)S(1)}', space=vmem, size = 0x200, scoped, tag = 'scoped memory for neural_net_forward.1']
  %s0 = inlined_call_operand.vmem [shape: f32[16,64], index: 0, kind: input, shape index: {}]
  %s1 = inlined_call_operand.vmem [shape: f32[64,256], index: 1, kind: input, shape index: {}]
  %s2 = inlined_call_operand.vmem [shape: f32[32,256], index: 2, kind: input, shape index: {}]
  %s3 = inlined_call_operand.vmem [shape: f32[64,192], index: 3, kind: input, shape index: {}]
  %s4 = inlined_call_operand.vmem [shape: f32[32,192], index: 4, kind: input, shape index: {}]
  %s5 = inlined_call_operand.vmem [shape: f32[2,4], index: 5, kind: input, shape index: {}]
  %s6 = inlined_call_operand.vmem [shape: f32[196,32], index: 6, kind: input, shape index: {}]
  %s7 = inlined_call_operand.vmem [shape: f32[1,32], index: 7, kind: input, shape index: {}]
  %s8 = inlined_call_operand.vmem [shape: f32[32,1], index: 8, kind: input, shape index: {}]
  %s9 = inlined_call_operand.<no memory space> [shape: f32[1,1], index: 9, kind: input, shape index: {}]
  %s10 = inlined_call_operand.vmem [shape: f32[2,1], index: 10, kind: output, shape index: {}]
  %s11 = sld [smem:[#allocation0]]
  $region50: #{neural_net_forward.1} parent=0
    _
  %s13 = ssub.s32 1, %s11
  %s14 = scalar_select 0, %s13, %s11
  %v15 = vstv %s9
  %16 = vst [vmem:[#allocation9] sm:$0x1] %v15
  // Predicated region
  $region2: #{neural_net_forward.1} parent=0 // pred_check
    _
  $region3: #{neural_net_forward.1} parent=0 // pred_check_branch
    %18 = sbr.rel (0) target = $region5
  $region4: #{neural_net_forward.1} parent=0 // pred_region
    _
  $region5: #{neural_net_forward.1} parent=0 // pred_fallthru
    _
  // Predicated region
  $region6: #{neural_net_forward.1} parent=0 // pred_check
    _
  $region7: #{neural_net_forward.1} parent=0 // pred_check_branch
    %20 = sbr.rel (0) target = $region9
  $region8: #{neural_net_forward.1} parent=0 // pred_region
    _
  $region9: #{neural_net_forward.1} parent=0 // pred_fallthru
    _
  // Predicated region
  $region10: #{neural_net_forward.1} parent=0 // pred_check
    _
  $region11: #{neural_net_forward.1} parent=0 // pred_check_branch
    %22 = sbr.rel (0) target = $region13
  $region12: #{neural_net_forward.1} parent=0 // pred_region
    _
  $region13: #{neural_net_forward.1} parent=0 // pred_fallthru
    _
  // Predicated region
  $region14: #{neural_net_forward.1} parent=0 // pred_check
    _
  $region15: #{neural_net_forward.1} parent=0 // pred_check_branch
    %24 = sbr.rel (0) target = $region17
  $region16: #{neural_net_forward.1} parent=0 // pred_region
    _
  $region17: #{neural_net_forward.1} parent=0 // pred_fallthru
    _
  // Predicated region
  $region18: #{neural_net_forward.1} parent=0 // pred_check
    _
  $region19: #{neural_net_forward.1} parent=0 // pred_check_branch
    %26 = sbr.rel (0) target = $region21
  $region20: #{neural_net_forward.1} parent=0 // pred_region
    _
  $region21: #{neural_net_forward.1} parent=0 // pred_fallthru
    _
  // Predicated region
  $region22: #{neural_net_forward.1} parent=0 // pred_check
    _
  $region23: #{neural_net_forward.1} parent=0 // pred_check_branch
    %28 = sbr.rel (0) target = $region25
  $region24: #{neural_net_forward.1} parent=0 // pred_region
    _
  $region25: #{neural_net_forward.1} parent=0 // pred_fallthru
    _
  // Predicated region
  $region26: #{neural_net_forward.1} parent=0 // pred_check
    _
  $region27: #{neural_net_forward.1} parent=0 // pred_check_branch
    %30 = sbr.rel (0) target = $region29
  $region28: #{neural_net_forward.1} parent=0 // pred_region
    _
  $region29: #{neural_net_forward.1} parent=0 // pred_fallthru
    _
  // Predicated region
  $region30: #{neural_net_forward.1} parent=0 // pred_check
    _
  $region31: #{neural_net_forward.1} parent=0 // pred_check_branch
    %32 = sbr.rel (0) target = $region33
  $region32: #{neural_net_forward.1} parent=0 // pred_region
    _
  $region33: #{neural_net_forward.1} parent=0 // pred_fallthru
    _
  // Predicated region
  $region34: #{neural_net_forward.1} parent=0 // pred_check
    _
  $region35: #{neural_net_forward.1} parent=0 // pred_check_branch
    %34 = sbr.rel (0) target = $region37
  $region36: #{neural_net_forward.1} parent=0 // pred_region
    _
  $region37: #{neural_net_forward.1} parent=0 // pred_fallthru
    _
  // Predicated region
  $region38: #{neural_net_forward.1} parent=0 // pred_check
    _
  $region39: #{neural_net_forward.1} parent=0 // pred_check_branch
    %36 = sbr.rel (0) target = $region41
  $region40: #{neural_net_forward.1} parent=0 // pred_region
    _
  $region41: #{neural_net_forward.1} parent=0 // pred_fallthru
    _
  %v37 = vld [vmem:[%s0] sm:$0xff]
  %v38 = vld [vmem:[%s0 + $0x8] sm:$0xff]
  %v39 = vld [vmem:[%s1] sm:$0xff]
  %v40 = vld [vmem:[%s1 + $0x8] sm:$0xff]
  %v41 = vld [vmem:[%s1 + $0x10] sm:$0xff]
  %v42 = vld [vmem:[%s1 + $0x18] sm:$0xff]
  %v43 = vld [vmem:[%s1 + $0x20] sm:$0xff]
  %v44 = vld [vmem:[%s1 + $0x28] sm:$0xff]
  %v45 = vld [vmem:[%s1 + $0x30] sm:$0xff]
  %v46 = vld [vmem:[%s1 + $0x38] sm:$0xff]
  %v47 = vld [vmem:[%s1 + $0x40] sm:$0xff]
  %v48 = vld [vmem:[%s1 + $0x48] sm:$0xff]
  %v49 = vld [vmem:[%s1 + $0x50] sm:$0xff]
  %v50 = vld [vmem:[%s1 + $0x58] sm:$0xff]
  %v51 = vld [vmem:[%s1 + $0x60] sm:$0xff]
  %v52 = vld [vmem:[%s1 + $0x68] sm:$0xff]
  %v53 = vld [vmem:[%s1 + $0x70] sm:$0xff]
  %v54 = vld [vmem:[%s1 + $0x78] sm:$0xff]
  %vm55 = vcmask 523264
  %v57 = vsel %vm55, %v37, 0
  %v60 = vsel %vm55, %v38, 0
  %62 = vmatpush.msra.mxu0 0.0
  %63 = vmatpush.msra.mxu0 0.0
  %64 = vmatpush.msra.mxu0 0.0
  %65 = vmatpush.msra.mxu0 0.0
  %66 = vmatpush.msra.mxu0 0.0
  %67 = vmatpush.msra.mxu0 0.0
  %68 = vmatpush.msra.mxu0 0.0
  %69 = vmatpush.msra.mxu0 0.0
  %70 = vmatpush.msra.mxu0 %v53
  %71 = vmatpush.msra.mxu0 %v51
  %72 = vmatpush.msra.mxu0 %v49
  %73 = vmatpush.msra.mxu0 %v47
  %74 = vmatpush.msra.mxu0 %v45
  %75 = vmatpush.msra.mxu0 %v43
  %76 = vmatpush.msra.mxu0 %v41
  %77 = vmatpush.msra.mxu0 %v39
  %78 = vmatmul.f32.gmra.mxu0 %v57
  %v79 = vpop.f32.mrf.mxu0
  %v80 = vadd.f32 0.0, %v79
  %81 = vmatmul.f32.gmra.mxu0 %v60
  %v82 = vpop.f32.mrf.mxu0
  %v83 = vadd.f32 0.0, %v82
  %84 = vdwg.mxu0
  %85 = vmatpush.msra.mxu0 0.0
  %86 = vmatpush.msra.mxu0 0.0
  %87 = vmatpush.msra.mxu0 0.0
  %88 = vmatpush.msra.mxu0 0.0
  %89 = vmatpush.msra.mxu0 0.0
  %90 = vmatpush.msra.mxu0 0.0
  %91 = vmatpush.msra.mxu0 0.0
  %92 = vmatpush.msra.mxu0 0.0
  %93 = vmatpush.msra.mxu0 %v54
  %94 = vmatpush.msra.mxu0 %v52
  %95 = vmatpush.msra.mxu0 %v50
  %96 = vmatpush.msra.mxu0 %v48
  %97 = vmatpush.msra.mxu0 %v46
  %98 = vmatpush.msra.mxu0 %v44
  %99 = vmatpush.msra.mxu0 %v42
  %100 = vmatpush.msra.mxu0 %v40
  %101 = vmatmul.f32.gmra.mxu0 %v57
  %v102 = vpop.f32.mrf.mxu0
  %v103 = vadd.f32 0.0, %v102
  %104 = vmatmul.f32.gmra.mxu0 %v60
  %v105 = vpop.f32.mrf.mxu0
  %v106 = vadd.f32 0.0, %v105
  %107 = vdwg.mxu0
  %108 = vst [vmem:[#allocation2] sm:$0xff] %v80
  %109 = vst [vmem:[#allocation2 + $0x8] sm:$0xff] %v103
  %110 = vst [vmem:[#allocation2 + $0x10] sm:$0xff] %v83
  %111 = vst [vmem:[#allocation2 + $0x18] sm:$0xff] %v106
  %vm112 = vcmask 257024
  %113 = vst.msk [vmem:[#allocation5] sm:$0xf] %vm112, 0.0
  %114 = vst.msk [vmem:[#allocation6] sm:$0xf] %vm112, 0.0
  %v115 = vld [vmem:[%s2] sm:$0xff]
  %v116 = vld [vmem:[%s2 + $0x8] sm:$0xff]
  %v117 = vld [vmem:[%s2 + $0x10] sm:$0xff]
  %v118 = vld [vmem:[%s2 + $0x18] sm:$0xff]
  %v119 = vld [vmem:[%s2 + $0x20] sm:$0xff]
  %v120 = vld [vmem:[%s2 + $0x28] sm:$0xff]
  %v121 = vld [vmem:[%s2 + $0x30] sm:$0xff]
  %v122 = vld [vmem:[%s2 + $0x38] sm:$0xff]
  %v123 = vld [vmem:[#allocation5] sm:$0xf]
  %v124 = vld [vmem:[#allocation6] sm:$0xf]
  %vm125 = vcmask 261120
  %v127 = vsel %vm125, %v123, 0
  %129 = vmatpush.msra.mxu0 0.0
  %130 = vmatpush.msra.mxu0 0.0
  %131 = vmatpush.msra.mxu0 0.0
  %132 = vmatpush.msra.mxu0 0.0
  %133 = vmatpush.msra.mxu0 0.0
  %134 = vmatpush.msra.mxu0 0.0
  %135 = vmatpush.msra.mxu0 0.0
  %136 = vmatpush.msra.mxu0 0.0
  %137 = vmatpush.msra.mxu0 0.0
  %138 = vmatpush.msra.mxu0 0.0
  %139 = vmatpush.msra.mxu0 0.0
  %140 = vmatpush.msra.mxu0 0.0
  %141 = vmatpush.msra.mxu0 %v121
  %142 = vmatpush.msra.mxu0 %v119
  %143 = vmatpush.msra.mxu0 %v117
  %144 = vmatpush.msra.mxu0 %v115
  %145 = vmatmul.f32.gmra.mxu0 %v127
  %v146 = vpop.f32.mrf.mxu0
  %v147 = vadd.f32 0.0, %v146
  %148 = vdwg.mxu0
  %149 = vmatpush.msra.mxu0 0.0
  %150 = vmatpush.msra.mxu0 0.0
  %151 = vmatpush.msra.mxu0 0.0
  %152 = vmatpush.msra.mxu0 0.0
  %153 = vmatpush.msra.mxu0 0.0
  %154 = vmatpush.msra.mxu0 0.0
  %155 = vmatpush.msra.mxu0 0.0
  %156 = vmatpush.msra.mxu0 0.0
  %157 = vmatpush.msra.mxu0 0.0
  %158 = vmatpush.msra.mxu0 0.0
  %159 = vmatpush.msra.mxu0 0.0
  %160 = vmatpush.msra.mxu0 0.0
  %161 = vmatpush.msra.mxu0 %v122
  %162 = vmatpush.msra.mxu0 %v120
  %163 = vmatpush.msra.mxu0 %v118
  %164 = vmatpush.msra.mxu0 %v116
  %165 = vmatmul.f32.gmra.mxu0 %v127
  %v166 = vpop.f32.mrf.mxu0
  %v167 = vadd.f32 0.0, %v166
  %168 = vdwg.mxu0
  %v169 = vld [vmem:[#allocation2] sm:$0x3]
  %v170 = vadd.f32 %v169, %v147
  %v171 = vld [vmem:[#allocation2 + $0x18] sm:$0xc0]
  %v173 = vrot.slane %v167, 4
  %v175 = vadd.f32 %v171, %v173
  %v176 = vxor.u32 %v170, 2147483648
  %v177 = vmul.f32 %v176, 1.442695
  %v178 = vpow.pop %v177
  %v179 = vadd.f32 %v178, 1.0
  %v180 = vrcp.pop %v179
  %v181 = vmul.f32 %v179, %v180
  %v182 = vsub.f32 1.0, %v181
  %v183 = vmul.f32 %v180, %v182
  %v184 = vadd.f32 %v180, %v183
  %vm185 = vweird.f32 %v179
  %vm186 = vweird.f32 %v180
  %vm187 = vmor %vm185, %vm186
  %v188 = vsel %vm187, %v180, %v184
  %v189 = vand.u32 2147483647, %v179
  %vm190 = vcmp.eq.f32.partialorder %v189, 8.507059e+37
  %v191 = vand.u32 %v179, 2147483648
  %v192 = vor.u32 1.1754944e-38, %v191
  %v193 = vsel %vm190, %v192, %v188
  %v194 = vmul.f32 1.0, %v193
  %v195 = vtanh.pop %v170
  %197 = vrot.lane.b32.xlu0 %v124, 32
  %v198 = vpop.permute.xlu0 %197
  %v200 = vmul.f32 %v194, %v198
  %202 = vrot.lane.b32.xlu0 %v195, 64
  %v203 = vpop.permute.xlu0 %202
  %v205 = vmul.f32 %v194, %v203
  %207 = vrot.lane.b32.xlu0 %v205, 32
  %v208 = vpop.permute.xlu0 %207
  %v210 = vadd.f32 %v200, %v208
  %v211 = vtanh.pop %v210
  %213 = vrot.lane.b32.xlu0 %v211, 64
  %v214 = vpop.permute.xlu0 %213
  %v216 = vmul.f32 %v194, %v214
  %v217 = vxor.u32 %v175, 2147483648
  %v218 = vmul.f32 %v217, 1.442695
  %v219 = vpow.pop %v218
  %v220 = vadd.f32 %v219, 1.0
  %v221 = vrcp.pop %v220
  %v222 = vmul.f32 %v220, %v221
  %v223 = vsub.f32 1.0, %v222
  %v224 = vmul.f32 %v221, %v223
  %v225 = vadd.f32 %v221, %v224
  %vm226 = vweird.f32 %v220
  %vm227 = vweird.f32 %v221
  %vm228 = vmor %vm226, %vm227
  %v229 = vsel %vm228, %v221, %v225
  %v230 = vand.u32 2147483647, %v220
  %vm231 = vcmp.eq.f32.partialorder %v230, 8.507059e+37
  %v232 = vand.u32 %v220, 2147483648
  %v233 = vor.u32 1.1754944e-38, %v232
  %v234 = vsel %vm231, %v233, %v229
  %v235 = vmul.f32 1.0, %v234
  %v236 = vtanh.pop %v175
  %v237 = vrot.slane %v124, 4
  %238 = vrot.lane.b32.xlu0 %v237, 32
  %v239 = vpop.permute.xlu0 %238
  %v241 = vmul.f32 %v235, %v239
  %243 = vrot.lane.b32.xlu0 %v236, 64
  %v244 = vpop.permute.xlu0 %243
  %v246 = vmul.f32 %v235, %v244
  %248 = vrot.lane.b32.xlu0 %v246, 32
  %v249 = vpop.permute.xlu0 %248
  %v251 = vadd.f32 %v241, %v249
  %v252 = vtanh.pop %v251
  %254 = vrot.lane.b32.xlu0 %v252, 64
  %v255 = vpop.permute.xlu0 %254
  %v257 = vmul.f32 %v235, %v255
  %259 = vrot.lane.b32.xlu0 %v216, 32
  %v260 = vpop.permute.xlu0 %259
  %vm262 = vcmask 254976
  %263 = vst.msk [vmem:[#allocation3] sm:$0x3] %vm262, %v260
  %265 = vrot.lane.b32.xlu0 %v257, 64
  %v266 = vpop.permute.xlu0 %265
  %vm268 = vcmask 523526
  %269 = vst.msk [vmem:[#allocation3 + $0x8] sm:$0xc0] %vm268, %v266
  %270 = vst.msk [vmem:[#allocation5] sm:$0x3] %vm262, %v260
  %271 = vrot.lane.b32.xlu0 %v257, 32
  %v272 = vpop.permute.xlu0 %271
  %vm274 = vcmask 261126
  %275 = vst.msk [vmem:[#allocation5 - $0x4] sm:$0xc0] %vm274, %v272
  %277 = vrot.lane.b32.xlu0 %v210, 96
  %v278 = vpop.permute.xlu0 %277
  %280 = vst.msk [vmem:[#allocation6] sm:$0x3] %vm262, %v278
  %282 = vrot.lane.b32.xlu0 %v251, 96
  %v283 = vpop.permute.xlu0 %282
  %285 = vst.msk [vmem:[#allocation6 - $0x4] sm:$0xc0] %vm274, %v283
  %v286 = vld [vmem:[#allocation5] sm:$0xf]
  %v287 = vld [vmem:[#allocation6] sm:$0xf]
  %v289 = vsel %vm125, %v286, 0
  %291 = vmatpush.msra.mxu0 0.0
  %292 = vmatpush.msra.mxu0 0.0
  %293 = vmatpush.msra.mxu0 0.0
  %294 = vmatpush.msra.mxu0 0.0
  %295 = vmatpush.msra.mxu0 0.0
  %296 = vmatpush.msra.mxu0 0.0
  %297 = vmatpush.msra.mxu0 0.0
  %298 = vmatpush.msra.mxu0 0.0
  %299 = vmatpush.msra.mxu0 0.0
  %300 = vmatpush.msra.mxu0 0.0
  %301 = vmatpush.msra.mxu0 0.0
  %302 = vmatpush.msra.mxu0 0.0
  %303 = vmatpush.msra.mxu0 %v121
  %304 = vmatpush.msra.mxu0 %v119
  %305 = vmatpush.msra.mxu0 %v117
  %306 = vmatpush.msra.mxu0 %v115
  %307 = vmatmul.f32.gmra.mxu0 %v289
  %v308 = vpop.f32.mrf.mxu0
  %v309 = vadd.f32 0.0, %v308
  %310 = vdwg.mxu0
  %311 = vmatpush.msra.mxu0 0.0
  %312 = vmatpush.msra.mxu0 0.0
  %313 = vmatpush.msra.mxu0 0.0
  %314 = vmatpush.msra.mxu0 0.0
  %315 = vmatpush.msra.mxu0 0.0
  %316 = vmatpush.msra.mxu0 0.0
  %317 = vmatpush.msra.mxu0 0.0
  %318 = vmatpush.msra.mxu0 0.0
  %319 = vmatpush.msra.mxu0 0.0
  %320 = vmatpush.msra.mxu0 0.0
  %321 = vmatpush.msra.mxu0 0.0
  %322 = vmatpush.msra.mxu0 0.0
  %323 = vmatpush.msra.mxu0 %v122
  %324 = vmatpush.msra.mxu0 %v120
  %325 = vmatpush.msra.mxu0 %v118
  %326 = vmatpush.msra.mxu0 %v116
  %327 = vmatmul.f32.gmra.mxu0 %v289
  %v328 = vpop.f32.mrf.mxu0
  %v329 = vadd.f32 0.0, %v328
  %330 = vdwg.mxu0
  %v331 = vld [vmem:[#allocation2] sm:$0xc]
  %v333 = vrot.slane %v309, 6
  %v335 = vadd.f32 %v331, %v333
  %v336 = vld [vmem:[#allocation2 + $0x18] sm:$0x30]
  %v338 = vrot.slane %v329, 6
  %v340 = vadd.f32 %v336, %v338
  %v341 = vxor.u32 %v335, 2147483648
  %v342 = vmul.f32 %v341, 1.442695
  %v343 = vpow.pop %v342
  %v344 = vadd.f32 %v343, 1.0
  %v345 = vrcp.pop %v344
  %v346 = vmul.f32 %v344, %v345
  %v347 = vsub.f32 1.0, %v346
  %v348 = vmul.f32 %v345, %v347
  %v349 = vadd.f32 %v345, %v348
  %vm350 = vweird.f32 %v344
  %vm351 = vweird.f32 %v345
  %vm352 = vmor %vm350, %vm351
  %v353 = vsel %vm352, %v345, %v349
  %v354 = vand.u32 2147483647, %v344
  %vm355 = vcmp.eq.f32.partialorder %v354, 8.507059e+37
  %v356 = vand.u32 %v344, 2147483648
  %v357 = vor.u32 1.1754944e-38, %v356
  %v358 = vsel %vm355, %v357, %v353
  %v359 = vmul.f32 1.0, %v358
  %v360 = vtanh.pop %v335
  %v362 = vrot.slane %v287, 6
  %363 = vrot.lane.b32.xlu0 %v362, 32
  %v364 = vpop.permute.xlu0 %363
  %v366 = vmul.f32 %v359, %v364
  %368 = vrot.lane.b32.xlu0 %v360, 64
  %v369 = vpop.permute.xlu0 %368
  %v371 = vmul.f32 %v359, %v369
  %373 = vrot.lane.b32.xlu0 %v371, 32
  %v374 = vpop.permute.xlu0 %373
  %v376 = vadd.f32 %v366, %v374
  %v377 = vtanh.pop %v376
  %379 = vrot.lane.b32.xlu0 %v377, 64
  %v380 = vpop.permute.xlu0 %379
  %v382 = vmul.f32 %v359, %v380
  %v383 = vxor.u32 %v340, 2147483648
  %v384 = vmul.f32 %v383, 1.442695
  %v385 = vpow.pop %v384
  %v386 = vadd.f32 %v385, 1.0
  %v387 = vrcp.pop %v386
  %v388 = vmul.f32 %v386, %v387
  %v389 = vsub.f32 1.0, %v388
  %v390 = vmul.f32 %v387, %v389
  %v391 = vadd.f32 %v387, %v390
  %vm392 = vweird.f32 %v386
  %vm393 = vweird.f32 %v387
  %vm394 = vmor %vm392, %vm393
  %v395 = vsel %vm394, %v387, %v391
  %v396 = vand.u32 2147483647, %v386
  %vm397 = vcmp.eq.f32.partialorder %v396, 8.507059e+37
  %v398 = vand.u32 %v386, 2147483648
  %v399 = vor.u32 1.1754944e-38, %v398
  %v400 = vsel %vm397, %v399, %v395
  %v401 = vmul.f32 1.0, %v400
  %v402 = vtanh.pop %v340
  %v403 = vmul.f32 %v401, %v364
  %405 = vrot.lane.b32.xlu0 %v402, 64
  %v406 = vpop.permute.xlu0 %405
  %v408 = vmul.f32 %v401, %v406
  %410 = vrot.lane.b32.xlu0 %v408, 32
  %v411 = vpop.permute.xlu0 %410
  %v413 = vadd.f32 %v403, %v411
  %v414 = vtanh.pop %v413
  %416 = vrot.lane.b32.xlu0 %v414, 64
  %v417 = vpop.permute.xlu0 %416
  %v419 = vmul.f32 %v401, %v417
  %421 = vrot.lane.b32.xlu0 %v382, 32
  %v422 = vpop.permute.xlu0 %421
  %vm424 = vcmask 257026
  %425 = vst.msk [vmem:[#allocation3] sm:$0xc] %vm424, %v422
  %427 = vrot.lane.b32.xlu0 %v419, 64
  %v428 = vpop.permute.xlu0 %427
  %vm430 = vcmask 521476
  %431 = vst.msk [vmem:[#allocation3 + $0x8] sm:$0x30] %vm430, %v428
  %432 = vst.msk [vmem:[#allocation5 - $0x2] sm:$0xc] %vm424, %v422
  %433 = vrot.lane.b32.xlu0 %v419, 32
  %v434 = vpop.permute.xlu0 %433
  %vm436 = vcmask 259076
  %437 = vst.msk [vmem:[#allocation5 - $0x2] sm:$0x30] %vm436, %v434
  %439 = vrot.lane.b32.xlu0 %v376, 96
  %v440 = vpop.permute.xlu0 %439
  %442 = vst.msk [vmem:[#allocation6 - $0x2] sm:$0xc] %vm424, %v440
  %444 = vrot.lane.b32.xlu0 %v413, 96
  %v445 = vpop.permute.xlu0 %444
  %447 = vst.msk [vmem:[#allocation6 - $0x2] sm:$0x30] %vm436, %v445
  %v448 = vld [vmem:[#allocation5] sm:$0xf]
  %v449 = vld [vmem:[#allocation6] sm:$0xf]
  %v451 = vsel %vm125, %v448, 0
  %453 = vmatpush.msra.mxu0 0.0
  %454 = vmatpush.msra.mxu0 0.0
  %455 = vmatpush.msra.mxu0 0.0
  %456 = vmatpush.msra.mxu0 0.0
  %457 = vmatpush.msra.mxu0 0.0
  %458 = vmatpush.msra.mxu0 0.0
  %459 = vmatpush.msra.mxu0 0.0
  %460 = vmatpush.msra.mxu0 0.0
  %461 = vmatpush.msra.mxu0 0.0
  %462 = vmatpush.msra.mxu0 0.0
  %463 = vmatpush.msra.mxu0 0.0
  %464 = vmatpush.msra.mxu0 0.0
  %465 = vmatpush.msra.mxu0 %v121
  %466 = vmatpush.msra.mxu0 %v119
  %467 = vmatpush.msra.mxu0 %v117
  %468 = vmatpush.msra.mxu0 %v115
  %469 = vmatmul.f32.gmra.mxu0 %v451
  %v470 = vpop.f32.mrf.mxu0
  %v471 = vadd.f32 0.0, %v470
  %472 = vdwg.mxu0
  %473 = vmatpush.msra.mxu0 0.0
  %474 = vmatpush.msra.mxu0 0.0
  %475 = vmatpush.msra.mxu0 0.0
  %476 = vmatpush.msra.mxu0 0.0
  %477 = vmatpush.msra.mxu0 0.0
  %478 = vmatpush.msra.mxu0 0.0
  %479 = vmatpush.msra.mxu0 0.0
  %480 = vmatpush.msra.mxu0 0.0
  %481 = vmatpush.msra.mxu0 0.0
  %482 = vmatpush.msra.mxu0 0.0
  %483 = vmatpush.msra.mxu0 0.0
  %484 = vmatpush.msra.mxu0 0.0
  %485 = vmatpush.msra.mxu0 %v122
  %486 = vmatpush.msra.mxu0 %v120
  %487 = vmatpush.msra.mxu0 %v118
  %488 = vmatpush.msra.mxu0 %v116
  %489 = vmatmul.f32.gmra.mxu0 %v451
  %v490 = vpop.f32.mrf.mxu0
  %v491 = vadd.f32 0.0, %v490
  %492 = vdwg.mxu0
  %v493 = vld [vmem:[#allocation2] sm:$0x30]
  %v495 = vrot.slane %v471, 4
  %v497 = vadd.f32 %v493, %v495
  %v498 = vld [vmem:[#allocation2 + $0x18] sm:$0xc]
  %v499 = vadd.f32 %v498, %v491
  %v500 = vxor.u32 %v497, 2147483648
  %v501 = vmul.f32 %v500, 1.442695
  %v502 = vpow.pop %v501
  %v503 = vadd.f32 %v502, 1.0
  %v504 = vrcp.pop %v503
  %v505 = vmul.f32 %v503, %v504
  %v506 = vsub.f32 1.0, %v505
  %v507 = vmul.f32 %v504, %v506
  %v508 = vadd.f32 %v504, %v507
  %vm509 = vweird.f32 %v503
  %vm510 = vweird.f32 %v504
  %vm511 = vmor %vm509, %vm510
  %v512 = vsel %vm511, %v504, %v508
  %v513 = vand.u32 2147483647, %v503
  %vm514 = vcmp.eq.f32.partialorder %v513, 8.507059e+37
  %v515 = vand.u32 %v503, 2147483648
  %v516 = vor.u32 1.1754944e-38, %v515
  %v517 = vsel %vm514, %v516, %v512
  %v518 = vmul.f32 1.0, %v517
  %v519 = vtanh.pop %v497
  %v521 = vrot.slane %v449, 4
  %522 = vrot.lane.b32.xlu0 %v521, 32
  %v523 = vpop.permute.xlu0 %522
  %v525 = vmul.f32 %v518, %v523
  %527 = vrot.lane.b32.xlu0 %v519, 64
  %v528 = vpop.permute.xlu0 %527
  %v530 = vmul.f32 %v518, %v528
  %532 = vrot.lane.b32.xlu0 %v530, 32
  %v533 = vpop.permute.xlu0 %532
  %v535 = vadd.f32 %v525, %v533
  %v536 = vtanh.pop %v535
  %538 = vrot.lane.b32.xlu0 %v536, 64
  %v539 = vpop.permute.xlu0 %538
  %v541 = vmul.f32 %v518, %v539
  %v542 = vxor.u32 %v499, 2147483648
  %v543 = vmul.f32 %v542, 1.442695
  %v544 = vpow.pop %v543
  %v545 = vadd.f32 %v544, 1.0
  %v546 = vrcp.pop %v545
  %v547 = vmul.f32 %v545, %v546
  %v548 = vsub.f32 1.0, %v547
  %v549 = vmul.f32 %v546, %v548
  %v550 = vadd.f32 %v546, %v549
  %vm551 = vweird.f32 %v545
  %vm552 = vweird.f32 %v546
  %vm553 = vmor %vm551, %vm552
  %v554 = vsel %vm553, %v546, %v550
  %v555 = vand.u32 2147483647, %v545
  %vm556 = vcmp.eq.f32.partialorder %v555, 8.507059e+37
  %v557 = vand.u32 %v545, 2147483648
  %v558 = vor.u32 1.1754944e-38, %v557
  %v559 = vsel %vm556, %v558, %v554
  %v560 = vmul.f32 1.0, %v559
  %v561 = vtanh.pop %v499
  %562 = vrot.lane.b32.xlu0 %v449, 32
  %v563 = vpop.permute.xlu0 %562
  %v565 = vmul.f32 %v560, %v563
  %567 = vrot.lane.b32.xlu0 %v561, 64
  %v568 = vpop.permute.xlu0 %567
  %v570 = vmul.f32 %v560, %v568
  %572 = vrot.lane.b32.xlu0 %v570, 32
  %v573 = vpop.permute.xlu0 %572
  %v575 = vadd.f32 %v565, %v573
  %v576 = vtanh.pop %v575
  %578 = vrot.lane.b32.xlu0 %v576, 64
  %v579 = vpop.permute.xlu0 %578
  %v581 = vmul.f32 %v560, %v579
  %583 = vrot.lane.b32.xlu0 %v541, 32
  %v584 = vpop.permute.xlu0 %583
  %586 = vst.msk [vmem:[#allocation3] sm:$0x30] %vm436, %v584
  %588 = vrot.lane.b32.xlu0 %v581, 64
  %v589 = vpop.permute.xlu0 %588
  %vm591 = vcmask 519426
  %592 = vst.msk [vmem:[#allocation3 + $0x8] sm:$0xc] %vm591, %v589
  %593 = vst.msk [vmem:[#allocation5 - $0x4] sm:$0x30] %vm436, %v584
  %594 = vrot.lane.b32.xlu0 %v581, 32
  %v595 = vpop.permute.xlu0 %594
  %597 = vst.msk [vmem:[#allocation5] sm:$0xc] %vm424, %v595
  %599 = vrot.lane.b32.xlu0 %v535, 96
  %v600 = vpop.permute.xlu0 %599
  %602 = vst.msk [vmem:[#allocation6 - $0x4] sm:$0x30] %vm436, %v600
  %604 = vrot.lane.b32.xlu0 %v575, 96
  %v605 = vpop.permute.xlu0 %604
  %607 = vst.msk [vmem:[#allocation6] sm:$0xc] %vm424, %v605
  %v608 = vld [vmem:[#allocation5] sm:$0xf]
  %v609 = vld [vmem:[#allocation6] sm:$0xf]
  %v611 = vsel %vm125, %v608, 0
  %613 = vmatpush.msra.mxu0 0.0
  %614 = vmatpush.msra.mxu0 0.0
  %615 = vmatpush.msra.mxu0 0.0
  %616 = vmatpush.msra.mxu0 0.0
  %617 = vmatpush.msra.mxu0 0.0
  %618 = vmatpush.msra.mxu0 0.0
  %619 = vmatpush.msra.mxu0 0.0
  %620 = vmatpush.msra.mxu0 0.0
  %621 = vmatpush.msra.mxu0 0.0
  %622 = vmatpush.msra.mxu0 0.0
  %623 = vmatpush.msra.mxu0 0.0
  %624 = vmatpush.msra.mxu0 0.0
  %625 = vmatpush.msra.mxu0 %v121
  %626 = vmatpush.msra.mxu0 %v119
  %627 = vmatpush.msra.mxu0 %v117
  %628 = vmatpush.msra.mxu0 %v115
  %629 = vmatmul.f32.gmra.mxu0 %v611
  %v630 = vpop.f32.mrf.mxu0
  %v631 = vadd.f32 0.0, %v630
  %632 = vdwg.mxu0
  %633 = vmatpush.msra.mxu0 0.0
  %634 = vmatpush.msra.mxu0 0.0
  %635 = vmatpush.msra.mxu0 0.0
  %636 = vmatpush.msra.mxu0 0.0
  %637 = vmatpush.msra.mxu0 0.0
  %638 = vmatpush.msra.mxu0 0.0
  %639 = vmatpush.msra.mxu0 0.0
  %640 = vmatpush.msra.mxu0 0.0
  %641 = vmatpush.msra.mxu0 0.0
  %642 = vmatpush.msra.mxu0 0.0
  %643 = vmatpush.msra.mxu0 0.0
  %644 = vmatpush.msra.mxu0 0.0
  %645 = vmatpush.msra.mxu0 %v122
  %646 = vmatpush.msra.mxu0 %v120
  %647 = vmatpush.msra.mxu0 %v118
  %648 = vmatpush.msra.mxu0 %v116
  %649 = vmatmul.f32.gmra.mxu0 %v611
  %v650 = vpop.f32.mrf.mxu0
  %v651 = vadd.f32 0.0, %v650
  %652 = vdwg.mxu0
  %v653 = vld [vmem:[#allocation2] sm:$0xc0]
  %v655 = vrot.slane %v631, 2
  %v657 = vadd.f32 %v653, %v655
  %v658 = vld [vmem:[#allocation2 + $0x18] sm:$0x3]
  %v660 = vrot.slane %v651, 2
  %v662 = vadd.f32 %v658, %v660
  %v663 = vxor.u32 %v657, 2147483648
  %v664 = vmul.f32 %v663, 1.442695
  %v665 = vpow.pop %v664
  %v666 = vadd.f32 %v665, 1.0
  %v667 = vrcp.pop %v666
  %v668 = vmul.f32 %v666, %v667
  %v669 = vsub.f32 1.0, %v668
  %v670 = vmul.f32 %v667, %v669
  %v671 = vadd.f32 %v667, %v670
  %vm672 = vweird.f32 %v666
  %vm673 = vweird.f32 %v667
  %vm674 = vmor %vm672, %vm673
  %v675 = vsel %vm674, %v667, %v671
  %v676 = vand.u32 2147483647, %v666
  %vm677 = vcmp.eq.f32.partialorder %v676, 8.507059e+37
  %v678 = vand.u32 %v666, 2147483648
  %v679 = vor.u32 1.1754944e-38, %v678
  %v680 = vsel %vm677, %v679, %v675
  %v681 = vmul.f32 1.0, %v680
  %v682 = vtanh.pop %v657
  %v684 = vrot.slane %v609, 2
  %685 = vrot.lane.b32.xlu0 %v684, 32
  %v686 = vpop.permute.xlu0 %685
  %v688 = vmul.f32 %v681, %v686
  %690 = vrot.lane.b32.xlu0 %v682, 64
  %v691 = vpop.permute.xlu0 %690
  %v693 = vmul.f32 %v681, %v691
  %695 = vrot.lane.b32.xlu0 %v693, 32
  %v696 = vpop.permute.xlu0 %695
  %v698 = vadd.f32 %v688, %v696
  %v699 = vtanh.pop %v698
  %701 = vrot.lane.b32.xlu0 %v699, 64
  %v702 = vpop.permute.xlu0 %701
  %v704 = vmul.f32 %v681, %v702
  %v705 = vxor.u32 %v662, 2147483648
  %v706 = vmul.f32 %v705, 1.442695
  %v707 = vpow.pop %v706
  %v708 = vadd.f32 %v707, 1.0
  %v709 = vrcp.pop %v708
  %v710 = vmul.f32 %v708, %v709
  %v711 = vsub.f32 1.0, %v710
  %v712 = vmul.f32 %v709, %v711
  %v713 = vadd.f32 %v709, %v712
  %vm714 = vweird.f32 %v708
  %vm715 = vweird.f32 %v709
  %vm716 = vmor %vm714, %vm715
  %v717 = vsel %vm716, %v709, %v713
  %v718 = vand.u32 2147483647, %v708
  %vm719 = vcmp.eq.f32.partialorder %v718, 8.507059e+37
  %v720 = vand.u32 %v708, 2147483648
  %v721 = vor.u32 1.1754944e-38, %v720
  %v722 = vsel %vm719, %v721, %v717
  %v723 = vmul.f32 1.0, %v722
  %v724 = vtanh.pop %v662
  %v725 = vmul.f32 %v723, %v686
  %727 = vrot.lane.b32.xlu0 %v724, 64
  %v728 = vpop.permute.xlu0 %727
  %v730 = vmul.f32 %v723, %v728
  %732 = vrot.lane.b32.xlu0 %v730, 32
  %v733 = vpop.permute.xlu0 %732
  %v735 = vadd.f32 %v725, %v733
  %v736 = vtanh.pop %v735
  %738 = vrot.lane.b32.xlu0 %v736, 64
  %v739 = vpop.permute.xlu0 %738
  %v741 = vmul.f32 %v723, %v739
  %743 = vrot.lane.b32.xlu0 %v704, 32
  %v744 = vpop.permute.xlu0 %743
  %746 = vst.msk [vmem:[#allocation3] sm:$0xc0] %vm274, %v744
  %748 = vrot.lane.b32.xlu0 %v741, 64
  %v749 = vpop.permute.xlu0 %748
  %vm751 = vcmask 517376
  %752 = vst.msk [vmem:[#allocation3 + $0x8] sm:$0x3] %vm751, %v749
  %753 = vst.msk [vmem:[#allocation5 - $0x6] sm:$0xc0] %vm274, %v744
  %754 = vrot.lane.b32.xlu0 %v741, 32
  %v755 = vpop.permute.xlu0 %754
  %757 = vst.msk [vmem:[#allocation5 + $0x2] sm:$0x3] %vm262, %v755
  %759 = vrot.lane.b32.xlu0 %v698, 96
  %v760 = vpop.permute.xlu0 %759
  %762 = vst.msk [vmem:[#allocation6 - $0x6] sm:$0xc0] %vm274, %v760
  %764 = vrot.lane.b32.xlu0 %v735, 96
  %v765 = vpop.permute.xlu0 %764
  %767 = vst.msk [vmem:[#allocation6 + $0x2] sm:$0x3] %vm262, %v765
  %v768 = vld [vmem:[#allocation5] sm:$0xf]
  %v769 = vld [vmem:[#allocation6] sm:$0xf]
  %v771 = vsel %vm125, %v768, 0
  %773 = vmatpush.msra.mxu0 0.0
  %774 = vmatpush.msra.mxu0 0.0
  %775 = vmatpush.msra.mxu0 0.0
  %776 = vmatpush.msra.mxu0 0.0
  %777 = vmatpush.msra.mxu0 0.0
  %778 = vmatpush.msra.mxu0 0.0
  %779 = vmatpush.msra.mxu0 0.0
  %780 = vmatpush.msra.mxu0 0.0
  %781 = vmatpush.msra.mxu0 0.0
  %782 = vmatpush.msra.mxu0 0.0
  %783 = vmatpush.msra.mxu0 0.0
  %784 = vmatpush.msra.mxu0 0.0
  %785 = vmatpush.msra.mxu0 %v121
  %786 = vmatpush.msra.mxu0 %v119
  %787 = vmatpush.msra.mxu0 %v117
  %788 = vmatpush.msra.mxu0 %v115
  %789 = vmatmul.f32.gmra.mxu0 %v771
  %v790 = vpop.f32.mrf.mxu0
  %v791 = vadd.f32 0.0, %v790
  %792 = vdwg.mxu0
  %793 = vmatpush.msra.mxu0 0.0
  %794 = vmatpush.msra.mxu0 0.0
  %795 = vmatpush.msra.mxu0 0.0
  %796 = vmatpush.msra.mxu0 0.0
  %797 = vmatpush.msra.mxu0 0.0
  %798 = vmatpush.msra.mxu0 0.0
  %799 = vmatpush.msra.mxu0 0.0
  %800 = vmatpush.msra.mxu0 0.0
  %801 = vmatpush.msra.mxu0 0.0
  %802 = vmatpush.msra.mxu0 0.0
  %803 = vmatpush.msra.mxu0 0.0
  %804 = vmatpush.msra.mxu0 0.0
  %805 = vmatpush.msra.mxu0 %v122
  %806 = vmatpush.msra.mxu0 %v120
  %807 = vmatpush.msra.mxu0 %v118
  %808 = vmatpush.msra.mxu0 %v116
  %809 = vmatmul.f32.gmra.mxu0 %v771
  %v810 = vpop.f32.mrf.mxu0
  %v811 = vadd.f32 0.0, %v810
  %812 = vdwg.mxu0
  %v813 = vld [vmem:[#allocation2 + $0x10] sm:$0x3]
  %v814 = vadd.f32 %v813, %v791
  %v815 = vld [vmem:[#allocation2 + $0x8] sm:$0xc0]
  %v817 = vrot.slane %v811, 4
  %v819 = vadd.f32 %v815, %v817
  %v820 = vxor.u32 %v814, 2147483648
  %v821 = vmul.f32 %v820, 1.442695
  %v822 = vpow.pop %v821
  %v823 = vadd.f32 %v822, 1.0
  %v824 = vrcp.pop %v823
  %v825 = vmul.f32 %v823, %v824
  %v826 = vsub.f32 1.0, %v825
  %v827 = vmul.f32 %v824, %v826
  %v828 = vadd.f32 %v824, %v827
  %vm829 = vweird.f32 %v823
  %vm830 = vweird.f32 %v824
  %vm831 = vmor %vm829, %vm830
  %v832 = vsel %vm831, %v824, %v828
  %v833 = vand.u32 2147483647, %v823
  %vm834 = vcmp.eq.f32.partialorder %v833, 8.507059e+37
  %v835 = vand.u32 %v823, 2147483648
  %v836 = vor.u32 1.1754944e-38, %v835
  %v837 = vsel %vm834, %v836, %v832
  %v838 = vmul.f32 1.0, %v837
  %v839 = vtanh.pop %v814
  %841 = vrot.lane.b32.xlu0 %v769, 32
  %v842 = vpop.permute.xlu0 %841
  %v844 = vmul.f32 %v838, %v842
  %846 = vrot.lane.b32.xlu0 %v839, 64
  %v847 = vpop.permute.xlu0 %846
  %v849 = vmul.f32 %v838, %v847
  %851 = vrot.lane.b32.xlu0 %v849, 32
  %v852 = vpop.permute.xlu0 %851
  %v854 = vadd.f32 %v844, %v852
  %v855 = vtanh.pop %v854
  %857 = vrot.lane.b32.xlu0 %v855, 64
  %v858 = vpop.permute.xlu0 %857
  %v860 = vmul.f32 %v838, %v858
  %v861 = vxor.u32 %v819, 2147483648
  %v862 = vmul.f32 %v861, 1.442695
  %v863 = vpow.pop %v862
  %v864 = vadd.f32 %v863, 1.0
  %v865 = vrcp.pop %v864
  %v866 = vmul.f32 %v864, %v865
  %v867 = vsub.f32 1.0, %v866
  %v868 = vmul.f32 %v865, %v867
  %v869 = vadd.f32 %v865, %v868
  %vm870 = vweird.f32 %v864
  %vm871 = vweird.f32 %v865
  %vm872 = vmor %vm870, %vm871
  %v873 = vsel %vm872, %v865, %v869
  %v874 = vand.u32 2147483647, %v864
  %vm875 = vcmp.eq.f32.partialorder %v874, 8.507059e+37
  %v876 = vand.u32 %v864, 2147483648
  %v877 = vor.u32 1.1754944e-38, %v876
  %v878 = vsel %vm875, %v877, %v873
  %v879 = vmul.f32 1.0, %v878
  %v880 = vtanh.pop %v819
  %v881 = vrot.slane %v769, 4
  %882 = vrot.lane.b32.xlu0 %v881, 32
  %v883 = vpop.permute.xlu0 %882
  %v885 = vmul.f32 %v879, %v883
  %887 = vrot.lane.b32.xlu0 %v880, 64
  %v888 = vpop.permute.xlu0 %887
  %v890 = vmul.f32 %v879, %v888
  %892 = vrot.lane.b32.xlu0 %v890, 32
  %v893 = vpop.permute.xlu0 %892
  %v895 = vadd.f32 %v885, %v893
  %v896 = vtanh.pop %v895
  %898 = vrot.lane.b32.xlu0 %v896, 64
  %v899 = vpop.permute.xlu0 %898
  %v901 = vmul.f32 %v879, %v899
  %903 = vrot.lane.b32.xlu0 %v860, 32
  %v904 = vpop.permute.xlu0 %903
  %906 = vst.msk [vmem:[#allocation3 + $0x8] sm:$0x3] %vm262, %v904
  %908 = vrot.lane.b32.xlu0 %v901, 64
  %v909 = vpop.permute.xlu0 %908
  %911 = vst.msk [vmem:[#allocation3] sm:$0xc0] %vm268, %v909
  %912 = vst.msk [vmem:[#allocation5] sm:$0x3] %vm262, %v904
  %913 = vrot.lane.b32.xlu0 %v901, 32
  %v914 = vpop.permute.xlu0 %913
  %916 = vst.msk [vmem:[#allocation5 - $0x4] sm:$0xc0] %vm274, %v914
  %918 = vrot.lane.b32.xlu0 %v854, 96
  %v919 = vpop.permute.xlu0 %918
  %921 = vst.msk [vmem:[#allocation6] sm:$0x3] %vm262, %v919
  %923 = vrot.lane.b32.xlu0 %v895, 96
  %v924 = vpop.permute.xlu0 %923
  %926 = vst.msk [vmem:[#allocation6 - $0x4] sm:$0xc0] %vm274, %v924
  %v927 = vld [vmem:[#allocation5] sm:$0xf]
  %v928 = vld [vmem:[#allocation6] sm:$0xf]
  %v930 = vsel %vm125, %v927, 0
  %932 = vmatpush.msra.mxu0 0.0
  %933 = vmatpush.msra.mxu0 0.0
  %934 = vmatpush.msra.mxu0 0.0
  %935 = vmatpush.msra.mxu0 0.0
  %936 = vmatpush.msra.mxu0 0.0
  %937 = vmatpush.msra.mxu0 0.0
  %938 = vmatpush.msra.mxu0 0.0
  %939 = vmatpush.msra.mxu0 0.0
  %940 = vmatpush.msra.mxu0 0.0
  %941 = vmatpush.msra.mxu0 0.0
  %942 = vmatpush.msra.mxu0 0.0
  %943 = vmatpush.msra.mxu0 0.0
  %944 = vmatpush.msra.mxu0 %v121
  %945 = vmatpush.msra.mxu0 %v119
  %946 = vmatpush.msra.mxu0 %v117
  %947 = vmatpush.msra.mxu0 %v115
  %948 = vmatmul.f32.gmra.mxu0 %v930
  %v949 = vpop.f32.mrf.mxu0
  %v950 = vadd.f32 0.0, %v949
  %951 = vdwg.mxu0
  %952 = vmatpush.msra.mxu0 0.0
  %953 = vmatpush.msra.mxu0 0.0
  %954 = vmatpush.msra.mxu0 0.0
  %955 = vmatpush.msra.mxu0 0.0
  %956 = vmatpush.msra.mxu0 0.0
  %957 = vmatpush.msra.mxu0 0.0
  %958 = vmatpush.msra.mxu0 0.0
  %959 = vmatpush.msra.mxu0 0.0
  %960 = vmatpush.msra.mxu0 0.0
  %961 = vmatpush.msra.mxu0 0.0
  %962 = vmatpush.msra.mxu0 0.0
  %963 = vmatpush.msra.mxu0 0.0
  %964 = vmatpush.msra.mxu0 %v122
  %965 = vmatpush.msra.mxu0 %v120
  %966 = vmatpush.msra.mxu0 %v118
  %967 = vmatpush.msra.mxu0 %v116
  %968 = vmatmul.f32.gmra.mxu0 %v930
  %v969 = vpop.f32.mrf.mxu0
  %v970 = vadd.f32 0.0, %v969
  %971 = vdwg.mxu0
  %v972 = vld [vmem:[#allocation2 + $0x10] sm:$0xc]
  %v974 = vrot.slane %v950, 6
  %v976 = vadd.f32 %v972, %v974
  %v977 = vld [vmem:[#allocation2 + $0x8] sm:$0x30]
  %v979 = vrot.slane %v970, 6
  %v981 = vadd.f32 %v977, %v979
  %v982 = vxor.u32 %v976, 2147483648
  %v983 = vmul.f32 %v982, 1.442695
  %v984 = vpow.pop %v983
  %v985 = vadd.f32 %v984, 1.0
  %v986 = vrcp.pop %v985
  %v987 = vmul.f32 %v985, %v986
  %v988 = vsub.f32 1.0, %v987
  %v989 = vmul.f32 %v986, %v988
  %v990 = vadd.f32 %v986, %v989
  %vm991 = vweird.f32 %v985
  %vm992 = vweird.f32 %v986
  %vm993 = vmor %vm991, %vm992
  %v994 = vsel %vm993, %v986, %v990
  %v995 = vand.u32 2147483647, %v985
  %vm996 = vcmp.eq.f32.partialorder %v995, 8.507059e+37
  %v997 = vand.u32 %v985, 2147483648
  %v998 = vor.u32 1.1754944e-38, %v997
  %v999 = vsel %vm996, %v998, %v994
  %v1000 = vmul.f32 1.0, %v999
  %v1001 = vtanh.pop %v976
  %v1003 = vrot.slane %v928, 6
  %1004 = vrot.lane.b32.xlu0 %v1003, 32
  %v1005 = vpop.permute.xlu0 %1004
  %v1007 = vmul.f32 %v1000, %v1005
  %1009 = vrot.lane.b32.xlu0 %v1001, 64
  %v1010 = vpop.permute.xlu0 %1009
  %v1012 = vmul.f32 %v1000, %v1010
  %1014 = vrot.lane.b32.xlu0 %v1012, 32
  %v1015 = vpop.permute.xlu0 %1014
  %v1017 = vadd.f32 %v1007, %v1015
  %v1018 = vtanh.pop %v1017
  %1020 = vrot.lane.b32.xlu0 %v1018, 64
  %v1021 = vpop.permute.xlu0 %1020
  %v1023 = vmul.f32 %v1000, %v1021
  %v1024 = vxor.u32 %v981, 2147483648
  %v1025 = vmul.f32 %v1024, 1.442695
  %v1026 = vpow.pop %v1025
  %v1027 = vadd.f32 %v1026, 1.0
  %v1028 = vrcp.pop %v1027
  %v1029 = vmul.f32 %v1027, %v1028
  %v1030 = vsub.f32 1.0, %v1029
  %v1031 = vmul.f32 %v1028, %v1030
  %v1032 = vadd.f32 %v1028, %v1031
  %vm1033 = vweird.f32 %v1027
  %vm1034 = vweird.f32 %v1028
  %vm1035 = vmor %vm1033, %vm1034
  %v1036 = vsel %vm1035, %v1028, %v1032
  %v1037 = vand.u32 2147483647, %v1027
  %vm1038 = vcmp.eq.f32.partialorder %v1037, 8.507059e+37
  %v1039 = vand.u32 %v1027, 2147483648
  %v1040 = vor.u32 1.1754944e-38, %v1039
  %v1041 = vsel %vm1038, %v1040, %v1036
  %v1042 = vmul.f32 1.0, %v1041
  %v1043 = vtanh.pop %v981
  %v1044 = vmul.f32 %v1042, %v1005
  %1046 = vrot.lane.b32.xlu0 %v1043, 64
  %v1047 = vpop.permute.xlu0 %1046
  %v1049 = vmul.f32 %v1042, %v1047
  %1051 = vrot.lane.b32.xlu0 %v1049, 32
  %v1052 = vpop.permute.xlu0 %1051
  %v1054 = vadd.f32 %v1044, %v1052
  %v1055 = vtanh.pop %v1054
  %1057 = vrot.lane.b32.xlu0 %v1055, 64
  %v1058 = vpop.permute.xlu0 %1057
  %v1060 = vmul.f32 %v1042, %v1058
  %1062 = vrot.lane.b32.xlu0 %v1023, 32
  %v1063 = vpop.permute.xlu0 %1062
  %1065 = vst.msk [vmem:[#allocation3 + $0x8] sm:$0xc] %vm424, %v1063
  %1067 = vrot.lane.b32.xlu0 %v1060, 64
  %v1068 = vpop.permute.xlu0 %1067
  %1070 = vst.msk [vmem:[#allocation3] sm:$0x30] %vm430, %v1068
  %1071 = vst.msk [vmem:[#allocation5 - $0x2] sm:$0xc] %vm424, %v1063
  %1072 = vrot.lane.b32.xlu0 %v1060, 32
  %v1073 = vpop.permute.xlu0 %1072
  %1075 = vst.msk [vmem:[#allocation5 - $0x2] sm:$0x30] %vm436, %v1073
  %1077 = vrot.lane.b32.xlu0 %v1017, 96
  %v1078 = vpop.permute.xlu0 %1077
  %1080 = vst.msk [vmem:[#allocation6 - $0x2] sm:$0xc] %vm424, %v1078
  %1082 = vrot.lane.b32.xlu0 %v1054, 96
  %v1083 = vpop.permute.xlu0 %1082
  %1085 = vst.msk [vmem:[#allocation6 - $0x2] sm:$0x30] %vm436, %v1083
  %v1086 = vld [vmem:[#allocation5] sm:$0xf]
  %v1087 = vld [vmem:[#allocation6] sm:$0xf]
  %v1089 = vsel %vm125, %v1086, 0
  %1091 = vmatpush.msra.mxu0 0.0
  %1092 = vmatpush.msra.mxu0 0.0
  %1093 = vmatpush.msra.mxu0 0.0
  %1094 = vmatpush.msra.mxu0 0.0
  %1095 = vmatpush.msra.mxu0 0.0
  %1096 = vmatpush.msra.mxu0 0.0
  %1097 = vmatpush.msra.mxu0 0.0
  %1098 = vmatpush.msra.mxu0 0.0
  %1099 = vmatpush.msra.mxu0 0.0
  %1100 = vmatpush.msra.mxu0 0.0
  %1101 = vmatpush.msra.mxu0 0.0
  %1102 = vmatpush.msra.mxu0 0.0
  %1103 = vmatpush.msra.mxu0 %v121
  %1104 = vmatpush.msra.mxu0 %v119
  %1105 = vmatpush.msra.mxu0 %v117
  %1106 = vmatpush.msra.mxu0 %v115
  %1107 = vmatmul.f32.gmra.mxu0 %v1089
  %v1108 = vpop.f32.mrf.mxu0
  %v1109 = vadd.f32 0.0, %v1108
  %1110 = vdwg.mxu0
  %1111 = vmatpush.msra.mxu0 0.0
  %1112 = vmatpush.msra.mxu0 0.0
  %1113 = vmatpush.msra.mxu0 0.0
  %1114 = vmatpush.msra.mxu0 0.0
  %1115 = vmatpush.msra.mxu0 0.0
  %1116 = vmatpush.msra.mxu0 0.0
  %1117 = vmatpush.msra.mxu0 0.0
  %1118 = vmatpush.msra.mxu0 0.0
  %1119 = vmatpush.msra.mxu0 0.0
  %1120 = vmatpush.msra.mxu0 0.0
  %1121 = vmatpush.msra.mxu0 0.0
  %1122 = vmatpush.msra.mxu0 0.0
  %1123 = vmatpush.msra.mxu0 %v122
  %1124 = vmatpush.msra.mxu0 %v120
  %1125 = vmatpush.msra.mxu0 %v118
  %1126 = vmatpush.msra.mxu0 %v116
  %1127 = vmatmul.f32.gmra.mxu0 %v1089
  %v1128 = vpop.f32.mrf.mxu0
  %v1129 = vadd.f32 0.0, %v1128
  %1130 = vdwg.mxu0
  %v1131 = vld [vmem:[#allocation2 + $0x10] sm:$0x30]
  %v1133 = vrot.slane %v1109, 4
  %v1135 = vadd.f32 %v1131, %v1133
  %v1136 = vld [vmem:[#allocation2 + $0x8] sm:$0xc]
  %v1137 = vadd.f32 %v1136, %v1129
  %v1138 = vxor.u32 %v1135, 2147483648
  %v1139 = vmul.f32 %v1138, 1.442695
  %v1140 = vpow.pop %v1139
  %v1141 = vadd.f32 %v1140, 1.0
  %v1142 = vrcp.pop %v1141
  %v1143 = vmul.f32 %v1141, %v1142
  %v1144 = vsub.f32 1.0, %v1143
  %v1145 = vmul.f32 %v1142, %v1144
  %v1146 = vadd.f32 %v1142, %v1145
  %vm1147 = vweird.f32 %v1141
  %vm1148 = vweird.f32 %v1142
  %vm1149 = vmor %vm1147, %vm1148
  %v1150 = vsel %vm1149, %v1142, %v1146
  %v1151 = vand.u32 2147483647, %v1141
  %vm1152 = vcmp.eq.f32.partialorder %v1151, 8.507059e+37
  %v1153 = vand.u32 %v1141, 2147483648
  %v1154 = vor.u32 1.1754944e-38, %v1153
  %v1155 = vsel %vm1152, %v1154, %v1150
  %v1156 = vmul.f32 1.0, %v1155
  %v1157 = vtanh.pop %v1135
  %v1159 = vrot.slane %v1087, 4
  %1160 = vrot.lane.b32.xlu0 %v1159, 32
  %v1161 = vpop.permute.xlu0 %1160
  %v1163 = vmul.f32 %v1156, %v1161
  %1165 = vrot.lane.b32.xlu0 %v1157, 64
  %v1166 = vpop.permute.xlu0 %1165
  %v1168 = vmul.f32 %v1156, %v1166
  %1170 = vrot.lane.b32.xlu0 %v1168, 32
  %v1171 = vpop.permute.xlu0 %1170
  %v1173 = vadd.f32 %v1163, %v1171
  %v1174 = vtanh.pop %v1173
  %1176 = vrot.lane.b32.xlu0 %v1174, 64
  %v1177 = vpop.permute.xlu0 %1176
  %v1179 = vmul.f32 %v1156, %v1177
  %v1180 = vxor.u32 %v1137, 2147483648
  %v1181 = vmul.f32 %v1180, 1.442695
  %v1182 = vpow.pop %v1181
  %v1183 = vadd.f32 %v1182, 1.0
  %v1184 = vrcp.pop %v1183
  %v1185 = vmul.f32 %v1183, %v1184
  %v1186 = vsub.f32 1.0, %v1185
  %v1187 = vmul.f32 %v1184, %v1186
  %v1188 = vadd.f32 %v1184, %v1187
  %vm1189 = vweird.f32 %v1183
  %vm1190 = vweird.f32 %v1184
  %vm1191 = vmor %vm1189, %vm1190
  %v1192 = vsel %vm1191, %v1184, %v1188
  %v1193 = vand.u32 2147483647, %v1183
  %vm1194 = vcmp.eq.f32.partialorder %v1193, 8.507059e+37
  %v1195 = vand.u32 %v1183, 2147483648
  %v1196 = vor.u32 1.1754944e-38, %v1195
  %v1197 = vsel %vm1194, %v1196, %v1192
  %v1198 = vmul.f32 1.0, %v1197
  %v1199 = vtanh.pop %v1137
  %1200 = vrot.lane.b32.xlu0 %v1087, 32
  %v1201 = vpop.permute.xlu0 %1200
  %v1203 = vmul.f32 %v1198, %v1201
  %1205 = vrot.lane.b32.xlu0 %v1199, 64
  %v1206 = vpop.permute.xlu0 %1205
  %v1208 = vmul.f32 %v1198, %v1206
  %1210 = vrot.lane.b32.xlu0 %v1208, 32
  %v1211 = vpop.permute.xlu0 %1210
  %v1213 = vadd.f32 %v1203, %v1211
  %v1214 = vtanh.pop %v1213
  %1216 = vrot.lane.b32.xlu0 %v1214, 64
  %v1217 = vpop.permute.xlu0 %1216
  %v1219 = vmul.f32 %v1198, %v1217
  %1221 = vrot.lane.b32.xlu0 %v1179, 32
  %v1222 = vpop.permute.xlu0 %1221
  %1224 = vst.msk [vmem:[#allocation3 + $0x8] sm:$0x30] %vm436, %v1222
  %1226 = vrot.lane.b32.xlu0 %v1219, 64
  %v1227 = vpop.permute.xlu0 %1226
  %1229 = vst.msk [vmem:[#allocation3] sm:$0xc] %vm591, %v1227
  %1230 = vst.msk [vmem:[#allocation5 - $0x4] sm:$0x30] %vm436, %v1222
  %1231 = vrot.lane.b32.xlu0 %v1219, 32
  %v1232 = vpop.permute.xlu0 %1231
  %1234 = vst.msk [vmem:[#allocation5] sm:$0xc] %vm424, %v1232
  %1236 = vrot.lane.b32.xlu0 %v1173, 96
  %v1237 = vpop.permute.xlu0 %1236
  %1239 = vst.msk [vmem:[#allocation6 - $0x4] sm:$0x30] %vm436, %v1237
  %1241 = vrot.lane.b32.xlu0 %v1213, 96
  %v1242 = vpop.permute.xlu0 %1241
  %1244 = vst.msk [vmem:[#allocation6] sm:$0xc] %vm424, %v1242
  %v1245 = vld [vmem:[#allocation5] sm:$0xf]
  %v1246 = vld [vmem:[#allocation6] sm:$0xf]
  %v1248 = vsel %vm125, %v1245, 0
  %1250 = vmatpush.msra.mxu0 0.0
  %1251 = vmatpush.msra.mxu0 0.0
  %1252 = vmatpush.msra.mxu0 0.0
  %1253 = vmatpush.msra.mxu0 0.0
  %1254 = vmatpush.msra.mxu0 0.0
  %1255 = vmatpush.msra.mxu0 0.0
  %1256 = vmatpush.msra.mxu0 0.0
  %1257 = vmatpush.msra.mxu0 0.0
  %1258 = vmatpush.msra.mxu0 0.0
  %1259 = vmatpush.msra.mxu0 0.0
  %1260 = vmatpush.msra.mxu0 0.0
  %1261 = vmatpush.msra.mxu0 0.0
  %1262 = vmatpush.msra.mxu0 %v121
  %1263 = vmatpush.msra.mxu0 %v119
  %1264 = vmatpush.msra.mxu0 %v117
  %1265 = vmatpush.msra.mxu0 %v115
  %1266 = vmatmul.f32.gmra.mxu0 %v1248
  %v1267 = vpop.f32.mrf.mxu0
  %v1268 = vadd.f32 0.0, %v1267
  %1269 = vdwg.mxu0
  %1270 = vmatpush.msra.mxu0 0.0
  %1271 = vmatpush.msra.mxu0 0.0
  %1272 = vmatpush.msra.mxu0 0.0
  %1273 = vmatpush.msra.mxu0 0.0
  %1274 = vmatpush.msra.mxu0 0.0
  %1275 = vmatpush.msra.mxu0 0.0
  %1276 = vmatpush.msra.mxu0 0.0
  %1277 = vmatpush.msra.mxu0 0.0
  %1278 = vmatpush.msra.mxu0 0.0
  %1279 = vmatpush.msra.mxu0 0.0
  %1280 = vmatpush.msra.mxu0 0.0
  %1281 = vmatpush.msra.mxu0 0.0
  %1282 = vmatpush.msra.mxu0 %v122
  %1283 = vmatpush.msra.mxu0 %v120
  %1284 = vmatpush.msra.mxu0 %v118
  %1285 = vmatpush.msra.mxu0 %v116
  %1286 = vmatmul.f32.gmra.mxu0 %v1248
  %v1287 = vpop.f32.mrf.mxu0
  %v1288 = vadd.f32 0.0, %v1287
  %1289 = vdwg.mxu0
  %v1290 = vld [vmem:[#allocation2 + $0x10] sm:$0xc0]
  %v1292 = vrot.slane %v1268, 2
  %v1294 = vadd.f32 %v1290, %v1292
  %v1295 = vld [vmem:[#allocation2 + $0x8] sm:$0x3]
  %v1297 = vrot.slane %v1288, 2
  %v1299 = vadd.f32 %v1295, %v1297
  %v1300 = vxor.u32 %v1294, 2147483648
  %v1301 = vmul.f32 %v1300, 1.442695
  %v1302 = vpow.pop %v1301
  %v1303 = vadd.f32 %v1302, 1.0
  %v1304 = vrcp.pop %v1303
  %v1305 = vmul.f32 %v1303, %v1304
  %v1306 = vsub.f32 1.0, %v1305
  %v1307 = vmul.f32 %v1304, %v1306
  %v1308 = vadd.f32 %v1304, %v1307
  %vm1309 = vweird.f32 %v1303
  %vm1310 = vweird.f32 %v1304
  %vm1311 = vmor %vm1309, %vm1310
  %v1312 = vsel %vm1311, %v1304, %v1308
  %v1313 = vand.u32 2147483647, %v1303
  %vm1314 = vcmp.eq.f32.partialorder %v1313, 8.507059e+37
  %v1315 = vand.u32 %v1303, 2147483648
  %v1316 = vor.u32 1.1754944e-38, %v1315
  %v1317 = vsel %vm1314, %v1316, %v1312
  %v1318 = vmul.f32 1.0, %v1317
  %v1319 = vtanh.pop %v1294
  %v1321 = vrot.slane %v1246, 2
  %1322 = vrot.lane.b32.xlu0 %v1321, 32
  %v1323 = vpop.permute.xlu0 %1322
  %v1325 = vmul.f32 %v1318, %v1323
  %1327 = vrot.lane.b32.xlu0 %v1319, 64
  %v1328 = vpop.permute.xlu0 %1327
  %v1330 = vmul.f32 %v1318, %v1328
  %1332 = vrot.lane.b32.xlu0 %v1330, 32
  %v1333 = vpop.permute.xlu0 %1332
  %v1335 = vadd.f32 %v1325, %v1333
  %v1336 = vtanh.pop %v1335
  %1338 = vrot.lane.b32.xlu0 %v1336, 64
  %v1339 = vpop.permute.xlu0 %1338
  %v1341 = vmul.f32 %v1318, %v1339
  %v1342 = vxor.u32 %v1299, 2147483648
  %v1343 = vmul.f32 %v1342, 1.442695
  %v1344 = vpow.pop %v1343
  %v1345 = vadd.f32 %v1344, 1.0
  %v1346 = vrcp.pop %v1345
  %v1347 = vmul.f32 %v1345, %v1346
  %v1348 = vsub.f32 1.0, %v1347
  %v1349 = vmul.f32 %v1346, %v1348
  %v1350 = vadd.f32 %v1346, %v1349
  %vm1351 = vweird.f32 %v1345
  %vm1352 = vweird.f32 %v1346
  %vm1353 = vmor %vm1351, %vm1352
  %v1354 = vsel %vm1353, %v1346, %v1350
  %v1355 = vand.u32 2147483647, %v1345
  %vm1356 = vcmp.eq.f32.partialorder %v1355, 8.507059e+37
  %v1357 = vand.u32 %v1345, 2147483648
  %v1358 = vor.u32 1.1754944e-38, %v1357
  %v1359 = vsel %vm1356, %v1358, %v1354
  %v1360 = vmul.f32 1.0, %v1359
  %v1361 = vtanh.pop %v1299
  %v1362 = vmul.f32 %v1360, %v1323
  %1364 = vrot.lane.b32.xlu0 %v1361, 64
  %v1365 = vpop.permute.xlu0 %1364
  %v1367 = vmul.f32 %v1360, %v1365
  %1369 = vrot.lane.b32.xlu0 %v1367, 32
  %v1370 = vpop.permute.xlu0 %1369
  %v1372 = vadd.f32 %v1362, %v1370
  %v1373 = vtanh.pop %v1372
  %1375 = vrot.lane.b32.xlu0 %v1373, 64
  %v1376 = vpop.permute.xlu0 %1375
  %v1378 = vmul.f32 %v1360, %v1376
  %1380 = vrot.lane.b32.xlu0 %v1341, 32
  %v1381 = vpop.permute.xlu0 %1380
  %1383 = vst.msk [vmem:[#allocation3 + $0x8] sm:$0xc0] %vm274, %v1381
  %1385 = vrot.lane.b32.xlu0 %v1378, 64
  %v1386 = vpop.permute.xlu0 %1385
  %1388 = vst.msk [vmem:[#allocation3] sm:$0x3] %vm751, %v1386
  %1389 = vst.msk [vmem:[#allocation5 - $0x6] sm:$0xc0] %vm274, %v1381
  %1390 = vrot.lane.b32.xlu0 %v1378, 32
  %v1391 = vpop.permute.xlu0 %1390
  %1393 = vst.msk [vmem:[#allocation5 + $0x2] sm:$0x3] %vm262, %v1391
  %1395 = vrot.lane.b32.xlu0 %v1335, 96
  %v1396 = vpop.permute.xlu0 %1395
  %1398 = vst.msk [vmem:[#allocation6 - $0x6] sm:$0xc0] %vm274, %v1396
  %1400 = vrot.lane.b32.xlu0 %v1372, 96
  %v1401 = vpop.permute.xlu0 %1400
  %1403 = vst.msk [vmem:[#allocation6 + $0x2] sm:$0x3] %vm262, %v1401
  %v1404 = vld [vmem:[#allocation3] sm:$0xff]
  %v1405 = vld [vmem:[#allocation3 + $0x8] sm:$0xff]
  %v1406 = vld [vmem:[%s3] sm:$0xff]
  %v1407 = vld [vmem:[%s3 + $0x8] sm:$0xff]
  %v1408 = vld [vmem:[%s3 + $0x10] sm:$0xff]
  %v1409 = vld [vmem:[%s3 + $0x18] sm:$0xff]
  %v1410 = vld [vmem:[%s3 + $0x20] sm:$0xff]
  %v1411 = vld [vmem:[%s3 + $0x28] sm:$0xff]
  %v1412 = vld [vmem:[%s3 + $0x30] sm:$0xff]
  %v1413 = vld [vmem:[%s3 + $0x38] sm:$0xff]
  %v1414 = vld [vmem:[%s3 + $0x40] sm:$0xff]
  %v1415 = vld [vmem:[%s3 + $0x48] sm:$0xff]
  %v1416 = vld [vmem:[%s3 + $0x50] sm:$0xff]
  %v1417 = vld [vmem:[%s3 + $0x58] sm:$0xff]
  %v1418 = vld [vmem:[%s3 + $0x60] sm:$0xff]
  %v1419 = vld [vmem:[%s3 + $0x68] sm:$0xff]
  %v1420 = vld [vmem:[%s3 + $0x70] sm:$0xff]
  %v1421 = vld [vmem:[%s3 + $0x78] sm:$0xff]
  %v1423 = vsel %vm55, %v1404, 0
  %v1426 = vsel %vm55, %v1405, 0
  %1428 = vmatpush.msra.mxu0 0.0
  %1429 = vmatpush.msra.mxu0 0.0
  %1430 = vmatpush.msra.mxu0 0.0
  %1431 = vmatpush.msra.mxu0 0.0
  %1432 = vmatpush.msra.mxu0 0.0
  %1433 = vmatpush.msra.mxu0 0.0
  %1434 = vmatpush.msra.mxu0 0.0
  %1435 = vmatpush.msra.mxu0 0.0
  %1436 = vmatpush.msra.mxu0 %v1420
  %1437 = vmatpush.msra.mxu0 %v1418
  %1438 = vmatpush.msra.mxu0 %v1416
  %1439 = vmatpush.msra.mxu0 %v1414
  %1440 = vmatpush.msra.mxu0 %v1412
  %1441 = vmatpush.msra.mxu0 %v1410
  %1442 = vmatpush.msra.mxu0 %v1408
  %1443 = vmatpush.msra.mxu0 %v1406
  %1444 = vmatmul.f32.gmra.mxu0 %v1423
  %v1445 = vpop.f32.mrf.mxu0
  %v1446 = vadd.f32 0.0, %v1445
  %1447 = vmatmul.f32.gmra.mxu0 %v1426
  %v1448 = vpop.f32.mrf.mxu0
  %v1449 = vadd.f32 0.0, %v1448
  %1450 = vdwg.mxu0
  %1451 = vmatpush.msra.mxu0 0.0
  %1452 = vmatpush.msra.mxu0 0.0
  %1453 = vmatpush.msra.mxu0 0.0
  %1454 = vmatpush.msra.mxu0 0.0
  %1455 = vmatpush.msra.mxu0 0.0
  %1456 = vmatpush.msra.mxu0 0.0
  %1457 = vmatpush.msra.mxu0 0.0
  %1458 = vmatpush.msra.mxu0 0.0
  %1459 = vmatpush.msra.mxu0 %v1421
  %1460 = vmatpush.msra.mxu0 %v1419
  %1461 = vmatpush.msra.mxu0 %v1417
  %1462 = vmatpush.msra.mxu0 %v1415
  %1463 = vmatpush.msra.mxu0 %v1413
  %1464 = vmatpush.msra.mxu0 %v1411
  %1465 = vmatpush.msra.mxu0 %v1409
  %1466 = vmatpush.msra.mxu0 %v1407
  %1467 = vmatmul.f32.gmra.mxu0 %v1423
  %v1468 = vpop.f32.mrf.mxu0
  %v1469 = vadd.f32 0.0, %v1468
  %1470 = vmatmul.f32.gmra.mxu0 %v1426
  %v1471 = vpop.f32.mrf.mxu0
  %v1472 = vadd.f32 0.0, %v1471
  %1473 = vdwg.mxu0
  %1474 = vst [vmem:[#allocation4] sm:$0xff] %v1446
  %1475 = vst.msk [vmem:[#allocation4 + $0x8] sm:$0xff] %vm55, %v1469
  %1476 = vst [vmem:[#allocation4 + $0x10] sm:$0xff] %v1449
  %1477 = vst.msk [vmem:[#allocation4 + $0x18] sm:$0xff] %vm55, %v1472
  %1478 = vst.msk [vmem:[#allocation7] sm:$0xf] %vm112, 0.0
  %v1479 = vld [vmem:[%s4] sm:$0xff]
  %v1480 = vld [vmem:[%s4 + $0x8] sm:$0xff]
  %v1481 = vld [vmem:[%s4 + $0x10] sm:$0xff]
  %v1482 = vld [vmem:[%s4 + $0x18] sm:$0xff]
  %v1483 = vld [vmem:[%s4 + $0x20] sm:$0xff]
  %v1484 = vld [vmem:[%s4 + $0x28] sm:$0xff]
  %v1485 = vld [vmem:[%s4 + $0x30] sm:$0xff]
  %v1486 = vld [vmem:[%s4 + $0x38] sm:$0xff]
  %v1487 = vld [vmem:[#allocation7] sm:$0xf]
  %v1489 = vsel %vm125, %v1487, 0
  %1491 = vmatpush.msra.mxu0 0.0
  %1492 = vmatpush.msra.mxu0 0.0
  %1493 = vmatpush.msra.mxu0 0.0
  %1494 = vmatpush.msra.mxu0 0.0
  %1495 = vmatpush.msra.mxu0 0.0
  %1496 = vmatpush.msra.mxu0 0.0
  %1497 = vmatpush.msra.mxu0 0.0
  %1498 = vmatpush.msra.mxu0 0.0
  %1499 = vmatpush.msra.mxu0 0.0
  %1500 = vmatpush.msra.mxu0 0.0
  %1501 = vmatpush.msra.mxu0 0.0
  %1502 = vmatpush.msra.mxu0 0.0
  %1503 = vmatpush.msra.mxu0 %v1485
  %1504 = vmatpush.msra.mxu0 %v1483
  %1505 = vmatpush.msra.mxu0 %v1481
  %1506 = vmatpush.msra.mxu0 %v1479
  %1507 = vmatmul.f32.gmra.mxu0 %v1489
  %v1508 = vpop.f32.mrf.mxu0
  %v1509 = vadd.f32 0.0, %v1508
  %1510 = vdwg.mxu0
  %1511 = vmatpush.msra.mxu0 0.0
  %1512 = vmatpush.msra.mxu0 0.0
  %1513 = vmatpush.msra.mxu0 0.0
  %1514 = vmatpush.msra.mxu0 0.0
  %1515 = vmatpush.msra.mxu0 0.0
  %1516 = vmatpush.msra.mxu0 0.0
  %1517 = vmatpush.msra.mxu0 0.0
  %1518 = vmatpush.msra.mxu0 0.0
  %1519 = vmatpush.msra.mxu0 0.0
  %1520 = vmatpush.msra.mxu0 0.0
  %1521 = vmatpush.msra.mxu0 0.0
  %1522 = vmatpush.msra.mxu0 0.0
  %1523 = vmatpush.msra.mxu0 %v1486
  %1524 = vmatpush.msra.mxu0 %v1484
  %1525 = vmatpush.msra.mxu0 %v1482
  %1526 = vmatpush.msra.mxu0 %v1480
  %1527 = vmatmul.f32.gmra.mxu0 %v1489
  %v1528 = vpop.f32.mrf.mxu0
  %v1529 = vadd.f32 0.0, %v1528
  %1530 = vdwg.mxu0
  %v1531 = vld [vmem:[#allocation4] sm:$0x3]
  %v1532 = vld [vmem:[#allocation4 + $0x10] sm:$0xc0]
  %v1533 = vld [vmem:[#allocation4 + $0x18] sm:$0xc0]
  %v1534 = vadd.f32 %v1531, %v1509
  %v1535 = vxor.u32 %v1534, 2147483648
  %v1536 = vmul.f32 %v1535, 1.442695
  %v1537 = vpow.pop %v1536
  %v1538 = vadd.f32 %v1537, 1.0
  %v1539 = vrcp.pop %v1538
  %v1540 = vmul.f32 %v1538, %v1539
  %v1541 = vsub.f32 1.0, %v1540
  %v1542 = vmul.f32 %v1539, %v1541
  %v1543 = vadd.f32 %v1539, %v1542
  %vm1544 = vweird.f32 %v1538
  %vm1545 = vweird.f32 %v1539
  %vm1546 = vmor %vm1544, %vm1545
  %v1547 = vsel %vm1546, %v1539, %v1543
  %v1548 = vand.u32 2147483647, %v1538
  %vm1549 = vcmp.eq.f32.partialorder %v1548, 8.507059e+37
  %v1550 = vand.u32 %v1538, 2147483648
  %v1551 = vor.u32 1.1754944e-38, %v1550
  %v1552 = vsel %vm1549, %v1551, %v1547
  %v1553 = vmul.f32 1.0, %v1552
  %1555 = vrot.lane.b32.xlu0 %v1509, 64
  %v1556 = vpop.permute.xlu0 %1555
  %v1558 = vmul.f32 %v1553, %v1556
  %1560 = vrot.lane.b32.xlu0 %v1558, 64
  %v1561 = vpop.permute.xlu0 %1560
  %v1563 = vadd.f32 %v1531, %v1561
  %v1564 = vtanh.pop %v1563
  %v1565 = vsub.f32 1.0, %v1553
  %1567 = vrot.lane.b32.xlu0 %v1564, 96
  %v1568 = vpop.permute.xlu0 %1567
  %v1570 = vmul.f32 %v1565, %v1568
  %1571 = vrot.lane.b32.xlu0 %v1487, 32
  %v1572 = vpop.permute.xlu0 %1571
  %v1574 = vmul.f32 %v1553, %v1572
  %v1575 = vadd.f32 %v1570, %v1574
  %v1576 = vrot.slane %v1509, 4
  %v1578 = vadd.f32 %v1532, %v1576
  %v1579 = vxor.u32 %v1578, 2147483648
  %v1580 = vmul.f32 %v1579, 1.442695
  %v1581 = vpow.pop %v1580
  %v1582 = vadd.f32 %v1581, 1.0
  %v1583 = vrcp.pop %v1582
  %v1584 = vmul.f32 %v1582, %v1583
  %v1585 = vsub.f32 1.0, %v1584
  %v1586 = vmul.f32 %v1583, %v1585
  %v1587 = vadd.f32 %v1583, %v1586
  %vm1588 = vweird.f32 %v1582
  %vm1589 = vweird.f32 %v1583
  %vm1590 = vmor %vm1588, %vm1589
  %v1591 = vsel %vm1590, %v1583, %v1587
  %v1592 = vand.u32 2147483647, %v1582
  %vm1593 = vcmp.eq.f32.partialorder %v1592, 8.507059e+37
  %v1594 = vand.u32 %v1582, 2147483648
  %v1595 = vor.u32 1.1754944e-38, %v1594
  %v1596 = vsel %vm1593, %v1595, %v1591
  %v1597 = vmul.f32 1.0, %v1596
  %v1599 = vrot.slane %v1529, 4
  %v1601 = vadd.f32 %v1533, %v1599
  %v1602 = vxor.u32 %v1601, 2147483648
  %v1603 = vmul.f32 %v1602, 1.442695
  %v1604 = vpow.pop %v1603
  %v1605 = vadd.f32 %v1604, 1.0
  %v1606 = vrcp.pop %v1605
  %v1607 = vmul.f32 %v1605, %v1606
  %v1608 = vsub.f32 1.0, %v1607
  %v1609 = vmul.f32 %v1606, %v1608
  %v1610 = vadd.f32 %v1606, %v1609
  %vm1611 = vweird.f32 %v1605
  %vm1612 = vweird.f32 %v1606
  %vm1613 = vmor %vm1611, %vm1612
  %v1614 = vsel %vm1613, %v1606, %v1610
  %v1615 = vand.u32 2147483647, %v1605
  %vm1616 = vcmp.eq.f32.partialorder %v1615, 8.507059e+37
  %v1617 = vand.u32 %v1605, 2147483648
  %v1618 = vor.u32 1.1754944e-38, %v1617
  %v1619 = vsel %vm1616, %v1618, %v1614
  %v1620 = vmul.f32 1.0, %v1619
  %1621 = vrot.lane.b32.xlu0 %v1599, 64
  %v1622 = vpop.permute.xlu0 %1621
  %v1624 = vmul.f32 %v1597, %v1622
  %1626 = vrot.lane.b32.xlu0 %v1624, 64
  %v1627 = vpop.permute.xlu0 %1626
  %v1629 = vadd.f32 %v1533, %v1627
  %v1630 = vtanh.pop %v1629
  %v1631 = vsub.f32 1.0, %v1620
  %1633 = vrot.lane.b32.xlu0 %v1630, 96
  %v1634 = vpop.permute.xlu0 %1633
  %v1636 = vmul.f32 %v1631, %v1634
  %v1637 = vrot.slane %v1487, 4
  %v1639 = vmul.f32 %v1620, %v1637
  %v1640 = vadd.f32 %v1636, %v1639
  %1642 = vrot.lane.b32.xlu0 %v1575, 96
  %v1643 = vpop.permute.xlu0 %1642
  %1645 = vst.msk [vmem:[#allocation7] sm:$0x3] %vm262, %v1643
  %1646 = vst.msk [vmem:[#allocation7 - $0x4] sm:$0xc0] %vm274, %v1640
  %v1647 = vadd.f32 %v1575, 0.0
  %v1648 = vadd.f32 %v1640, 0.0
  %v1649 = vld [vmem:[#allocation7] sm:$0xf]
  %v1651 = vsel %vm125, %v1649, 0
  %1653 = vmatpush.msra.mxu0 0.0
  %1654 = vmatpush.msra.mxu0 0.0
  %1655 = vmatpush.msra.mxu0 0.0
  %1656 = vmatpush.msra.mxu0 0.0
  %1657 = vmatpush.msra.mxu0 0.0
  %1658 = vmatpush.msra.mxu0 0.0
  %1659 = vmatpush.msra.mxu0 0.0
  %1660 = vmatpush.msra.mxu0 0.0
  %1661 = vmatpush.msra.mxu0 0.0
  %1662 = vmatpush.msra.mxu0 0.0
  %1663 = vmatpush.msra.mxu0 0.0
  %1664 = vmatpush.msra.mxu0 0.0
  %1665 = vmatpush.msra.mxu0 %v1485
  %1666 = vmatpush.msra.mxu0 %v1483
  %1667 = vmatpush.msra.mxu0 %v1481
  %1668 = vmatpush.msra.mxu0 %v1479
  %1669 = vmatmul.f32.gmra.mxu0 %v1651
  %v1670 = vpop.f32.mrf.mxu0
  %v1671 = vadd.f32 0.0, %v1670
  %1672 = vdwg.mxu0
  %1673 = vmatpush.msra.mxu0 0.0
  %1674 = vmatpush.msra.mxu0 0.0
  %1675 = vmatpush.msra.mxu0 0.0
  %1676 = vmatpush.msra.mxu0 0.0
  %1677 = vmatpush.msra.mxu0 0.0
  %1678 = vmatpush.msra.mxu0 0.0
  %1679 = vmatpush.msra.mxu0 0.0
  %1680 = vmatpush.msra.mxu0 0.0
  %1681 = vmatpush.msra.mxu0 0.0
  %1682 = vmatpush.msra.mxu0 0.0
  %1683 = vmatpush.msra.mxu0 0.0
  %1684 = vmatpush.msra.mxu0 0.0
  %1685 = vmatpush.msra.mxu0 %v1486
  %1686 = vmatpush.msra.mxu0 %v1484
  %1687 = vmatpush.msra.mxu0 %v1482
  %1688 = vmatpush.msra.mxu0 %v1480
  %1689 = vmatmul.f32.gmra.mxu0 %v1651
  %v1690 = vpop.f32.mrf.mxu0
  %v1691 = vadd.f32 0.0, %v1690
  %1692 = vdwg.mxu0
  %v1693 = vld [vmem:[#allocation4] sm:$0xc]
  %v1694 = vld [vmem:[#allocation4 + $0x10] sm:$0x30]
  %v1695 = vld [vmem:[#allocation4 + $0x18] sm:$0x30]
  %v1697 = vrot.slane %v1671, 6
  %v1699 = vadd.f32 %v1693, %v1697
  %v1700 = vxor.u32 %v1699, 2147483648
  %v1701 = vmul.f32 %v1700, 1.442695
  %v1702 = vpow.pop %v1701
  %v1703 = vadd.f32 %v1702, 1.0
  %v1704 = vrcp.pop %v1703
  %v1705 = vmul.f32 %v1703, %v1704
  %v1706 = vsub.f32 1.0, %v1705
  %v1707 = vmul.f32 %v1704, %v1706
  %v1708 = vadd.f32 %v1704, %v1707
  %vm1709 = vweird.f32 %v1703
  %vm1710 = vweird.f32 %v1704
  %vm1711 = vmor %vm1709, %vm1710
  %v1712 = vsel %vm1711, %v1704, %v1708
  %v1713 = vand.u32 2147483647, %v1703
  %vm1714 = vcmp.eq.f32.partialorder %v1713, 8.507059e+37
  %v1715 = vand.u32 %v1703, 2147483648
  %v1716 = vor.u32 1.1754944e-38, %v1715
  %v1717 = vsel %vm1714, %v1716, %v1712
  %v1718 = vmul.f32 1.0, %v1717
  %1719 = vrot.lane.b32.xlu0 %v1697, 64
  %v1720 = vpop.permute.xlu0 %1719
  %v1722 = vmul.f32 %v1718, %v1720
  %1724 = vrot.lane.b32.xlu0 %v1722, 64
  %v1725 = vpop.permute.xlu0 %1724
  %v1727 = vadd.f32 %v1693, %v1725
  %v1728 = vtanh.pop %v1727
  %v1729 = vsub.f32 1.0, %v1718
  %1731 = vrot.lane.b32.xlu0 %v1728, 96
  %v1732 = vpop.permute.xlu0 %1731
  %v1734 = vmul.f32 %v1729, %v1732
  %v1735 = vrot.slane %v1649, 6
  %1736 = vrot.lane.b32.xlu0 %v1735, 32
  %v1737 = vpop.permute.xlu0 %1736
  %v1739 = vmul.f32 %v1718, %v1737
  %v1740 = vadd.f32 %v1734, %v1739
  %v1741 = vadd.f32 %v1694, %v1697
  %v1742 = vxor.u32 %v1741, 2147483648
  %v1743 = vmul.f32 %v1742, 1.442695
  %v1744 = vpow.pop %v1743
  %v1745 = vadd.f32 %v1744, 1.0
  %v1746 = vrcp.pop %v1745
  %v1747 = vmul.f32 %v1745, %v1746
  %v1748 = vsub.f32 1.0, %v1747
  %v1749 = vmul.f32 %v1746, %v1748
  %v1750 = vadd.f32 %v1746, %v1749
  %vm1751 = vweird.f32 %v1745
  %vm1752 = vweird.f32 %v1746
  %vm1753 = vmor %vm1751, %vm1752
  %v1754 = vsel %vm1753, %v1746, %v1750
  %v1755 = vand.u32 2147483647, %v1745
  %vm1756 = vcmp.eq.f32.partialorder %v1755, 8.507059e+37
  %v1757 = vand.u32 %v1745, 2147483648
  %v1758 = vor.u32 1.1754944e-38, %v1757
  %v1759 = vsel %vm1756, %v1758, %v1754
  %v1760 = vmul.f32 1.0, %v1759
  %v1762 = vrot.slane %v1691, 6
  %v1764 = vadd.f32 %v1695, %v1762
  %v1765 = vxor.u32 %v1764, 2147483648
  %v1766 = vmul.f32 %v1765, 1.442695
  %v1767 = vpow.pop %v1766
  %v1768 = vadd.f32 %v1767, 1.0
  %v1769 = vrcp.pop %v1768
  %v1770 = vmul.f32 %v1768, %v1769
  %v1771 = vsub.f32 1.0, %v1770
  %v1772 = vmul.f32 %v1769, %v1771
  %v1773 = vadd.f32 %v1769, %v1772
  %vm1774 = vweird.f32 %v1768
  %vm1775 = vweird.f32 %v1769
  %vm1776 = vmor %vm1774, %vm1775
  %v1777 = vsel %vm1776, %v1769, %v1773
  %v1778 = vand.u32 2147483647, %v1768
  %vm1779 = vcmp.eq.f32.partialorder %v1778, 8.507059e+37
  %v1780 = vand.u32 %v1768, 2147483648
  %v1781 = vor.u32 1.1754944e-38, %v1780
  %v1782 = vsel %vm1779, %v1781, %v1777
  %v1783 = vmul.f32 1.0, %v1782
  %1784 = vrot.lane.b32.xlu0 %v1762, 64
  %v1785 = vpop.permute.xlu0 %1784
  %v1787 = vmul.f32 %v1760, %v1785
  %1789 = vrot.lane.b32.xlu0 %v1787, 64
  %v1790 = vpop.permute.xlu0 %1789
  %v1792 = vadd.f32 %v1695, %v1790
  %v1793 = vtanh.pop %v1792
  %v1794 = vsub.f32 1.0, %v1783
  %1796 = vrot.lane.b32.xlu0 %v1793, 96
  %v1797 = vpop.permute.xlu0 %1796
  %v1799 = vmul.f32 %v1794, %v1797
  %v1801 = vmul.f32 %v1783, %v1735
  %v1802 = vadd.f32 %v1799, %v1801
  %1804 = vrot.lane.b32.xlu0 %v1740, 96
  %v1805 = vpop.permute.xlu0 %1804
  %1807 = vst.msk [vmem:[#allocation7 - $0x2] sm:$0xc] %vm424, %v1805
  %1808 = vst.msk [vmem:[#allocation7 - $0x2] sm:$0x30] %vm436, %v1802
  %v1809 = vrot.slane %v1740, 2
  %v1811 = vadd.f32 %v1647, %v1809
  %v1813 = vrot.slane %v1802, 6
  %v1815 = vadd.f32 %v1648, %v1813
  %v1816 = vmax.f32 %v1575, %v1809
  %v1817 = vmax.f32 %v1640, %v1813
  %v1818 = vld [vmem:[#allocation7] sm:$0xf]
  %v1820 = vsel %vm125, %v1818, 0
  %1822 = vmatpush.msra.mxu0 0.0
  %1823 = vmatpush.msra.mxu0 0.0
  %1824 = vmatpush.msra.mxu0 0.0
  %1825 = vmatpush.msra.mxu0 0.0
  %1826 = vmatpush.msra.mxu0 0.0
  %1827 = vmatpush.msra.mxu0 0.0
  %1828 = vmatpush.msra.mxu0 0.0
  %1829 = vmatpush.msra.mxu0 0.0
  %1830 = vmatpush.msra.mxu0 0.0
  %1831 = vmatpush.msra.mxu0 0.0
  %1832 = vmatpush.msra.mxu0 0.0
  %1833 = vmatpush.msra.mxu0 0.0
  %1834 = vmatpush.msra.mxu0 %v1485
  %1835 = vmatpush.msra.mxu0 %v1483
  %1836 = vmatpush.msra.mxu0 %v1481
  %1837 = vmatpush.msra.mxu0 %v1479
  %1838 = vmatmul.f32.gmra.mxu0 %v1820
  %v1839 = vpop.f32.mrf.mxu0
  %v1840 = vadd.f32 0.0, %v1839
  %1841 = vdwg.mxu0
  %1842 = vmatpush.msra.mxu0 0.0
  %1843 = vmatpush.msra.mxu0 0.0
  %1844 = vmatpush.msra.mxu0 0.0
  %1845 = vmatpush.msra.mxu0 0.0
  %1846 = vmatpush.msra.mxu0 0.0
  %1847 = vmatpush.msra.mxu0 0.0
  %1848 = vmatpush.msra.mxu0 0.0
  %1849 = vmatpush.msra.mxu0 0.0
  %1850 = vmatpush.msra.mxu0 0.0
  %1851 = vmatpush.msra.mxu0 0.0
  %1852 = vmatpush.msra.mxu0 0.0
  %1853 = vmatpush.msra.mxu0 0.0
  %1854 = vmatpush.msra.mxu0 %v1486
  %1855 = vmatpush.msra.mxu0 %v1484
  %1856 = vmatpush.msra.mxu0 %v1482
  %1857 = vmatpush.msra.mxu0 %v1480
  %1858 = vmatmul.f32.gmra.mxu0 %v1820
  %v1859 = vpop.f32.mrf.mxu0
  %v1860 = vadd.f32 0.0, %v1859
  %1861 = vdwg.mxu0
  %v1862 = vld [vmem:[#allocation4] sm:$0x30]
  %v1863 = vld [vmem:[#allocation4 + $0x10] sm:$0xc]
  %v1864 = vld [vmem:[#allocation4 + $0x18] sm:$0xc]
  %v1866 = vrot.slane %v1840, 4
  %v1868 = vadd.f32 %v1862, %v1866
  %v1869 = vxor.u32 %v1868, 2147483648
  %v1870 = vmul.f32 %v1869, 1.442695
  %v1871 = vpow.pop %v1870
  %v1872 = vadd.f32 %v1871, 1.0
  %v1873 = vrcp.pop %v1872
  %v1874 = vmul.f32 %v1872, %v1873
  %v1875 = vsub.f32 1.0, %v1874
  %v1876 = vmul.f32 %v1873, %v1875
  %v1877 = vadd.f32 %v1873, %v1876
  %vm1878 = vweird.f32 %v1872
  %vm1879 = vweird.f32 %v1873
  %vm1880 = vmor %vm1878, %vm1879
  %v1881 = vsel %vm1880, %v1873, %v1877
  %v1882 = vand.u32 2147483647, %v1872
  %vm1883 = vcmp.eq.f32.partialorder %v1882, 8.507059e+37
  %v1884 = vand.u32 %v1872, 2147483648
  %v1885 = vor.u32 1.1754944e-38, %v1884
  %v1886 = vsel %vm1883, %v1885, %v1881
  %v1887 = vmul.f32 1.0, %v1886
  %1888 = vrot.lane.b32.xlu0 %v1866, 64
  %v1889 = vpop.permute.xlu0 %1888
  %v1891 = vmul.f32 %v1887, %v1889
  %1893 = vrot.lane.b32.xlu0 %v1891, 64
  %v1894 = vpop.permute.xlu0 %1893
  %v1896 = vadd.f32 %v1862, %v1894
  %v1897 = vtanh.pop %v1896
  %v1898 = vsub.f32 1.0, %v1887
  %1900 = vrot.lane.b32.xlu0 %v1897, 96
  %v1901 = vpop.permute.xlu0 %1900
  %v1903 = vmul.f32 %v1898, %v1901
  %v1904 = vrot.slane %v1818, 4
  %1905 = vrot.lane.b32.xlu0 %v1904, 32
  %v1906 = vpop.permute.xlu0 %1905
  %v1908 = vmul.f32 %v1887, %v1906
  %v1909 = vadd.f32 %v1903, %v1908
  %v1910 = vadd.f32 %v1863, %v1840
  %v1911 = vxor.u32 %v1910, 2147483648
  %v1912 = vmul.f32 %v1911, 1.442695
  %v1913 = vpow.pop %v1912
  %v1914 = vadd.f32 %v1913, 1.0
  %v1915 = vrcp.pop %v1914
  %v1916 = vmul.f32 %v1914, %v1915
  %v1917 = vsub.f32 1.0, %v1916
  %v1918 = vmul.f32 %v1915, %v1917
  %v1919 = vadd.f32 %v1915, %v1918
  %vm1920 = vweird.f32 %v1914
  %vm1921 = vweird.f32 %v1915
  %vm1922 = vmor %vm1920, %vm1921
  %v1923 = vsel %vm1922, %v1915, %v1919
  %v1924 = vand.u32 2147483647, %v1914
  %vm1925 = vcmp.eq.f32.partialorder %v1924, 8.507059e+37
  %v1926 = vand.u32 %v1914, 2147483648
  %v1927 = vor.u32 1.1754944e-38, %v1926
  %v1928 = vsel %vm1925, %v1927, %v1923
  %v1929 = vmul.f32 1.0, %v1928
  %v1930 = vadd.f32 %v1864, %v1860
  %v1931 = vxor.u32 %v1930, 2147483648
  %v1932 = vmul.f32 %v1931, 1.442695
  %v1933 = vpow.pop %v1932
  %v1934 = vadd.f32 %v1933, 1.0
  %v1935 = vrcp.pop %v1934
  %v1936 = vmul.f32 %v1934, %v1935
  %v1937 = vsub.f32 1.0, %v1936
  %v1938 = vmul.f32 %v1935, %v1937
  %v1939 = vadd.f32 %v1935, %v1938
  %vm1940 = vweird.f32 %v1934
  %vm1941 = vweird.f32 %v1935
  %vm1942 = vmor %vm1940, %vm1941
  %v1943 = vsel %vm1942, %v1935, %v1939
  %v1944 = vand.u32 2147483647, %v1934
  %vm1945 = vcmp.eq.f32.partialorder %v1944, 8.507059e+37
  %v1946 = vand.u32 %v1934, 2147483648
  %v1947 = vor.u32 1.1754944e-38, %v1946
  %v1948 = vsel %vm1945, %v1947, %v1943
  %v1949 = vmul.f32 1.0, %v1948
  %1951 = vrot.lane.b32.xlu0 %v1860, 64
  %v1952 = vpop.permute.xlu0 %1951
  %v1954 = vmul.f32 %v1929, %v1952
  %1956 = vrot.lane.b32.xlu0 %v1954, 64
  %v1957 = vpop.permute.xlu0 %1956
  %v1959 = vadd.f32 %v1864, %v1957
  %v1960 = vtanh.pop %v1959
  %v1961 = vsub.f32 1.0, %v1949
  %1963 = vrot.lane.b32.xlu0 %v1960, 96
  %v1964 = vpop.permute.xlu0 %1963
  %v1966 = vmul.f32 %v1961, %v1964
  %v1967 = vmul.f32 %v1949, %v1818
  %v1968 = vadd.f32 %v1966, %v1967
  %1970 = vrot.lane.b32.xlu0 %v1909, 96
  %v1971 = vpop.permute.xlu0 %1970
  %1973 = vst.msk [vmem:[#allocation7 - $0x4] sm:$0x30] %vm436, %v1971
  %1974 = vst.msk [vmem:[#allocation7] sm:$0xc] %vm424, %v1968
  %v1975 = vrot.slane %v1909, 4
  %v1977 = vadd.f32 %v1811, %v1975
  %v1979 = vrot.slane %v1968, 4
  %v1981 = vadd.f32 %v1815, %v1979
  %v1982 = vmax.f32 %v1816, %v1975
  %v1983 = vmax.f32 %v1817, %v1979
  %v1984 = vld [vmem:[#allocation7] sm:$0xf]
  %v1986 = vsel %vm125, %v1984, 0
  %1988 = vmatpush.msra.mxu0 0.0
  %1989 = vmatpush.msra.mxu0 0.0
  %1990 = vmatpush.msra.mxu0 0.0
  %1991 = vmatpush.msra.mxu0 0.0
  %1992 = vmatpush.msra.mxu0 0.0
  %1993 = vmatpush.msra.mxu0 0.0
  %1994 = vmatpush.msra.mxu0 0.0
  %1995 = vmatpush.msra.mxu0 0.0
  %1996 = vmatpush.msra.mxu0 0.0
  %1997 = vmatpush.msra.mxu0 0.0
  %1998 = vmatpush.msra.mxu0 0.0
  %1999 = vmatpush.msra.mxu0 0.0
  %2000 = vmatpush.msra.mxu0 %v1485
  %2001 = vmatpush.msra.mxu0 %v1483
  %2002 = vmatpush.msra.mxu0 %v1481
  %2003 = vmatpush.msra.mxu0 %v1479
  %2004 = vmatmul.f32.gmra.mxu0 %v1986
  %v2005 = vpop.f32.mrf.mxu0
  %v2006 = vadd.f32 0.0, %v2005
  %2007 = vdwg.mxu0
  %2008 = vmatpush.msra.mxu0 0.0
  %2009 = vmatpush.msra.mxu0 0.0
  %2010 = vmatpush.msra.mxu0 0.0
  %2011 = vmatpush.msra.mxu0 0.0
  %2012 = vmatpush.msra.mxu0 0.0
  %2013 = vmatpush.msra.mxu0 0.0
  %2014 = vmatpush.msra.mxu0 0.0
  %2015 = vmatpush.msra.mxu0 0.0
  %2016 = vmatpush.msra.mxu0 0.0
  %2017 = vmatpush.msra.mxu0 0.0
  %2018 = vmatpush.msra.mxu0 0.0
  %2019 = vmatpush.msra.mxu0 0.0
  %2020 = vmatpush.msra.mxu0 %v1486
  %2021 = vmatpush.msra.mxu0 %v1484
  %2022 = vmatpush.msra.mxu0 %v1482
  %2023 = vmatpush.msra.mxu0 %v1480
  %2024 = vmatmul.f32.gmra.mxu0 %v1986
  %v2025 = vpop.f32.mrf.mxu0
  %v2026 = vadd.f32 0.0, %v2025
  %2027 = vdwg.mxu0
  %v2028 = vld [vmem:[#allocation4] sm:$0xc0]
  %v2029 = vld [vmem:[#allocation4 + $0x10] sm:$0x3]
  %v2030 = vld [vmem:[#allocation4 + $0x18] sm:$0x3]
  %v2032 = vrot.slane %v2006, 2
  %v2034 = vadd.f32 %v2028, %v2032
  %v2035 = vxor.u32 %v2034, 2147483648
  %v2036 = vmul.f32 %v2035, 1.442695
  %v2037 = vpow.pop %v2036
  %v2038 = vadd.f32 %v2037, 1.0
  %v2039 = vrcp.pop %v2038
  %v2040 = vmul.f32 %v2038, %v2039
  %v2041 = vsub.f32 1.0, %v2040
  %v2042 = vmul.f32 %v2039, %v2041
  %v2043 = vadd.f32 %v2039, %v2042
  %vm2044 = vweird.f32 %v2038
  %vm2045 = vweird.f32 %v2039
  %vm2046 = vmor %vm2044, %vm2045
  %v2047 = vsel %vm2046, %v2039, %v2043
  %v2048 = vand.u32 2147483647, %v2038
  %vm2049 = vcmp.eq.f32.partialorder %v2048, 8.507059e+37
  %v2050 = vand.u32 %v2038, 2147483648
  %v2051 = vor.u32 1.1754944e-38, %v2050
  %v2052 = vsel %vm2049, %v2051, %v2047
  %v2053 = vmul.f32 1.0, %v2052
  %2054 = vrot.lane.b32.xlu0 %v2032, 64
  %v2055 = vpop.permute.xlu0 %2054
  %v2057 = vmul.f32 %v2053, %v2055
  %2059 = vrot.lane.b32.xlu0 %v2057, 64
  %v2060 = vpop.permute.xlu0 %2059
  %v2062 = vadd.f32 %v2028, %v2060
  %v2063 = vtanh.pop %v2062
  %v2064 = vsub.f32 1.0, %v2053
  %2066 = vrot.lane.b32.xlu0 %v2063, 96
  %v2067 = vpop.permute.xlu0 %2066
  %v2069 = vmul.f32 %v2064, %v2067
  %v2070 = vrot.slane %v1984, 2
  %2071 = vrot.lane.b32.xlu0 %v2070, 32
  %v2072 = vpop.permute.xlu0 %2071
  %v2074 = vmul.f32 %v2053, %v2072
  %v2075 = vadd.f32 %v2069, %v2074
  %v2076 = vadd.f32 %v2029, %v2032
  %v2077 = vxor.u32 %v2076, 2147483648
  %v2078 = vmul.f32 %v2077, 1.442695
  %v2079 = vpow.pop %v2078
  %v2080 = vadd.f32 %v2079, 1.0
  %v2081 = vrcp.pop %v2080
  %v2082 = vmul.f32 %v2080, %v2081
  %v2083 = vsub.f32 1.0, %v2082
  %v2084 = vmul.f32 %v2081, %v2083
  %v2085 = vadd.f32 %v2081, %v2084
  %vm2086 = vweird.f32 %v2080
  %vm2087 = vweird.f32 %v2081
  %vm2088 = vmor %vm2086, %vm2087
  %v2089 = vsel %vm2088, %v2081, %v2085
  %v2090 = vand.u32 2147483647, %v2080
  %vm2091 = vcmp.eq.f32.partialorder %v2090, 8.507059e+37
  %v2092 = vand.u32 %v2080, 2147483648
  %v2093 = vor.u32 1.1754944e-38, %v2092
  %v2094 = vsel %vm2091, %v2093, %v2089
  %v2095 = vmul.f32 1.0, %v2094
  %v2097 = vrot.slane %v2026, 2
  %v2099 = vadd.f32 %v2030, %v2097
  %v2100 = vxor.u32 %v2099, 2147483648
  %v2101 = vmul.f32 %v2100, 1.442695
  %v2102 = vpow.pop %v2101
  %v2103 = vadd.f32 %v2102, 1.0
  %v2104 = vrcp.pop %v2103
  %v2105 = vmul.f32 %v2103, %v2104
  %v2106 = vsub.f32 1.0, %v2105
  %v2107 = vmul.f32 %v2104, %v2106
  %v2108 = vadd.f32 %v2104, %v2107
  %vm2109 = vweird.f32 %v2103
  %vm2110 = vweird.f32 %v2104
  %vm2111 = vmor %vm2109, %vm2110
  %v2112 = vsel %vm2111, %v2104, %v2108
  %v2113 = vand.u32 2147483647, %v2103
  %vm2114 = vcmp.eq.f32.partialorder %v2113, 8.507059e+37
  %v2115 = vand.u32 %v2103, 2147483648
  %v2116 = vor.u32 1.1754944e-38, %v2115
  %v2117 = vsel %vm2114, %v2116, %v2112
  %v2118 = vmul.f32 1.0, %v2117
  %2119 = vrot.lane.b32.xlu0 %v2097, 64
  %v2120 = vpop.permute.xlu0 %2119
  %v2122 = vmul.f32 %v2095, %v2120
  %2124 = vrot.lane.b32.xlu0 %v2122, 64
  %v2125 = vpop.permute.xlu0 %2124
  %v2127 = vadd.f32 %v2030, %v2125
  %v2128 = vtanh.pop %v2127
  %v2129 = vsub.f32 1.0, %v2118
  %2131 = vrot.lane.b32.xlu0 %v2128, 96
  %v2132 = vpop.permute.xlu0 %2131
  %v2134 = vmul.f32 %v2129, %v2132
  %v2136 = vmul.f32 %v2118, %v2070
  %v2137 = vadd.f32 %v2134, %v2136
  %2139 = vrot.lane.b32.xlu0 %v2075, 96
  %v2140 = vpop.permute.xlu0 %2139
  %2142 = vst.msk [vmem:[#allocation7 - $0x6] sm:$0xc0] %vm274, %v2140
  %2143 = vst.msk [vmem:[#allocation7 + $0x2] sm:$0x3] %vm262, %v2137
  %v2144 = vrot.slane %v2075, 6
  %v2146 = vadd.f32 %v1977, %v2144
  %v2148 = vrot.slane %v2137, 2
  %v2150 = vadd.f32 %v1981, %v2148
  %v2151 = vmax.f32 %v1982, %v2144
  %v2152 = vmax.f32 %v1983, %v2148
  %v2153 = vld [vmem:[#allocation7] sm:$0xf]
  %v2155 = vsel %vm125, %v2153, 0
  %2157 = vmatpush.msra.mxu0 0.0
  %2158 = vmatpush.msra.mxu0 0.0
  %2159 = vmatpush.msra.mxu0 0.0
  %2160 = vmatpush.msra.mxu0 0.0
  %2161 = vmatpush.msra.mxu0 0.0
  %2162 = vmatpush.msra.mxu0 0.0
  %2163 = vmatpush.msra.mxu0 0.0
  %2164 = vmatpush.msra.mxu0 0.0
  %2165 = vmatpush.msra.mxu0 0.0
  %2166 = vmatpush.msra.mxu0 0.0
  %2167 = vmatpush.msra.mxu0 0.0
  %2168 = vmatpush.msra.mxu0 0.0
  %2169 = vmatpush.msra.mxu0 %v1485
  %2170 = vmatpush.msra.mxu0 %v1483
  %2171 = vmatpush.msra.mxu0 %v1481
  %2172 = vmatpush.msra.mxu0 %v1479
  %2173 = vmatmul.f32.gmra.mxu0 %v2155
  %v2174 = vpop.f32.mrf.mxu0
  %v2175 = vadd.f32 0.0, %v2174
  %2176 = vdwg.mxu0
  %2177 = vmatpush.msra.mxu0 0.0
  %2178 = vmatpush.msra.mxu0 0.0
  %2179 = vmatpush.msra.mxu0 0.0
  %2180 = vmatpush.msra.mxu0 0.0
  %2181 = vmatpush.msra.mxu0 0.0
  %2182 = vmatpush.msra.mxu0 0.0
  %2183 = vmatpush.msra.mxu0 0.0
  %2184 = vmatpush.msra.mxu0 0.0
  %2185 = vmatpush.msra.mxu0 0.0
  %2186 = vmatpush.msra.mxu0 0.0
  %2187 = vmatpush.msra.mxu0 0.0
  %2188 = vmatpush.msra.mxu0 0.0
  %2189 = vmatpush.msra.mxu0 %v1486
  %2190 = vmatpush.msra.mxu0 %v1484
  %2191 = vmatpush.msra.mxu0 %v1482
  %2192 = vmatpush.msra.mxu0 %v1480
  %2193 = vmatmul.f32.gmra.mxu0 %v2155
  %v2194 = vpop.f32.mrf.mxu0
  %v2195 = vadd.f32 0.0, %v2194
  %2196 = vdwg.mxu0
  %v2197 = vld [vmem:[#allocation4 + $0x10] sm:$0x3]
  %v2198 = vld [vmem:[#allocation4] sm:$0xc0]
  %v2199 = vld [vmem:[#allocation4 + $0x8] sm:$0xc0]
  %v2200 = vadd.f32 %v2197, %v2175
  %v2201 = vxor.u32 %v2200, 2147483648
  %v2202 = vmul.f32 %v2201, 1.442695
  %v2203 = vpow.pop %v2202
  %v2204 = vadd.f32 %v2203, 1.0
  %v2205 = vrcp.pop %v2204
  %v2206 = vmul.f32 %v2204, %v2205
  %v2207 = vsub.f32 1.0, %v2206
  %v2208 = vmul.f32 %v2205, %v2207
  %v2209 = vadd.f32 %v2205, %v2208
  %vm2210 = vweird.f32 %v2204
  %vm2211 = vweird.f32 %v2205
  %vm2212 = vmor %vm2210, %vm2211
  %v2213 = vsel %vm2212, %v2205, %v2209
  %v2214 = vand.u32 2147483647, %v2204
  %vm2215 = vcmp.eq.f32.partialorder %v2214, 8.507059e+37
  %v2216 = vand.u32 %v2204, 2147483648
  %v2217 = vor.u32 1.1754944e-38, %v2216
  %v2218 = vsel %vm2215, %v2217, %v2213
  %v2219 = vmul.f32 1.0, %v2218
  %2221 = vrot.lane.b32.xlu0 %v2175, 64
  %v2222 = vpop.permute.xlu0 %2221
  %v2224 = vmul.f32 %v2219, %v2222
  %2226 = vrot.lane.b32.xlu0 %v2224, 64
  %v2227 = vpop.permute.xlu0 %2226
  %v2229 = vadd.f32 %v2197, %v2227
  %v2230 = vtanh.pop %v2229
  %v2231 = vsub.f32 1.0, %v2219
  %2233 = vrot.lane.b32.xlu0 %v2230, 96
  %v2234 = vpop.permute.xlu0 %2233
  %v2236 = vmul.f32 %v2231, %v2234
  %2237 = vrot.lane.b32.xlu0 %v2153, 32
  %v2238 = vpop.permute.xlu0 %2237
  %v2240 = vmul.f32 %v2219, %v2238
  %v2241 = vadd.f32 %v2236, %v2240
  %v2242 = vrot.slane %v2175, 4
  %v2244 = vadd.f32 %v2198, %v2242
  %v2245 = vxor.u32 %v2244, 2147483648
  %v2246 = vmul.f32 %v2245, 1.442695
  %v2247 = vpow.pop %v2246
  %v2248 = vadd.f32 %v2247, 1.0
  %v2249 = vrcp.pop %v2248
  %v2250 = vmul.f32 %v2248, %v2249
  %v2251 = vsub.f32 1.0, %v2250
  %v2252 = vmul.f32 %v2249, %v2251
  %v2253 = vadd.f32 %v2249, %v2252
  %vm2254 = vweird.f32 %v2248
  %vm2255 = vweird.f32 %v2249
  %vm2256 = vmor %vm2254, %vm2255
  %v2257 = vsel %vm2256, %v2249, %v2253
  %v2258 = vand.u32 2147483647, %v2248
  %vm2259 = vcmp.eq.f32.partialorder %v2258, 8.507059e+37
  %v2260 = vand.u32 %v2248, 2147483648
  %v2261 = vor.u32 1.1754944e-38, %v2260
  %v2262 = vsel %vm2259, %v2261, %v2257
  %v2263 = vmul.f32 1.0, %v2262
  %v2265 = vrot.slane %v2195, 4
  %v2267 = vadd.f32 %v2199, %v2265
  %v2268 = vxor.u32 %v2267, 2147483648
  %v2269 = vmul.f32 %v2268, 1.442695
  %v2270 = vpow.pop %v2269
  %v2271 = vadd.f32 %v2270, 1.0
  %v2272 = vrcp.pop %v2271
  %v2273 = vmul.f32 %v2271, %v2272
  %v2274 = vsub.f32 1.0, %v2273
  %v2275 = vmul.f32 %v2272, %v2274
  %v2276 = vadd.f32 %v2272, %v2275
  %vm2277 = vweird.f32 %v2271
  %vm2278 = vweird.f32 %v2272
  %vm2279 = vmor %vm2277, %vm2278
  %v2280 = vsel %vm2279, %v2272, %v2276
  %v2281 = vand.u32 2147483647, %v2271
  %vm2282 = vcmp.eq.f32.partialorder %v2281, 8.507059e+37
  %v2283 = vand.u32 %v2271, 2147483648
  %v2284 = vor.u32 1.1754944e-38, %v2283
  %v2285 = vsel %vm2282, %v2284, %v2280
  %v2286 = vmul.f32 1.0, %v2285
  %2287 = vrot.lane.b32.xlu0 %v2265, 64
  %v2288 = vpop.permute.xlu0 %2287
  %v2290 = vmul.f32 %v2263, %v2288
  %2292 = vrot.lane.b32.xlu0 %v2290, 64
  %v2293 = vpop.permute.xlu0 %2292
  %v2295 = vadd.f32 %v2199, %v2293
  %v2296 = vtanh.pop %v2295
  %v2297 = vsub.f32 1.0, %v2286
  %2299 = vrot.lane.b32.xlu0 %v2296, 96
  %v2300 = vpop.permute.xlu0 %2299
  %v2302 = vmul.f32 %v2297, %v2300
  %v2303 = vrot.slane %v2153, 4
  %v2305 = vmul.f32 %v2286, %v2303
  %v2306 = vadd.f32 %v2302, %v2305
  %2308 = vrot.lane.b32.xlu0 %v2241, 96
  %v2309 = vpop.permute.xlu0 %2308
  %2311 = vst.msk [vmem:[#allocation7] sm:$0x3] %vm262, %v2309
  %2312 = vst.msk [vmem:[#allocation7 - $0x4] sm:$0xc0] %vm274, %v2306
  %v2313 = vadd.f32 %v2146, %v2241
  %v2314 = vadd.f32 %v2150, %v2306
  %v2315 = vmax.f32 %v2151, %v2241
  %v2316 = vmax.f32 %v2152, %v2306
  %v2317 = vld [vmem:[#allocation7] sm:$0xf]
  %v2319 = vsel %vm125, %v2317, 0
  %2321 = vmatpush.msra.mxu0 0.0
  %2322 = vmatpush.msra.mxu0 0.0
  %2323 = vmatpush.msra.mxu0 0.0
  %2324 = vmatpush.msra.mxu0 0.0
  %2325 = vmatpush.msra.mxu0 0.0
  %2326 = vmatpush.msra.mxu0 0.0
  %2327 = vmatpush.msra.mxu0 0.0
  %2328 = vmatpush.msra.mxu0 0.0
  %2329 = vmatpush.msra.mxu0 0.0
  %2330 = vmatpush.msra.mxu0 0.0
  %2331 = vmatpush.msra.mxu0 0.0
  %2332 = vmatpush.msra.mxu0 0.0
  %2333 = vmatpush.msra.mxu0 %v1485
  %2334 = vmatpush.msra.mxu0 %v1483
  %2335 = vmatpush.msra.mxu0 %v1481
  %2336 = vmatpush.msra.mxu0 %v1479
  %2337 = vmatmul.f32.gmra.mxu0 %v2319
  %v2338 = vpop.f32.mrf.mxu0
  %v2339 = vadd.f32 0.0, %v2338
  %2340 = vdwg.mxu0
  %2341 = vmatpush.msra.mxu0 0.0
  %2342 = vmatpush.msra.mxu0 0.0
  %2343 = vmatpush.msra.mxu0 0.0
  %2344 = vmatpush.msra.mxu0 0.0
  %2345 = vmatpush.msra.mxu0 0.0
  %2346 = vmatpush.msra.mxu0 0.0
  %2347 = vmatpush.msra.mxu0 0.0
  %2348 = vmatpush.msra.mxu0 0.0
  %2349 = vmatpush.msra.mxu0 0.0
  %2350 = vmatpush.msra.mxu0 0.0
  %2351 = vmatpush.msra.mxu0 0.0
  %2352 = vmatpush.msra.mxu0 0.0
  %2353 = vmatpush.msra.mxu0 %v1486
  %2354 = vmatpush.msra.mxu0 %v1484
  %2355 = vmatpush.msra.mxu0 %v1482
  %2356 = vmatpush.msra.mxu0 %v1480
  %2357 = vmatmul.f32.gmra.mxu0 %v2319
  %v2358 = vpop.f32.mrf.mxu0
  %v2359 = vadd.f32 0.0, %v2358
  %2360 = vdwg.mxu0
  %v2361 = vld [vmem:[#allocation4 + $0x10] sm:$0xc]
  %v2362 = vld [vmem:[#allocation4] sm:$0x30]
  %v2363 = vld [vmem:[#allocation4 + $0x8] sm:$0x30]
  %v2365 = vrot.slane %v2339, 6
  %v2367 = vadd.f32 %v2361, %v2365
  %v2368 = vxor.u32 %v2367, 2147483648
  %v2369 = vmul.f32 %v2368, 1.442695
  %v2370 = vpow.pop %v2369
  %v2371 = vadd.f32 %v2370, 1.0
  %v2372 = vrcp.pop %v2371
  %v2373 = vmul.f32 %v2371, %v2372
  %v2374 = vsub.f32 1.0, %v2373
  %v2375 = vmul.f32 %v2372, %v2374
  %v2376 = vadd.f32 %v2372, %v2375
  %vm2377 = vweird.f32 %v2371
  %vm2378 = vweird.f32 %v2372
  %vm2379 = vmor %vm2377, %vm2378
  %v2380 = vsel %vm2379, %v2372, %v2376
  %v2381 = vand.u32 2147483647, %v2371
  %vm2382 = vcmp.eq.f32.partialorder %v2381, 8.507059e+37
  %v2383 = vand.u32 %v2371, 2147483648
  %v2384 = vor.u32 1.1754944e-38, %v2383
  %v2385 = vsel %vm2382, %v2384, %v2380
  %v2386 = vmul.f32 1.0, %v2385
  %2387 = vrot.lane.b32.xlu0 %v2365, 64
  %v2388 = vpop.permute.xlu0 %2387
  %v2390 = vmul.f32 %v2386, %v2388
  %2392 = vrot.lane.b32.xlu0 %v2390, 64
  %v2393 = vpop.permute.xlu0 %2392
  %v2395 = vadd.f32 %v2361, %v2393
  %v2396 = vtanh.pop %v2395
  %v2397 = vsub.f32 1.0, %v2386
  %2399 = vrot.lane.b32.xlu0 %v2396, 96
  %v2400 = vpop.permute.xlu0 %2399
  %v2402 = vmul.f32 %v2397, %v2400
  %v2403 = vrot.slane %v2317, 6
  %2404 = vrot.lane.b32.xlu0 %v2403, 32
  %v2405 = vpop.permute.xlu0 %2404
  %v2407 = vmul.f32 %v2386, %v2405
  %v2408 = vadd.f32 %v2402, %v2407
  %v2409 = vadd.f32 %v2362, %v2365
  %v2410 = vxor.u32 %v2409, 2147483648
  %v2411 = vmul.f32 %v2410, 1.442695
  %v2412 = vpow.pop %v2411
  %v2413 = vadd.f32 %v2412, 1.0
  %v2414 = vrcp.pop %v2413
  %v2415 = vmul.f32 %v2413, %v2414
  %v2416 = vsub.f32 1.0, %v2415
  %v2417 = vmul.f32 %v2414, %v2416
  %v2418 = vadd.f32 %v2414, %v2417
  %vm2419 = vweird.f32 %v2413
  %vm2420 = vweird.f32 %v2414
  %vm2421 = vmor %vm2419, %vm2420
  %v2422 = vsel %vm2421, %v2414, %v2418
  %v2423 = vand.u32 2147483647, %v2413
  %vm2424 = vcmp.eq.f32.partialorder %v2423, 8.507059e+37
  %v2425 = vand.u32 %v2413, 2147483648
  %v2426 = vor.u32 1.1754944e-38, %v2425
  %v2427 = vsel %vm2424, %v2426, %v2422
  %v2428 = vmul.f32 1.0, %v2427
  %v2430 = vrot.slane %v2359, 6
  %v2432 = vadd.f32 %v2363, %v2430
  %v2433 = vxor.u32 %v2432, 2147483648
  %v2434 = vmul.f32 %v2433, 1.442695
  %v2435 = vpow.pop %v2434
  %v2436 = vadd.f32 %v2435, 1.0
  %v2437 = vrcp.pop %v2436
  %v2438 = vmul.f32 %v2436, %v2437
  %v2439 = vsub.f32 1.0, %v2438
  %v2440 = vmul.f32 %v2437, %v2439
  %v2441 = vadd.f32 %v2437, %v2440
  %vm2442 = vweird.f32 %v2436
  %vm2443 = vweird.f32 %v2437
  %vm2444 = vmor %vm2442, %vm2443
  %v2445 = vsel %vm2444, %v2437, %v2441
  %v2446 = vand.u32 2147483647, %v2436
  %vm2447 = vcmp.eq.f32.partialorder %v2446, 8.507059e+37
  %v2448 = vand.u32 %v2436, 2147483648
  %v2449 = vor.u32 1.1754944e-38, %v2448
  %v2450 = vsel %vm2447, %v2449, %v2445
  %v2451 = vmul.f32 1.0, %v2450
  %2452 = vrot.lane.b32.xlu0 %v2430, 64
  %v2453 = vpop.permute.xlu0 %2452
  %v2455 = vmul.f32 %v2428, %v2453
  %2457 = vrot.lane.b32.xlu0 %v2455, 64
  %v2458 = vpop.permute.xlu0 %2457
  %v2460 = vadd.f32 %v2363, %v2458
  %v2461 = vtanh.pop %v2460
  %v2462 = vsub.f32 1.0, %v2451
  %2464 = vrot.lane.b32.xlu0 %v2461, 96
  %v2465 = vpop.permute.xlu0 %2464
  %v2467 = vmul.f32 %v2462, %v2465
  %v2469 = vmul.f32 %v2451, %v2403
  %v2470 = vadd.f32 %v2467, %v2469
  %2472 = vrot.lane.b32.xlu0 %v2408, 96
  %v2473 = vpop.permute.xlu0 %2472
  %2475 = vst.msk [vmem:[#allocation7 - $0x2] sm:$0xc] %vm424, %v2473
  %2476 = vst.msk [vmem:[#allocation7 - $0x2] sm:$0x30] %vm436, %v2470
  %v2477 = vrot.slane %v2408, 2
  %v2479 = vadd.f32 %v2313, %v2477
  %v2481 = vrot.slane %v2470, 6
  %v2483 = vadd.f32 %v2314, %v2481
  %v2484 = vmax.f32 %v2315, %v2477
  %v2485 = vmax.f32 %v2316, %v2481
  %v2486 = vld [vmem:[#allocation7] sm:$0xf]
  %v2488 = vsel %vm125, %v2486, 0
  %2490 = vmatpush.msra.mxu0 0.0
  %2491 = vmatpush.msra.mxu0 0.0
  %2492 = vmatpush.msra.mxu0 0.0
  %2493 = vmatpush.msra.mxu0 0.0
  %2494 = vmatpush.msra.mxu0 0.0
  %2495 = vmatpush.msra.mxu0 0.0
  %2496 = vmatpush.msra.mxu0 0.0
  %2497 = vmatpush.msra.mxu0 0.0
  %2498 = vmatpush.msra.mxu0 0.0
  %2499 = vmatpush.msra.mxu0 0.0
  %2500 = vmatpush.msra.mxu0 0.0
  %2501 = vmatpush.msra.mxu0 0.0
  %2502 = vmatpush.msra.mxu0 %v1485
  %2503 = vmatpush.msra.mxu0 %v1483
  %2504 = vmatpush.msra.mxu0 %v1481
  %2505 = vmatpush.msra.mxu0 %v1479
  %2506 = vmatmul.f32.gmra.mxu0 %v2488
  %v2507 = vpop.f32.mrf.mxu0
  %v2508 = vadd.f32 0.0, %v2507
  %2509 = vdwg.mxu0
  %2510 = vmatpush.msra.mxu0 0.0
  %2511 = vmatpush.msra.mxu0 0.0
  %2512 = vmatpush.msra.mxu0 0.0
  %2513 = vmatpush.msra.mxu0 0.0
  %2514 = vmatpush.msra.mxu0 0.0
  %2515 = vmatpush.msra.mxu0 0.0
  %2516 = vmatpush.msra.mxu0 0.0
  %2517 = vmatpush.msra.mxu0 0.0
  %2518 = vmatpush.msra.mxu0 0.0
  %2519 = vmatpush.msra.mxu0 0.0
  %2520 = vmatpush.msra.mxu0 0.0
  %2521 = vmatpush.msra.mxu0 0.0
  %2522 = vmatpush.msra.mxu0 %v1486
  %2523 = vmatpush.msra.mxu0 %v1484
  %2524 = vmatpush.msra.mxu0 %v1482
  %2525 = vmatpush.msra.mxu0 %v1480
  %2526 = vmatmul.f32.gmra.mxu0 %v2488
  %v2527 = vpop.f32.mrf.mxu0
  %v2528 = vadd.f32 0.0, %v2527
  %2529 = vdwg.mxu0
  %v2530 = vld [vmem:[#allocation4 + $0x10] sm:$0x30]
  %v2531 = vld [vmem:[#allocation4] sm:$0xc]
  %v2532 = vld [vmem:[#allocation4 + $0x8] sm:$0xc]
  %v2534 = vrot.slane %v2508, 4
  %v2536 = vadd.f32 %v2530, %v2534
  %v2537 = vxor.u32 %v2536, 2147483648
  %v2538 = vmul.f32 %v2537, 1.442695
  %v2539 = vpow.pop %v2538
  %v2540 = vadd.f32 %v2539, 1.0
  %v2541 = vrcp.pop %v2540
  %v2542 = vmul.f32 %v2540, %v2541
  %v2543 = vsub.f32 1.0, %v2542
  %v2544 = vmul.f32 %v2541, %v2543
  %v2545 = vadd.f32 %v2541, %v2544
  %vm2546 = vweird.f32 %v2540
  %vm2547 = vweird.f32 %v2541
  %vm2548 = vmor %vm2546, %vm2547
  %v2549 = vsel %vm2548, %v2541, %v2545
  %v2550 = vand.u32 2147483647, %v2540
  %vm2551 = vcmp.eq.f32.partialorder %v2550, 8.507059e+37
  %v2552 = vand.u32 %v2540, 2147483648
  %v2553 = vor.u32 1.1754944e-38, %v2552
  %v2554 = vsel %vm2551, %v2553, %v2549
  %v2555 = vmul.f32 1.0, %v2554
  %2556 = vrot.lane.b32.xlu0 %v2534, 64
  %v2557 = vpop.permute.xlu0 %2556
  %v2559 = vmul.f32 %v2555, %v2557
  %2561 = vrot.lane.b32.xlu0 %v2559, 64
  %v2562 = vpop.permute.xlu0 %2561
  %v2564 = vadd.f32 %v2530, %v2562
  %v2565 = vtanh.pop %v2564
  %v2566 = vsub.f32 1.0, %v2555
  %2568 = vrot.lane.b32.xlu0 %v2565, 96
  %v2569 = vpop.permute.xlu0 %2568
  %v2571 = vmul.f32 %v2566, %v2569
  %v2572 = vrot.slane %v2486, 4
  %2573 = vrot.lane.b32.xlu0 %v2572, 32
  %v2574 = vpop.permute.xlu0 %2573
  %v2576 = vmul.f32 %v2555, %v2574
  %v2577 = vadd.f32 %v2571, %v2576
  %v2578 = vadd.f32 %v2531, %v2508
  %v2579 = vxor.u32 %v2578, 2147483648
  %v2580 = vmul.f32 %v2579, 1.442695
  %v2581 = vpow.pop %v2580
  %v2582 = vadd.f32 %v2581, 1.0
  %v2583 = vrcp.pop %v2582
  %v2584 = vmul.f32 %v2582, %v2583
  %v2585 = vsub.f32 1.0, %v2584
  %v2586 = vmul.f32 %v2583, %v2585
  %v2587 = vadd.f32 %v2583, %v2586
  %vm2588 = vweird.f32 %v2582
  %vm2589 = vweird.f32 %v2583
  %vm2590 = vmor %vm2588, %vm2589
  %v2591 = vsel %vm2590, %v2583, %v2587
  %v2592 = vand.u32 2147483647, %v2582
  %vm2593 = vcmp.eq.f32.partialorder %v2592, 8.507059e+37
  %v2594 = vand.u32 %v2582, 2147483648
  %v2595 = vor.u32 1.1754944e-38, %v2594
  %v2596 = vsel %vm2593, %v2595, %v2591
  %v2597 = vmul.f32 1.0, %v2596
  %v2598 = vadd.f32 %v2532, %v2528
  %v2599 = vxor.u32 %v2598, 2147483648
  %v2600 = vmul.f32 %v2599, 1.442695
  %v2601 = vpow.pop %v2600
  %v2602 = vadd.f32 %v2601, 1.0
  %v2603 = vrcp.pop %v2602
  %v2604 = vmul.f32 %v2602, %v2603
  %v2605 = vsub.f32 1.0, %v2604
  %v2606 = vmul.f32 %v2603, %v2605
  %v2607 = vadd.f32 %v2603, %v2606
  %vm2608 = vweird.f32 %v2602
  %vm2609 = vweird.f32 %v2603
  %vm2610 = vmor %vm2608, %vm2609
  %v2611 = vsel %vm2610, %v2603, %v2607
  %v2612 = vand.u32 2147483647, %v2602
  %vm2613 = vcmp.eq.f32.partialorder %v2612, 8.507059e+37
  %v2614 = vand.u32 %v2602, 2147483648
  %v2615 = vor.u32 1.1754944e-38, %v2614
  %v2616 = vsel %vm2613, %v2615, %v2611
  %v2617 = vmul.f32 1.0, %v2616
  %2619 = vrot.lane.b32.xlu0 %v2528, 64
  %v2620 = vpop.permute.xlu0 %2619
  %v2622 = vmul.f32 %v2597, %v2620
  %2624 = vrot.lane.b32.xlu0 %v2622, 64
  %v2625 = vpop.permute.xlu0 %2624
  %v2627 = vadd.f32 %v2532, %v2625
  %v2628 = vtanh.pop %v2627
  %v2629 = vsub.f32 1.0, %v2617
  %2631 = vrot.lane.b32.xlu0 %v2628, 96
  %v2632 = vpop.permute.xlu0 %2631
  %v2634 = vmul.f32 %v2629, %v2632
  %v2635 = vmul.f32 %v2617, %v2486
  %v2636 = vadd.f32 %v2634, %v2635
  %2638 = vrot.lane.b32.xlu0 %v2577, 96
  %v2639 = vpop.permute.xlu0 %2638
  %2641 = vst.msk [vmem:[#allocation7 - $0x4] sm:$0x30] %vm436, %v2639
  %2642 = vst.msk [vmem:[#allocation7] sm:$0xc] %vm424, %v2636
  %v2643 = vrot.slane %v2577, 4
  %v2645 = vadd.f32 %v2479, %v2643
  %v2647 = vrot.slane %v2636, 4
  %v2649 = vadd.f32 %v2483, %v2647
  %v2650 = vmax.f32 %v2484, %v2643
  %v2651 = vmax.f32 %v2485, %v2647
  %v2652 = vld [vmem:[#allocation7] sm:$0xf]
  %v2654 = vsel %vm125, %v2652, 0
  %2656 = vmatpush.msra.mxu0 0.0
  %2657 = vmatpush.msra.mxu0 0.0
  %2658 = vmatpush.msra.mxu0 0.0
  %2659 = vmatpush.msra.mxu0 0.0
  %2660 = vmatpush.msra.mxu0 0.0
  %2661 = vmatpush.msra.mxu0 0.0
  %2662 = vmatpush.msra.mxu0 0.0
  %2663 = vmatpush.msra.mxu0 0.0
  %2664 = vmatpush.msra.mxu0 0.0
  %2665 = vmatpush.msra.mxu0 0.0
  %2666 = vmatpush.msra.mxu0 0.0
  %2667 = vmatpush.msra.mxu0 0.0
  %2668 = vmatpush.msra.mxu0 %v1485
  %2669 = vmatpush.msra.mxu0 %v1483
  %2670 = vmatpush.msra.mxu0 %v1481
  %2671 = vmatpush.msra.mxu0 %v1479
  %2672 = vmatmul.f32.gmra.mxu0 %v2654
  %v2673 = vpop.f32.mrf.mxu0
  %v2674 = vadd.f32 0.0, %v2673
  %2675 = vdwg.mxu0
  %2676 = vmatpush.msra.mxu0 0.0
  %2677 = vmatpush.msra.mxu0 0.0
  %2678 = vmatpush.msra.mxu0 0.0
  %2679 = vmatpush.msra.mxu0 0.0
  %2680 = vmatpush.msra.mxu0 0.0
  %2681 = vmatpush.msra.mxu0 0.0
  %2682 = vmatpush.msra.mxu0 0.0
  %2683 = vmatpush.msra.mxu0 0.0
  %2684 = vmatpush.msra.mxu0 0.0
  %2685 = vmatpush.msra.mxu0 0.0
  %2686 = vmatpush.msra.mxu0 0.0
  %2687 = vmatpush.msra.mxu0 0.0
  %2688 = vmatpush.msra.mxu0 %v1486
  %2689 = vmatpush.msra.mxu0 %v1484
  %2690 = vmatpush.msra.mxu0 %v1482
  %2691 = vmatpush.msra.mxu0 %v1480
  %2692 = vmatmul.f32.gmra.mxu0 %v2654
  %v2693 = vpop.f32.mrf.mxu0
  %v2694 = vadd.f32 0.0, %v2693
  %2695 = vdwg.mxu0
  %v2696 = vld [vmem:[#allocation4 + $0x10] sm:$0xc0]
  %v2697 = vld [vmem:[#allocation4] sm:$0x3]
  %v2698 = vld [vmem:[#allocation4 + $0x8] sm:$0x3]
  %v2700 = vrot.slane %v2674, 2
  %v2702 = vadd.f32 %v2696, %v2700
  %v2703 = vxor.u32 %v2702, 2147483648
  %v2704 = vmul.f32 %v2703, 1.442695
  %v2705 = vpow.pop %v2704
  %v2706 = vadd.f32 %v2705, 1.0
  %v2707 = vrcp.pop %v2706
  %v2708 = vmul.f32 %v2706, %v2707
  %v2709 = vsub.f32 1.0, %v2708
  %v2710 = vmul.f32 %v2707, %v2709
  %v2711 = vadd.f32 %v2707, %v2710
  %vm2712 = vweird.f32 %v2706
  %vm2713 = vweird.f32 %v2707
  %vm2714 = vmor %vm2712, %vm2713
  %v2715 = vsel %vm2714, %v2707, %v2711
  %v2716 = vand.u32 2147483647, %v2706
  %vm2717 = vcmp.eq.f32.partialorder %v2716, 8.507059e+37
  %v2718 = vand.u32 %v2706, 2147483648
  %v2719 = vor.u32 1.1754944e-38, %v2718
  %v2720 = vsel %vm2717, %v2719, %v2715
  %v2721 = vmul.f32 1.0, %v2720
  %2722 = vrot.lane.b32.xlu0 %v2700, 64
  %v2723 = vpop.permute.xlu0 %2722
  %v2725 = vmul.f32 %v2721, %v2723
  %2727 = vrot.lane.b32.xlu0 %v2725, 64
  %v2728 = vpop.permute.xlu0 %2727
  %v2730 = vadd.f32 %v2696, %v2728
  %v2731 = vtanh.pop %v2730
  %v2732 = vsub.f32 1.0, %v2721
  %2734 = vrot.lane.b32.xlu0 %v2731, 96
  %v2735 = vpop.permute.xlu0 %2734
  %v2737 = vmul.f32 %v2732, %v2735
  %v2738 = vrot.slane %v2652, 2
  %2739 = vrot.lane.b32.xlu0 %v2738, 32
  %v2740 = vpop.permute.xlu0 %2739
  %v2742 = vmul.f32 %v2721, %v2740
  %v2743 = vadd.f32 %v2737, %v2742
  %v2744 = vadd.f32 %v2697, %v2700
  %v2745 = vxor.u32 %v2744, 2147483648
  %v2746 = vmul.f32 %v2745, 1.442695
  %v2747 = vpow.pop %v2746
  %v2748 = vadd.f32 %v2747, 1.0
  %v2749 = vrcp.pop %v2748
  %v2750 = vmul.f32 %v2748, %v2749
  %v2751 = vsub.f32 1.0, %v2750
  %v2752 = vmul.f32 %v2749, %v2751
  %v2753 = vadd.f32 %v2749, %v2752
  %vm2754 = vweird.f32 %v2748
  %vm2755 = vweird.f32 %v2749
  %vm2756 = vmor %vm2754, %vm2755
  %v2757 = vsel %vm2756, %v2749, %v2753
  %v2758 = vand.u32 2147483647, %v2748
  %vm2759 = vcmp.eq.f32.partialorder %v2758, 8.507059e+37
  %v2760 = vand.u32 %v2748, 2147483648
  %v2761 = vor.u32 1.1754944e-38, %v2760
  %v2762 = vsel %vm2759, %v2761, %v2757
  %v2763 = vmul.f32 1.0, %v2762
  %v2765 = vrot.slane %v2694, 2
  %v2767 = vadd.f32 %v2698, %v2765
  %v2768 = vxor.u32 %v2767, 2147483648
  %v2769 = vmul.f32 %v2768, 1.442695
  %v2770 = vpow.pop %v2769
  %v2771 = vadd.f32 %v2770, 1.0
  %v2772 = vrcp.pop %v2771
  %v2773 = vmul.f32 %v2771, %v2772
  %v2774 = vsub.f32 1.0, %v2773
  %v2775 = vmul.f32 %v2772, %v2774
  %v2776 = vadd.f32 %v2772, %v2775
  %vm2777 = vweird.f32 %v2771
  %vm2778 = vweird.f32 %v2772
  %vm2779 = vmor %vm2777, %vm2778
  %v2780 = vsel %vm2779, %v2772, %v2776
  %v2781 = vand.u32 2147483647, %v2771
  %vm2782 = vcmp.eq.f32.partialorder %v2781, 8.507059e+37
  %v2783 = vand.u32 %v2771, 2147483648
  %v2784 = vor.u32 1.1754944e-38, %v2783
  %v2785 = vsel %vm2782, %v2784, %v2780
  %v2786 = vmul.f32 1.0, %v2785
  %2787 = vrot.lane.b32.xlu0 %v2765, 64
  %v2788 = vpop.permute.xlu0 %2787
  %v2790 = vmul.f32 %v2763, %v2788
  %2792 = vrot.lane.b32.xlu0 %v2790, 64
  %v2793 = vpop.permute.xlu0 %2792
  %v2795 = vadd.f32 %v2698, %v2793
  %v2796 = vtanh.pop %v2795
  %v2797 = vsub.f32 1.0, %v2786
  %2799 = vrot.lane.b32.xlu0 %v2796, 96
  %v2800 = vpop.permute.xlu0 %2799
  %v2802 = vmul.f32 %v2797, %v2800
  %v2804 = vmul.f32 %v2786, %v2738
  %v2805 = vadd.f32 %v2802, %v2804
  %2807 = vrot.lane.b32.xlu0 %v2743, 96
  %v2808 = vpop.permute.xlu0 %2807
  %2810 = vst.msk [vmem:[#allocation7 - $0x6] sm:$0xc0] %vm274, %v2808
  %2811 = vst.msk [vmem:[#allocation7 + $0x2] sm:$0x3] %vm262, %v2805
  %v2812 = vrot.slane %v2743, 6
  %v2814 = vadd.f32 %v2645, %v2812
  %v2816 = vrot.slane %v2805, 2
  %v2818 = vadd.f32 %v2649, %v2816
  %v2819 = vmax.f32 %v2650, %v2812
  %v2820 = vmax.f32 %v2651, %v2816
  %vm2821 = vcmask 260102
  %2822 = vst.msk [vmem:[#allocation8 - $0x6] sm:$0x40] %vm2821, %v2808
  %vm2823 = vcmask 523527
  %2824 = vst.msk [vmem:[#allocation8 - $0x7] sm:$0x80] %vm2823, %v2743
  %vm2825 = vcmask 253952
  %2826 = vst.msk [vmem:[#allocation8 + $0x1] sm:$0x1] %vm2825, %v2805
  %2827 = vrot.lane.b32.xlu0 %v2805, 32
  %v2828 = vpop.permute.xlu0 %2827
  %vm2830 = vcmask 517377
  %2831 = vst.msk [vmem:[#allocation8] sm:$0x2] %vm2830, %v2828
  %v2832 = vld [vmem:[#allocation8] sm:$0x3]
  %v2833 = vmul.f32 %v2814, 0.125
  %v2834 = vmul.f32 %v2818, 0.125
  %v2835 = vld [vmem:[%s6] sm:$0xff]
  %v2836 = vld [vmem:[%s6 + $0x8] sm:$0xff]
  %v2837 = vld [vmem:[%s6 + $0x10] sm:$0xff]
  %v2838 = vld [vmem:[%s6 + $0x18] sm:$0xff]
  %v2839 = vld [vmem:[%s6 + $0x20] sm:$0xff]
  %v2840 = vld [vmem:[%s6 + $0x28] sm:$0xff]
  %v2841 = vld [vmem:[%s6 + $0x30] sm:$0xff]
  %v2842 = vld [vmem:[%s6 + $0x38] sm:$0xff]
  %v2843 = vld [vmem:[%s6 + $0x40] sm:$0xff]
  %v2844 = vld [vmem:[%s6 + $0x48] sm:$0xff]
  %v2845 = vld [vmem:[%s6 + $0x50] sm:$0xff]
  %v2846 = vld [vmem:[%s6 + $0x58] sm:$0xff]
  %2848 = vrot.lane.b32.xlu0 %v2833, 96
  %v2849 = vpop.permute.xlu0 %2848
  %v2850 = vsel %vm125, %v2849, 0
  %2852 = vmatpush.msra.mxu0 0.0
  %2853 = vmatpush.msra.mxu0 0.0
  %2854 = vmatpush.msra.mxu0 0.0
  %2855 = vmatpush.msra.mxu0 0.0
  %2856 = vmatpush.msra.mxu0 0.0
  %2857 = vmatpush.msra.mxu0 0.0
  %2858 = vmatpush.msra.mxu0 0.0
  %2859 = vmatpush.msra.mxu0 0.0
  %2860 = vmatpush.msra.mxu0 0.0
  %2861 = vmatpush.msra.mxu0 0.0
  %2862 = vmatpush.msra.mxu0 0.0
  %2863 = vmatpush.msra.mxu0 0.0
  %2864 = vmatpush.msra.mxu0 %v2846
  %2865 = vmatpush.msra.mxu0 %v2845
  %2866 = vmatpush.msra.mxu0 %v2844
  %2867 = vmatpush.msra.mxu0 %v2843
  %2868 = vmatmul.f32.gmra.mxu0 %v2850
  %v2869 = vpop.f32.mrf.mxu0
  %v2870 = vadd.f32 0.0, %v2869
  %2871 = vdwg.mxu0
  %v2873 = vsel %vm55, %v2832, 0
  %2875 = vmatpush.msra.mxu0 0.0
  %2876 = vmatpush.msra.mxu0 0.0
  %2877 = vmatpush.msra.mxu0 0.0
  %2878 = vmatpush.msra.mxu0 0.0
  %2879 = vmatpush.msra.mxu0 0.0
  %2880 = vmatpush.msra.mxu0 0.0
  %2881 = vmatpush.msra.mxu0 0.0
  %2882 = vmatpush.msra.mxu0 0.0
  %2883 = vmatpush.msra.mxu0 %v2842
  %2884 = vmatpush.msra.mxu0 %v2841
  %2885 = vmatpush.msra.mxu0 %v2840
  %2886 = vmatpush.msra.mxu0 %v2839
  %2887 = vmatpush.msra.mxu0 %v2838
  %2888 = vmatpush.msra.mxu0 %v2837
  %2889 = vmatpush.msra.mxu0 %v2836
  %2890 = vmatpush.msra.mxu0 %v2835
  %2891 = vmatmul.f32.gmra.mxu0 %v2873
  %v2892 = vpop.f32.mrf.mxu0
  %v2893 = vadd.f32 %v2870, %v2892
  %2894 = vdwg.mxu0
  %v2895 = vld [vmem:[%s6 + $0x60] sm:$0xff]
  %v2896 = vld [vmem:[%s6 + $0x68] sm:$0xff]
  %v2897 = vld [vmem:[%s6 + $0x70] sm:$0xff]
  %v2898 = vld [vmem:[%s6 + $0x78] sm:$0xff]
  %v2900 = vrot.slane %v2834, 6
  %v2901 = vsel %vm125, %v2900, 0
  %2903 = vmatpush.msra.mxu0 0.0
  %2904 = vmatpush.msra.mxu0 0.0
  %2905 = vmatpush.msra.mxu0 0.0
  %2906 = vmatpush.msra.mxu0 0.0
  %2907 = vmatpush.msra.mxu0 0.0
  %2908 = vmatpush.msra.mxu0 0.0
  %2909 = vmatpush.msra.mxu0 0.0
  %2910 = vmatpush.msra.mxu0 0.0
  %2911 = vmatpush.msra.mxu0 0.0
  %2912 = vmatpush.msra.mxu0 0.0
  %2913 = vmatpush.msra.mxu0 0.0
  %2914 = vmatpush.msra.mxu0 0.0
  %2915 = vmatpush.msra.mxu0 %v2898
  %2916 = vmatpush.msra.mxu0 %v2897
  %2917 = vmatpush.msra.mxu0 %v2896
  %2918 = vmatpush.msra.mxu0 %v2895
  %2919 = vmatmul.f32.gmra.mxu0 %v2901
  %v2920 = vpop.f32.mrf.mxu0
  %v2921 = vadd.f32 0.0, %v2920
  %2922 = vdwg.mxu0
  %v2923 = vadd.f32 %v2893, %v2921
  %v2924 = vld [vmem:[%s6 + $0x80] sm:$0xff]
  %v2925 = vld [vmem:[%s6 + $0x88] sm:$0xff]
  %v2926 = vld [vmem:[%s6 + $0x90] sm:$0xff]
  %v2927 = vld [vmem:[%s6 + $0x98] sm:$0xff]
  %2929 = vrot.lane.b32.xlu0 %v2819, 96
  %v2930 = vpop.permute.xlu0 %2929
  %v2931 = vsel %vm125, %v2930, 0
  %2933 = vmatpush.msra.mxu0 0.0
  %2934 = vmatpush.msra.mxu0 0.0
  %2935 = vmatpush.msra.mxu0 0.0
  %2936 = vmatpush.msra.mxu0 0.0
  %2937 = vmatpush.msra.mxu0 0.0
  %2938 = vmatpush.msra.mxu0 0.0
  %2939 = vmatpush.msra.mxu0 0.0
  %2940 = vmatpush.msra.mxu0 0.0
  %2941 = vmatpush.msra.mxu0 0.0
  %2942 = vmatpush.msra.mxu0 0.0
  %2943 = vmatpush.msra.mxu0 0.0
  %2944 = vmatpush.msra.mxu0 0.0
  %2945 = vmatpush.msra.mxu0 %v2927
  %2946 = vmatpush.msra.mxu0 %v2926
  %2947 = vmatpush.msra.mxu0 %v2925
  %2948 = vmatpush.msra.mxu0 %v2924
  %2949 = vmatmul.f32.gmra.mxu0 %v2931
  %v2950 = vpop.f32.mrf.mxu0
  %v2951 = vadd.f32 0.0, %v2950
  %2952 = vdwg.mxu0
  %v2953 = vadd.f32 %v2923, %v2951
  %v2954 = vld [vmem:[%s6 + $0xa0] sm:$0xff]
  %v2955 = vld [vmem:[%s6 + $0xa8] sm:$0xff]
  %v2956 = vld [vmem:[%s6 + $0xb0] sm:$0xff]
  %v2957 = vld [vmem:[%s6 + $0xb8] sm:$0xff]
  %v2959 = vrot.slane %v2820, 6
  %v2960 = vsel %vm125, %v2959, 0
  %2962 = vmatpush.msra.mxu0 0.0
  %2963 = vmatpush.msra.mxu0 0.0
  %2964 = vmatpush.msra.mxu0 0.0
  %2965 = vmatpush.msra.mxu0 0.0
  %2966 = vmatpush.msra.mxu0 0.0
  %2967 = vmatpush.msra.mxu0 0.0
  %2968 = vmatpush.msra.mxu0 0.0
  %2969 = vmatpush.msra.mxu0 0.0
  %2970 = vmatpush.msra.mxu0 0.0
  %2971 = vmatpush.msra.mxu0 0.0
  %2972 = vmatpush.msra.mxu0 0.0
  %2973 = vmatpush.msra.mxu0 0.0
  %2974 = vmatpush.msra.mxu0 %v2957
  %2975 = vmatpush.msra.mxu0 %v2956
  %2976 = vmatpush.msra.mxu0 %v2955
  %2977 = vmatpush.msra.mxu0 %v2954
  %2978 = vmatmul.f32.gmra.mxu0 %v2960
  %v2979 = vpop.f32.mrf.mxu0
  %v2980 = vadd.f32 0.0, %v2979
  %2981 = vdwg.mxu0
  %v2982 = vadd.f32 %v2953, %v2980
  %v2983 = vld [vmem:[%s5] sm:$0x3]
  %v2984 = vld [vmem:[%s6 + $0xc0] sm:$0xf]
  %vm2985 = vcmask 31744
  %v2987 = vsel %vm2985, %v2983, 0
  %vm2989 = vcmask 1043456
  %v2991 = vsel %vm2989, %v2984, 0
  %2993 = vmatpush.msra.mxu0 0.0
  %2994 = vmatpush.msra.mxu0 0.0
  %2995 = vmatpush.msra.mxu0 0.0
  %2996 = vmatpush.msra.mxu0 0.0
  %2997 = vmatpush.msra.mxu0 0.0
  %2998 = vmatpush.msra.mxu0 0.0
  %2999 = vmatpush.msra.mxu0 0.0
  %3000 = vmatpush.msra.mxu0 0.0
  %3001 = vmatpush.msra.mxu0 0.0
  %3002 = vmatpush.msra.mxu0 0.0
  %3003 = vmatpush.msra.mxu0 0.0
  %3004 = vmatpush.msra.mxu0 0.0
  %3005 = vmatpush.msra.mxu0 0.0
  %3006 = vmatpush.msra.mxu0 0.0
  %3007 = vmatpush.msra.mxu0 0.0
  %3008 = vmatpush.msra.mxu0 %v2991
  %3009 = vmatmul.f32.gmra.mxu0 %v2987
  %v3010 = vpop.f32.mrf.mxu0
  %v3011 = vadd.f32 0.0, %v3010
  %3012 = vdwg.mxu0
  %v3013 = vadd.f32 %v2982, %v3011
  %v3014 = vld [vmem:[%s7] sm:$0x1]
  %v3016 = vperm.slane %v3014, 0
  %v3018 = vadd.f32 %v3013, %v3016
  %v3019 = vmax.f32 %v3018, 0.0
  %v3020 = vld [vmem:[%s8] sm:$0xff]
  %v3021 = vld [vmem:[%s8 + $0x8] sm:$0xff]
  %v3022 = vld [vmem:[%s8 + $0x10] sm:$0xff]
  %v3023 = vld [vmem:[%s8 + $0x18] sm:$0xff]
  %v3024 = vld [vmem:[#allocation9] sm:$0x1]
  %v3026 = vperm.slane %v3024, 0
  %v3029 = vsel %vm125, %v3019, 0
  %3031 = vmatpush.msra.mxu0 0.0
  %3032 = vmatpush.msra.mxu0 0.0
  %3033 = vmatpush.msra.mxu0 0.0
  %3034 = vmatpush.msra.mxu0 0.0
  %3035 = vmatpush.msra.mxu0 0.0
  %3036 = vmatpush.msra.mxu0 0.0
  %3037 = vmatpush.msra.mxu0 0.0
  %3038 = vmatpush.msra.mxu0 0.0
  %3039 = vmatpush.msra.mxu0 0.0
  %3040 = vmatpush.msra.mxu0 0.0
  %3041 = vmatpush.msra.mxu0 0.0
  %3042 = vmatpush.msra.mxu0 0.0
  %3043 = vmatpush.msra.mxu0 %v3023
  %3044 = vmatpush.msra.mxu0 %v3022
  %3045 = vmatpush.msra.mxu0 %v3021
  %3046 = vmatpush.msra.mxu0 %v3020
  %3047 = vmatmul.f32.gmra.mxu0 %v3029
  %v3048 = vpop.f32.mrf.mxu0
  %v3049 = vadd.f32 %v3026, %v3048
  %3050 = vdwg.mxu0
  %vm3051 = vcmask 1024
  %3052 = vst.msk [vmem:[%s10] sm:$0x3] %vm3051, %v3049
  // Predicated region
  $region42: #{neural_net_forward.1} parent=0 // pred_check
    _
  $region43: #{neural_net_forward.1} parent=0 // pred_check_branch
    %3054 = sbr.rel (0) target = $region45
  $region44: #{neural_net_forward.1} parent=0 // pred_region
    _
  $region45: #{neural_net_forward.1} parent=0 // pred_fallthru
    _
  // Predicated region
  $region46: #{neural_net_forward.1} parent=0 // pred_check
    _
  $region47: #{neural_net_forward.1} parent=0 // pred_check_branch
    %3056 = sbr.rel (0) target = $region49
  $region48: #{neural_net_forward.1} parent=0 // pred_region
    _
  $region49: #{neural_net_forward.1} parent=0 // pred_fallthru
    _

</llo_original>
